<compile_context>
chip_gen: v7x
topology: tpu7x:2x2x1
jax: 0.10.0
libtpu: 0.0.40
codegen_flags: <defaults>
</compile_context>

<pallas_src>
import functools
import math

import jax
import jax.numpy as jnp
from jax import lax
from jax.experimental import pallas as pl
from jax.experimental.pallas import tpu as pltpu

EPS = 1e-12  # matches F.normalize default eps


# --------------------------------- helpers --------------------------------------
def _cparams(sem, est_bytes):
    # explicit scoped-VMEM limit sized from the block footprint (with headroom),
    # clamped to stay under every generation's physical VMEM.
    lim = int(min(48 * 1024 * 1024, max(24 * 1024 * 1024, 2 * est_bytes)))
    return pltpu.CompilerParams(dimension_semantics=sem, vmem_limit_bytes=lim)


def _row_tile(n, target, mult=1):
    """Pick a row tile: `target` when it divides n (tile*mult stays 8-aligned),
    otherwise fall back to the full extent (always a legal block shape)."""
    if n >= target and n % target == 0 and (target * mult) % 8 == 0:
        return target
    return n


def _gather_neighbors(x, idx):
    # x: (bs, N, C), idx: (bs, N, nn) -> out[b, i, j] = x[b, idx[b, i, j]]
    # TODO(synk): data-dependent row gather left as XLA glue (see header).
    return jax.vmap(lambda xb, ib: xb[ib])(x, idx)


def _pack_factor(n, k):
    # fold `pack` consecutive vertices into one 128-lane-dense output row
    if k >= 128 or k <= 0:
        return 1
    p = 128 // math.gcd(128, k)
    return p if n % p == 0 else 1


# --------------------- kernel 1: fused distance + knn selection -----------------
def _knn_kernel(vq_ref, vk_ref, ksq_ref, idx_ref, *, nbh):
    vq = vq_ref[0]                                             # (tq, 3) query rows
    vk = vk_ref[0]                                             # (N, 3)  all points
    # squared distance: -2 q.k + |q|^2 + |k|^2  (|k|^2 hoisted to the wrapper)
    inner = lax.dot_general(vq, vk, (((1,), (1,)), ((), ())),
                            preferred_element_type=jnp.float32)        # (tq, N)
    qsq = jnp.sum(vq * vq, axis=1, keepdims=True)              # (tq, 1)
    d = inner * (-2.0) + qsq + ksq_ref[0]                      # (tq, N)

    tq, n = d.shape
    colf = lax.broadcasted_iota(jnp.int32, (tq, n), 1).astype(jnp.float32)
    ocol = lax.broadcasted_iota(jnp.int32, (tq, nbh), 1)
    out = jnp.zeros((tq, nbh), jnp.int32)
    # (nbh+1)-smallest via iterative min + mask.  Pass 0 picks the query point
    # itself (distance ~0) and is dropped, matching torch topk(...)[:, :, 1:].
    for j in range(nbh + 1):
        m = jnp.min(d, axis=1, keepdims=True)                              # (tq,1)
        sel = jnp.min(jnp.where(d <= m, colf, jnp.float32(n)),
                      axis=1, keepdims=True)                               # (tq,1)
        if j > 0:
            out = jnp.where(ocol == (j - 1), sel.astype(jnp.int32), out)
        d = jnp.where(colf == sel, 3.0e38, d)
    idx_ref[0] = out


def knn_indices(vertices, neighbor_num, *, tile_q=256):
    """Fused pairwise distance + top-(nn+1) selection.  Returns (bs, N, nn) int32
    neighbor indices; the O(N^2) distance matrix never leaves VMEM."""
    bs, n, _ = vertices.shape
    tq = _row_tile(n, tile_q)
    ksq = jnp.sum(vertices * vertices, axis=2)[:, None, :]     # (bs, 1, N), hoisted
    kern = functools.partial(_knn_kernel, nbh=neighbor_num)
    est = 6 * 4 * tq * n
    return pl.pallas_call(
        kern,
        out_shape=jax.ShapeDtypeStruct((bs, n, neighbor_num), jnp.int32),
        grid=(bs, n // tq),
        in_specs=[pl.BlockSpec((1, tq, 3), lambda b, i: (b, i, 0)),
                  pl.BlockSpec((1, n, 3), lambda b, i: (b, 0, 0)),
                  pl.BlockSpec((1, 1, n), lambda b, i: (b, 0, 0))],
        out_specs=pl.BlockSpec((1, tq, neighbor_num), lambda b, i: (b, i, 0)),
        compiler_params=_cparams(("parallel", "parallel"), est),
    )(vertices, vertices, ksq)


# --------------------------- kernel 2: graph conv --------------------------------
def _graph_conv_kernel(d_ref, sdn_ref, pool_ref, f_ref, *, nbh):
    d = d_ref[0]                                               # (tn*nn, 3) directions
    nrm = jnp.sqrt(jnp.sum(d * d, axis=1, keepdims=True))
    dn = d / jnp.maximum(nrm, EPS)                             # F.normalize(dim=-1)
    theta = jnp.maximum(
        jnp.dot(dn, sdn_ref[...], preferred_element_type=jnp.float32), 0.0)
    m, sk = theta.shape
    tmax = jnp.max(theta.reshape(m // nbh, nbh, sk), axis=1)   # max over neighbors
    # mean over supports as a matmul with the (S*K, K) pooling matrix (idle MXU,
    # avoids 32-lane slice shuffles on the XLU).
    f_ref[0] = jnp.dot(tmax, pool_ref[...], preferred_element_type=jnp.float32)


def graph_conv(d, sdn, pool, *, neighbor_num, tile_n=512):
    bs, m, _ = d.shape
    n = m // neighbor_num
    sk, k = pool.shape
    tn = _row_tile(n, tile_n, mult=neighbor_num)
    kern = functools.partial(_graph_conv_kernel, nbh=neighbor_num)
    est = 4 * tn * neighbor_num * (3 + 2 * sk)
    return pl.pallas_call(
        kern,
        out_shape=jax.ShapeDtypeStruct((bs, n, k), jnp.float32),
        grid=(bs, n // tn),
        in_specs=[pl.BlockSpec((1, tn * neighbor_num, 3), lambda b, i: (b, i, 0)),
                  pl.BlockSpec((3, sk), lambda b, i: (0, 0)),
                  pl.BlockSpec((sk, k), lambda b, i: (0, 0))],
        out_specs=pl.BlockSpec((1, tn, k), lambda b, i: (b, i, 0)),
        compiler_params=_cparams(("parallel", "parallel"), est),
    )(d, sdn, pool)


# ---------------- kernel 3: fused conv2 + residual + STE (lane dense) ------------
def _out_kernel(x_ref, w_ref, g_ref, o_ref):
    # [feature | vertices] @ [w2a + I ; w_ste]  +  (g @ w2b)   (residual folded in)
    o_ref[0] = (jnp.dot(x_ref[0], w_ref[...], preferred_element_type=jnp.float32)
                + g_ref[0])


def fused_output(x_packed, w_packed, g_packed, *, tile_rows=512):
    bs, rows, cp = x_packed.shape
    kp = w_packed.shape[1]
    tr = _row_tile(rows, tile_rows)
    est = 4 * tr * (cp + 2 * kp)
    return pl.pallas_call(
        _out_kernel,
        out_shape=jax.ShapeDtypeStruct((bs, rows, kp), jnp.float32),
        grid=(bs, rows // tr),
        in_specs=[pl.BlockSpec((1, tr, cp), lambda b, i: (b, i, 0)),
                  pl.BlockSpec((cp, kp), lambda b, i: (0, 0)),
                  pl.BlockSpec((1, 1, kp), lambda b, i: (b, 0, 0))],
        out_specs=pl.BlockSpec((1, tr, kp), lambda b, i: (b, i, 0)),
        compiler_params=_cparams(("parallel", "parallel"), est),
    )(x_packed, w_packed, g_packed)


# --------------------------------- forward ---------------------------------------
def hs_layer_forward(vertices, params, *, neighbor_num, support_num, kernel_num):
    bs, n, _ = vertices.shape
    k = kernel_num
    nn = neighbor_num

    # 1) fused pairwise distance + top-(nn+1) neighbor selection (Pallas)
    idx = knn_indices(vertices, nn)                               # (bs, N, nn) int32

    # 2) neighbor directions (XLA gather glue)
    nbrs = _gather_neighbors(vertices, idx)                       # (bs, N, nn, 3)
    d = (nbrs - vertices[:, :, None, :]).reshape(bs, n * nn, 3)

    # one-time weight preprocessing (outside the kernels)
    dirs = params["directions"]
    sdn = dirs / jnp.maximum(
        jnp.sqrt(jnp.sum(dirs * dirs, axis=0, keepdims=True)), EPS)   # (3, S*K)
    pool = jnp.tile(jnp.eye(k, dtype=jnp.float32), (support_num, 1)) / support_num

    # 3) graph conv: normalize -> theta -> ReLU -> max(nn) -> mean(S)   (Pallas)
    feature = graph_conv(d, sdn, pool, neighbor_num=nn)           # (bs, N, K)

    # 4) ORL global feature (XLA gather glue + tiny reductions)
    fnb = _gather_neighbors(feature, idx)                         # (bs, N, nn, K)
    g = jnp.mean(jnp.max(fnb, axis=2), axis=1, keepdims=True)     # (bs, 1, K)
    gb = jnp.einsum("bok,kj->boj", g, params["w2"][k:])           # g @ w2b, (bs,1,K)

    # 5) conv2 + residual + STE as ONE fused matmul (Pallas), lane-dense output:
    #    pack `pack` consecutive vertices per 128-lane row via a block-diagonal
    #    weight; wrapper-side reshapes are contiguous row-major regroups (free).
    w_top = params["w2"][:k] + jnp.eye(k, dtype=jnp.float32)      # fold residual
    w_cat = jnp.concatenate([w_top, params["w_ste"]], axis=0)     # (K+3, K)
    x = jnp.concatenate([feature, vertices], axis=-1)             # (bs, N, K+3)

    pack = _pack_factor(n, k)                                     # 4 for K=32
    xp = x.reshape(bs, n // pack, pack * (k + 3))
    wp = jnp.kron(jnp.eye(pack, dtype=jnp.float32), w_cat)        # block-diagonal
    gp = jnp.tile(gb, (1, 1, pack))
    outp = fused_output(xp, wp, gp)                               # (bs, N/pack, pack*K)
    return outp.reshape(bs, n, k)


# --------------------------- pure-JAX reference check ----------------------------
def reference_forward(vertices, idx, params, *, support_num, kernel_num):
    bs, n, _ = vertices.shape
    nn = idx.shape[-1]
    w_ste, w2, directions = params["w_ste"], params["w2"], params["directions"]
    f_ste = vertices @ w_ste
    nb = _gather_neighbors(vertices, idx)
    d = nb - vertices[:, :, None, :]
    dn = d / jnp.maximum(jnp.sqrt(jnp.sum(d * d, axis=-1, keepdims=True)), EPS)
    sdn = directions / jnp.maximum(
        jnp.sqrt(jnp.sum(directions * directions, axis=0, keepdims=True)), EPS)
    theta = jnp.maximum(dn @ sdn, 0.0)
    theta = theta.reshape(bs, n, nn, support_num, kernel_num)
    feature = jnp.mean(jnp.max(theta, axis=2), axis=2)
    fnb = _gather_neighbors(feature, idx)
    g = jnp.mean(jnp.max(fnb, axis=2), axis=1, keepdims=True)
    gfull = jnp.broadcast_to(g, (bs, n, kernel_num))
    feat2 = jnp.concatenate([feature, gfull], axis=-1) @ w2 + feature
    return feat2 + f_ste


# ------------------------------------- main ---------------------------------------
if __name__ == "__main__":
    bs, n, neighbor_num = 2, 64, 8
    kernel_num, support_num = 32, 4

    key = jax.random.PRNGKey(0)
    k_v, k_dir, k_ste, k_c2 = jax.random.split(key, 4)

    vertices = jax.random.normal(k_v, (bs, n, 3), dtype=jnp.float32)

    stdv = 1.0 / math.sqrt(support_num * kernel_num)
    params = {
        # nn.Parameter (3, support_num * kernel_num), uniform(-stdv, stdv)
        "directions": jax.random.uniform(k_dir, (3, support_num * kernel_num),
                                         jnp.float32, -stdv, stdv),
        # Conv1d(3, K, 1, bias=False) weight^T
        "w_ste": jax.random.uniform(k_ste, (3, kernel_num), jnp.float32,
                                    -1.0 / math.sqrt(3.0), 1.0 / math.sqrt(3.0)),
        # Conv1d(2K, K, 1, bias=False) weight^T
        "w2": jax.random.uniform(k_c2, (2 * kernel_num, kernel_num), jnp.float32,
                                 -1.0 / math.sqrt(2 * kernel_num),
                                 1.0 / math.sqrt(2 * kernel_num)),
    }

    fwd = jax.jit(functools.partial(hs_layer_forward,
                                    neighbor_num=neighbor_num,
                                    support_num=support_num,
                                    kernel_num=kernel_num))
    out = jax.block_until_ready(fwd(vertices, params))
    assert out.shape == (bs, n, kernel_num)

    # sanity: fused knn kernel vs plain-JAX distance + top_k (same neighbor sets)
    idx = jax.block_until_ready(knn_indices(vertices, neighbor_num))
    inner = jnp.einsum("bic,bjc->bij", vertices, vertices)
    quad = jnp.sum(vertices ** 2, axis=2)
    dist = -2.0 * inner + quad[:, None, :] + quad[:, :, None]
    idx_ref = lax.top_k(-dist, neighbor_num + 1)[1][:, :, 1:]
    assert bool(jnp.all(jnp.sort(idx, axis=-1) == jnp.sort(idx_ref, axis=-1))), \
        "knn kernel disagrees with reference top_k"

    # sanity: full forward vs pure-JAX reference (shared neighbor indices)
    ref = reference_forward(vertices, idx, params,
                            support_num=support_num, kernel_num=kernel_num)
    assert jnp.allclose(out, ref, atol=1e-3, rtol=1e-3), "forward mismatch"

    print("KERNEL_OK")
</pallas_src>

<mosaic_0001>
module attributes {stable_mosaic.version = 11 : i64} {
  func.func @_knn_kernel(%arg0: i32, %arg1: i32, %arg2: memref<1x64x3xf32, #tpu.memory_space<vmem>>, %arg3: memref<1x64x3xf32, #tpu.memory_space<vmem>>, %arg4: memref<1x1x64xf32, #tpu.memory_space<vmem>>, %arg5: memref<1x64x8xi32, #tpu.memory_space<vmem>>) attributes {dimension_semantics = [#tpu.dimension_semantics<parallel>, #tpu.dimension_semantics<parallel>], iteration_bounds = array<i64: 2, 1>, scalar_prefetch = 0 : i64, scratch_operands = 0 : i64, tpu.core_type = #tpu.core_type<tc>, window_params = [{transform_indices = @transform_0, window_bounds = array<i64: 1, 64, 3>}, {transform_indices = @transform_1, window_bounds = array<i64: 1, 64, 3>}, {transform_indices = @transform_2, window_bounds = array<i64: 1, 1, 64>}, {transform_indices = @transform_3, window_bounds = array<i64: 1, 64, 8>}]} {
    %c0 = arith.constant 0 : index
    %c0_0 = arith.constant 0 : index
    %c0_1 = arith.constant 0 : index
    %0 = vector.load %arg2[%c0, %c0_0, %c0_1] : memref<1x64x3xf32, #tpu.memory_space<vmem>>, vector<1x64x3xf32>
    %1 = vector.shape_cast %0 : vector<1x64x3xf32> to vector<64x3xf32>
    %c0_2 = arith.constant 0 : index
    %c0_3 = arith.constant 0 : index
    %c0_4 = arith.constant 0 : index
    %2 = vector.load %arg3[%c0_2, %c0_3, %c0_4] : memref<1x64x3xf32, #tpu.memory_space<vmem>>, vector<1x64x3xf32>
    %3 = vector.shape_cast %2 : vector<1x64x3xf32> to vector<64x3xf32>
    %cst = arith.constant dense<0.000000e+00> : vector<64x64xf32>
    %4 = tpu.matmul %1, %3, %cst {dimension_numbers = #tpu.dot_dimension_numbers<[1], [1], [0], [0], [0, 0, 1, 0], [], []>} : vector<64x3xf32>, vector<64x3xf32>, vector<64x64xf32> -> vector<64x64xf32>
    %5 = arith.mulf %1, %1 : vector<64x3xf32>
    %cst_5 = arith.constant dense<0.000000e+00> : vector<64xf32>
    %6 = vector.multi_reduction <add>, %5, %cst_5 [1] : vector<64x3xf32> to vector<64xf32>
    %7 = vector.shape_cast %6 : vector<64xf32> to vector<64x1xf32>
    %cst_6 = arith.constant -2.000000e+00 : f32
    %8 = vector.broadcast %cst_6 : f32 to vector<64x64xf32>
    %9 = arith.mulf %4, %8 : vector<64x64xf32>
    %10 = vector.broadcast %7 : vector<64x1xf32> to vector<64x64xf32>
    %11 = arith.addf %9, %10 : vector<64x64xf32>
    %c0_7 = arith.constant 0 : index
    %c0_8 = arith.constant 0 : index
    %c0_9 = arith.constant 0 : index
    %12 = vector.load %arg4[%c0_7, %c0_8, %c0_9] : memref<1x1x64xf32, #tpu.memory_space<vmem>>, vector<1x1x64xf32>
    %13 = vector.shape_cast %12 : vector<1x1x64xf32> to vector<1x64xf32>
    %14 = vector.broadcast %13 : vector<1x64xf32> to vector<64x64xf32>
    %15 = arith.addf %11, %14 : vector<64x64xf32>
    %16 = tpu.iota {dimensions = array<i32: 1>} : vector<64x64xi32>
    %17 = arith.sitofp %16 : vector<64x64xi32> to vector<64x64xf32>
    %18 = tpu.iota {dimensions = array<i32: 1>} : vector<64x8xi32>
    %c0_i32 = arith.constant 0 : i32
    %19 = vector.broadcast %c0_i32 : i32 to vector<64x8xi32>
    %cst_10 = arith.constant dense<0x7F800000> : vector<64xf32>
    %20 = vector.multi_reduction <minimumf>, %15, %cst_10 [1] : vector<64x64xf32> to vector<64xf32>
    %21 = vector.shape_cast %20 : vector<64xf32> to vector<64x1xf32>
    %22 = vector.broadcast %21 : vector<64x1xf32> to vector<64x64xf32>
    %23 = arith.cmpf ole, %15, %22 : vector<64x64xf32>
    %cst_11 = arith.constant 6.400000e+01 : f32
    %24 = vector.broadcast %cst_11 : f32 to vector<64x64xf32>
    %25 = arith.select %23, %17, %24 : vector<64x64xi1>, vector<64x64xf32>
    %cst_12 = arith.constant dense<0x7F800000> : vector<64xf32>
    %26 = vector.multi_reduction <minimumf>, %25, %cst_12 [1] : vector<64x64xf32> to vector<64xf32>
    %27 = vector.shape_cast %26 : vector<64xf32> to vector<64x1xf32>
    %28 = vector.broadcast %27 : vector<64x1xf32> to vector<64x64xf32>
    %29 = arith.cmpf oeq, %17, %28 : vector<64x64xf32>
    %cst_13 = arith.constant 3.000000e+38 : f32
    %30 = vector.broadcast %cst_13 : f32 to vector<64x64xf32>
    %31 = arith.select %29, %30, %15 : vector<64x64xi1>, vector<64x64xf32>
    %cst_14 = arith.constant dense<0x7F800000> : vector<64xf32>
    %32 = vector.multi_reduction <minimumf>, %31, %cst_14 [1] : vector<64x64xf32> to vector<64xf32>
    %33 = vector.shape_cast %32 : vector<64xf32> to vector<64x1xf32>
    %34 = vector.broadcast %33 : vector<64x1xf32> to vector<64x64xf32>
    %35 = arith.cmpf ole, %31, %34 : vector<64x64xf32>
    %cst_15 = arith.constant 6.400000e+01 : f32
    %36 = vector.broadcast %cst_15 : f32 to vector<64x64xf32>
    %37 = arith.select %35, %17, %36 : vector<64x64xi1>, vector<64x64xf32>
    %cst_16 = arith.constant dense<0x7F800000> : vector<64xf32>
    %38 = vector.multi_reduction <minimumf>, %37, %cst_16 [1] : vector<64x64xf32> to vector<64xf32>
    %39 = vector.shape_cast %38 : vector<64xf32> to vector<64x1xf32>
    %c0_i32_17 = arith.constant 0 : i32
    %40 = vector.broadcast %c0_i32_17 : i32 to vector<64x8xi32>
    %41 = arith.cmpi eq, %18, %40 : vector<64x8xi32>
    %42 = arith.fptosi %39 : vector<64x1xf32> to vector<64x1xi32>
    %43 = vector.shape_cast %42 : vector<64x1xi32> to vector<64x1xi32>
    %44 = vector.broadcast %43 : vector<64x1xi32> to vector<64x8xi32>
    %45 = arith.select %41, %44, %19 : vector<64x8xi1>, vector<64x8xi32>
    %46 = vector.broadcast %39 : vector<64x1xf32> to vector<64x64xf32>
    %47 = arith.cmpf oeq, %17, %46 : vector<64x64xf32>
    %cst_18 = arith.constant 3.000000e+38 : f32
    %48 = vector.broadcast %cst_18 : f32 to vector<64x64xf32>
    %49 = arith.select %47, %48, %31 : vector<64x64xi1>, vector<64x64xf32>
    %cst_19 = arith.constant dense<0x7F800000> : vector<64xf32>
    %50 = vector.multi_reduction <minimumf>, %49, %cst_19 [1] : vector<64x64xf32> to vector<64xf32>
    %51 = vector.shape_cast %50 : vector<64xf32> to vector<64x1xf32>
    %52 = vector.broadcast %51 : vector<64x1xf32> to vector<64x64xf32>
    %53 = arith.cmpf ole, %49, %52 : vector<64x64xf32>
    %cst_20 = arith.constant 6.400000e+01 : f32
    %54 = vector.broadcast %cst_20 : f32 to vector<64x64xf32>
    %55 = arith.select %53, %17, %54 : vector<64x64xi1>, vector<64x64xf32>
    %cst_21 = arith.constant dense<0x7F800000> : vector<64xf32>
    %56 = vector.multi_reduction <minimumf>, %55, %cst_21 [1] : vector<64x64xf32> to vector<64xf32>
    %57 = vector.shape_cast %56 : vector<64xf32> to vector<64x1xf32>
    %c1_i32 = arith.constant 1 : i32
    %58 = vector.broadcast %c1_i32 : i32 to vector<64x8xi32>
    %59 = arith.cmpi eq, %18, %58 : vector<64x8xi32>
    %60 = arith.fptosi %57 : vector<64x1xf32> to vector<64x1xi32>
    %61 = vector.shape_cast %60 : vector<64x1xi32> to vector<64x1xi32>
    %62 = vector.broadcast %61 : vector<64x1xi32> to vector<64x8xi32>
    %63 = arith.select %59, %62, %45 : vector<64x8xi1>, vector<64x8xi32>
    %64 = vector.broadcast %57 : vector<64x1xf32> to vector<64x64xf32>
    %65 = arith.cmpf oeq, %17, %64 : vector<64x64xf32>
    %cst_22 = arith.constant 3.000000e+38 : f32
    %66 = vector.broadcast %cst_22 : f32 to vector<64x64xf32>
    %67 = arith.select %65, %66, %49 : vector<64x64xi1>, vector<64x64xf32>
    %cst_23 = arith.constant dense<0x7F800000> : vector<64xf32>
    %68 = vector.multi_reduction <minimumf>, %67, %cst_23 [1] : vector<64x64xf32> to vector<64xf32>
    %69 = vector.shape_cast %68 : vector<64xf32> to vector<64x1xf32>
    %70 = vector.broadcast %69 : vector<64x1xf32> to vector<64x64xf32>
    %71 = arith.cmpf ole, %67, %70 : vector<64x64xf32>
    %cst_24 = arith.constant 6.400000e+01 : f32
    %72 = vector.broadcast %cst_24 : f32 to vector<64x64xf32>
    %73 = arith.select %71, %17, %72 : vector<64x64xi1>, vector<64x64xf32>
    %cst_25 = arith.constant dense<0x7F800000> : vector<64xf32>
    %74 = vector.multi_reduction <minimumf>, %73, %cst_25 [1] : vector<64x64xf32> to vector<64xf32>
    %75 = vector.shape_cast %74 : vector<64xf32> to vector<64x1xf32>
    %c2_i32 = arith.constant 2 : i32
    %76 = vector.broadcast %c2_i32 : i32 to vector<64x8xi32>
    %77 = arith.cmpi eq, %18, %76 : vector<64x8xi32>
    %78 = arith.fptosi %75 : vector<64x1xf32> to vector<64x1xi32>
    %79 = vector.shape_cast %78 : vector<64x1xi32> to vector<64x1xi32>
    %80 = vector.broadcast %79 : vector<64x1xi32> to vector<64x8xi32>
    %81 = arith.select %77, %80, %63 : vector<64x8xi1>, vector<64x8xi32>
    %82 = vector.broadcast %75 : vector<64x1xf32> to vector<64x64xf32>
    %83 = arith.cmpf oeq, %17, %82 : vector<64x64xf32>
    %cst_26 = arith.constant 3.000000e+38 : f32
    %84 = vector.broadcast %cst_26 : f32 to vector<64x64xf32>
    %85 = arith.select %83, %84, %67 : vector<64x64xi1>, vector<64x64xf32>
    %cst_27 = arith.constant dense<0x7F800000> : vector<64xf32>
    %86 = vector.multi_reduction <minimumf>, %85, %cst_27 [1] : vector<64x64xf32> to vector<64xf32>
    %87 = vector.shape_cast %86 : vector<64xf32> to vector<64x1xf32>
    %88 = vector.broadcast %87 : vector<64x1xf32> to vector<64x64xf32>
    %89 = arith.cmpf ole, %85, %88 : vector<64x64xf32>
    %cst_28 = arith.constant 6.400000e+01 : f32
    %90 = vector.broadcast %cst_28 : f32 to vector<64x64xf32>
    %91 = arith.select %89, %17, %90 : vector<64x64xi1>, vector<64x64xf32>
    %cst_29 = arith.constant dense<0x7F800000> : vector<64xf32>
    %92 = vector.multi_reduction <minimumf>, %91, %cst_29 [1] : vector<64x64xf32> to vector<64xf32>
    %93 = vector.shape_cast %92 : vector<64xf32> to vector<64x1xf32>
    %c3_i32 = arith.constant 3 : i32
    %94 = vector.broadcast %c3_i32 : i32 to vector<64x8xi32>
    %95 = arith.cmpi eq, %18, %94 : vector<64x8xi32>
    %96 = arith.fptosi %93 : vector<64x1xf32> to vector<64x1xi32>
    %97 = vector.shape_cast %96 : vector<64x1xi32> to vector<64x1xi32>
    %98 = vector.broadcast %97 : vector<64x1xi32> to vector<64x8xi32>
    %99 = arith.select %95, %98, %81 : vector<64x8xi1>, vector<64x8xi32>
    %100 = vector.broadcast %93 : vector<64x1xf32> to vector<64x64xf32>
    %101 = arith.cmpf oeq, %17, %100 : vector<64x64xf32>
    %cst_30 = arith.constant 3.000000e+38 : f32
    %102 = vector.broadcast %cst_30 : f32 to vector<64x64xf32>
    %103 = arith.select %101, %102, %85 : vector<64x64xi1>, vector<64x64xf32>
    %cst_31 = arith.constant dense<0x7F800000> : vector<64xf32>
    %104 = vector.multi_reduction <minimumf>, %103, %cst_31 [1] : vector<64x64xf32> to vector<64xf32>
    %105 = vector.shape_cast %104 : vector<64xf32> to vector<64x1xf32>
    %106 = vector.broadcast %105 : vector<64x1xf32> to vector<64x64xf32>
    %107 = arith.cmpf ole, %103, %106 : vector<64x64xf32>
    %cst_32 = arith.constant 6.400000e+01 : f32
    %108 = vector.broadcast %cst_32 : f32 to vector<64x64xf32>
    %109 = arith.select %107, %17, %108 : vector<64x64xi1>, vector<64x64xf32>
    %cst_33 = arith.constant dense<0x7F800000> : vector<64xf32>
    %110 = vector.multi_reduction <minimumf>, %109, %cst_33 [1] : vector<64x64xf32> to vector<64xf32>
    %111 = vector.shape_cast %110 : vector<64xf32> to vector<64x1xf32>
    %c4_i32 = arith.constant 4 : i32
    %112 = vector.broadcast %c4_i32 : i32 to vector<64x8xi32>
    %113 = arith.cmpi eq, %18, %112 : vector<64x8xi32>
    %114 = arith.fptosi %111 : vector<64x1xf32> to vector<64x1xi32>
    %115 = vector.shape_cast %114 : vector<64x1xi32> to vector<64x1xi32>
    %116 = vector.broadcast %115 : vector<64x1xi32> to vector<64x8xi32>
    %117 = arith.select %113, %116, %99 : vector<64x8xi1>, vector<64x8xi32>
    %118 = vector.broadcast %111 : vector<64x1xf32> to vector<64x64xf32>
    %119 = arith.cmpf oeq, %17, %118 : vector<64x64xf32>
    %cst_34 = arith.constant 3.000000e+38 : f32
    %120 = vector.broadcast %cst_34 : f32 to vector<64x64xf32>
    %121 = arith.select %119, %120, %103 : vector<64x64xi1>, vector<64x64xf32>
    %cst_35 = arith.constant dense<0x7F800000> : vector<64xf32>
    %122 = vector.multi_reduction <minimumf>, %121, %cst_35 [1] : vector<64x64xf32> to vector<64xf32>
    %123 = vector.shape_cast %122 : vector<64xf32> to vector<64x1xf32>
    %124 = vector.broadcast %123 : vector<64x1xf32> to vector<64x64xf32>
    %125 = arith.cmpf ole, %121, %124 : vector<64x64xf32>
    %cst_36 = arith.constant 6.400000e+01 : f32
    %126 = vector.broadcast %cst_36 : f32 to vector<64x64xf32>
    %127 = arith.select %125, %17, %126 : vector<64x64xi1>, vector<64x64xf32>
    %cst_37 = arith.constant dense<0x7F800000> : vector<64xf32>
    %128 = vector.multi_reduction <minimumf>, %127, %cst_37 [1] : vector<64x64xf32> to vector<64xf32>
    %129 = vector.shape_cast %128 : vector<64xf32> to vector<64x1xf32>
    %c5_i32 = arith.constant 5 : i32
    %130 = vector.broadcast %c5_i32 : i32 to vector<64x8xi32>
    %131 = arith.cmpi eq, %18, %130 : vector<64x8xi32>
    %132 = arith.fptosi %129 : vector<64x1xf32> to vector<64x1xi32>
    %133 = vector.shape_cast %132 : vector<64x1xi32> to vector<64x1xi32>
    %134 = vector.broadcast %133 : vector<64x1xi32> to vector<64x8xi32>
    %135 = arith.select %131, %134, %117 : vector<64x8xi1>, vector<64x8xi32>
    %136 = vector.broadcast %129 : vector<64x1xf32> to vector<64x64xf32>
    %137 = arith.cmpf oeq, %17, %136 : vector<64x64xf32>
    %cst_38 = arith.constant 3.000000e+38 : f32
    %138 = vector.broadcast %cst_38 : f32 to vector<64x64xf32>
    %139 = arith.select %137, %138, %121 : vector<64x64xi1>, vector<64x64xf32>
    %cst_39 = arith.constant dense<0x7F800000> : vector<64xf32>
    %140 = vector.multi_reduction <minimumf>, %139, %cst_39 [1] : vector<64x64xf32> to vector<64xf32>
    %141 = vector.shape_cast %140 : vector<64xf32> to vector<64x1xf32>
    %142 = vector.broadcast %141 : vector<64x1xf32> to vector<64x64xf32>
    %143 = arith.cmpf ole, %139, %142 : vector<64x64xf32>
    %cst_40 = arith.constant 6.400000e+01 : f32
    %144 = vector.broadcast %cst_40 : f32 to vector<64x64xf32>
    %145 = arith.select %143, %17, %144 : vector<64x64xi1>, vector<64x64xf32>
    %cst_41 = arith.constant dense<0x7F800000> : vector<64xf32>
    %146 = vector.multi_reduction <minimumf>, %145, %cst_41 [1] : vector<64x64xf32> to vector<64xf32>
    %147 = vector.shape_cast %146 : vector<64xf32> to vector<64x1xf32>
    %c6_i32 = arith.constant 6 : i32
    %148 = vector.broadcast %c6_i32 : i32 to vector<64x8xi32>
    %149 = arith.cmpi eq, %18, %148 : vector<64x8xi32>
    %150 = arith.fptosi %147 : vector<64x1xf32> to vector<64x1xi32>
    %151 = vector.shape_cast %150 : vector<64x1xi32> to vector<64x1xi32>
    %152 = vector.broadcast %151 : vector<64x1xi32> to vector<64x8xi32>
    %153 = arith.select %149, %152, %135 : vector<64x8xi1>, vector<64x8xi32>
    %154 = vector.broadcast %147 : vector<64x1xf32> to vector<64x64xf32>
    %155 = arith.cmpf oeq, %17, %154 : vector<64x64xf32>
    %cst_42 = arith.constant 3.000000e+38 : f32
    %156 = vector.broadcast %cst_42 : f32 to vector<64x64xf32>
    %157 = arith.select %155, %156, %139 : vector<64x64xi1>, vector<64x64xf32>
    %cst_43 = arith.constant dense<0x7F800000> : vector<64xf32>
    %158 = vector.multi_reduction <minimumf>, %157, %cst_43 [1] : vector<64x64xf32> to vector<64xf32>
    %159 = vector.shape_cast %158 : vector<64xf32> to vector<64x1xf32>
    %160 = vector.broadcast %159 : vector<64x1xf32> to vector<64x64xf32>
    %161 = arith.cmpf ole, %157, %160 : vector<64x64xf32>
    %cst_44 = arith.constant 6.400000e+01 : f32
    %162 = vector.broadcast %cst_44 : f32 to vector<64x64xf32>
    %163 = arith.select %161, %17, %162 : vector<64x64xi1>, vector<64x64xf32>
    %cst_45 = arith.constant dense<0x7F800000> : vector<64xf32>
    %164 = vector.multi_reduction <minimumf>, %163, %cst_45 [1] : vector<64x64xf32> to vector<64xf32>
    %165 = vector.shape_cast %164 : vector<64xf32> to vector<64x1xf32>
    %c7_i32 = arith.constant 7 : i32
    %166 = vector.broadcast %c7_i32 : i32 to vector<64x8xi32>
    %167 = arith.cmpi eq, %18, %166 : vector<64x8xi32>
    %168 = arith.fptosi %165 : vector<64x1xf32> to vector<64x1xi32>
    %169 = vector.shape_cast %168 : vector<64x1xi32> to vector<64x1xi32>
    %170 = vector.broadcast %169 : vector<64x1xi32> to vector<64x8xi32>
    %171 = arith.select %167, %170, %153 : vector<64x8xi1>, vector<64x8xi32>
    %c0_46 = arith.constant 0 : index
    %c0_47 = arith.constant 0 : index
    %c0_48 = arith.constant 0 : index
    %172 = vector.load %arg5[%c0_46, %c0_47, %c0_48] : memref<1x64x8xi32, #tpu.memory_space<vmem>>, vector<1x64x8xi32>
    %173 = vector.shape_cast %172 : vector<1x64x8xi32> to vector<64x8xi32>
    %174 = vector.shape_cast %171 : vector<64x8xi32> to vector<1x64x8xi32>
    tpu.vector_store %arg5[%c0_46, %c0_47, %c0_48], %174 {strides = array<i32>} : memref<1x64x8xi32, #tpu.memory_space<vmem>>, vector<1x64x8xi32>,
    return
  }
  func.func @transform_0(%arg0: i32, %arg1: i32) -> (i32, i32, i32) {
    %c0_i32 = arith.constant 0 : i32
    %c0_i32_0 = arith.constant 0 : i32
    return %arg0, %arg1, %c0_i32 : i32, i32, i32
  }
  func.func @transform_1(%arg0: i32, %arg1: i32) -> (i32, i32, i32) {
    %c0_i32 = arith.constant 0 : i32
    %c0_i32_0 = arith.constant 0 : i32
    %c0_i32_1 = arith.constant 0 : i32
    return %arg0, %c0_i32, %c0_i32_0 : i32, i32, i32
  }
  func.func @transform_2(%arg0: i32, %arg1: i32) -> (i32, i32, i32) {
    %c0_i32 = arith.constant 0 : i32
    %c0_i32_0 = arith.constant 0 : i32
    %c0_i32_1 = arith.constant 0 : i32
    return %arg0, %c0_i32, %c0_i32_0 : i32, i32, i32
  }
  func.func @transform_3(%arg0: i32, %arg1: i32) -> (i32, i32, i32) {
    %c0_i32 = arith.constant 0 : i32
    %c0_i32_0 = arith.constant 0 : i32
    return %arg0, %arg1, %c0_i32 : i32, i32, i32
  }
}

module attributes {stable_mosaic.version = 11 : i64} {
  func.func @_graph_conv_kernel(%arg0: i32, %arg1: i32, %arg2: memref<1x512x3xf32, #tpu.memory_space<vmem>>, %arg3: memref<3x128xf32, #tpu.memory_space<vmem>>, %arg4: memref<128x32xf32, #tpu.memory_space<vmem>>, %arg5: memref<1x64x32xf32, #tpu.memory_space<vmem>>) attributes {dimension_semantics = [#tpu.dimension_semantics<parallel>, #tpu.dimension_semantics<parallel>], iteration_bounds = array<i64: 2, 1>, scalar_prefetch = 0 : i64, scratch_operands = 0 : i64, tpu.core_type = #tpu.core_type<tc>, window_params = [{transform_indices = @transform_0, window_bounds = array<i64: 1, 512, 3>}, {pipeline_mode = #tpu.pipeline_mode<synchronous>, transform_indices = @transform_1, window_bounds = array<i64: 3, 128>}, {pipeline_mode = #tpu.pipeline_mode<synchronous>, transform_indices = @transform_2, window_bounds = array<i64: 128, 32>}, {transform_indices = @transform_3, window_bounds = array<i64: 1, 64, 32>}]} {
    %c0 = arith.constant 0 : index
    %c0_0 = arith.constant 0 : index
    %c0_1 = arith.constant 0 : index
    %0 = vector.load %arg2[%c0, %c0_0, %c0_1] : memref<1x512x3xf32, #tpu.memory_space<vmem>>, vector<1x512x3xf32>
    %1 = vector.shape_cast %0 : vector<1x512x3xf32> to vector<512x3xf32>
    %2 = arith.mulf %1, %1 : vector<512x3xf32>
    %cst = arith.constant dense<0.000000e+00> : vector<512xf32>
    %3 = vector.multi_reduction <add>, %2, %cst [1] : vector<512x3xf32> to vector<512xf32>
    %4 = vector.shape_cast %3 : vector<512xf32> to vector<512x1xf32>
    %5 = math.sqrt %4 : vector<512x1xf32>
    %cst_2 = arith.constant 9.99999996E-13 : f32
    %6 = vector.broadcast %cst_2 : f32 to vector<512x1xf32>
    %7 = arith.maximumf %5, %6 : vector<512x1xf32>
    %8 = vector.broadcast %7 : vector<512x1xf32> to vector<512x3xf32>
    %9 = arith.divf %1, %8 : vector<512x3xf32>
    %c0_3 = arith.constant 0 : index
    %c0_4 = arith.constant 0 : index
    %10 = vector.load %arg3[%c0_3, %c0_4] : memref<3x128xf32, #tpu.memory_space<vmem>>, vector<3x128xf32>
    %cst_5 = arith.constant dense<0.000000e+00> : vector<512x128xf32>
    %11 = tpu.matmul %9, %10, %cst_5 {dimension_numbers = #tpu.dot_dimension_numbers<[1], [0], [0], [1], [0, 0, 1, 1], [], []>} : vector<512x3xf32>, vector<3x128xf32>, vector<512x128xf32> -> vector<512x128xf32>
    %cst_6 = arith.constant 0.000000e+00 : f32
    %12 = vector.broadcast %cst_6 : f32 to vector<512x128xf32>
    %13 = arith.maximumf %11, %12 : vector<512x128xf32>
    %14 = vector.shape_cast %13 : vector<512x128xf32> to vector<64x8x128xf32>
    %cst_7 = arith.constant dense<0xFF800000> : vector<64x128xf32>
    %15 = vector.multi_reduction <maximumf>, %14, %cst_7 [1] : vector<64x8x128xf32> to vector<64x128xf32>
    %c0_8 = arith.constant 0 : index
    %c0_9 = arith.constant 0 : index
    %16 = vector.load %arg4[%c0_8, %c0_9] : memref<128x32xf32, #tpu.memory_space<vmem>>, vector<128x32xf32>
    %cst_10 = arith.constant dense<0.000000e+00> : vector<64x32xf32>
    %17 = tpu.matmul %15, %16, %cst_10 {dimension_numbers = #tpu.dot_dimension_numbers<[1], [0], [0], [1], [0, 0, 1, 1], [], []>} : vector<64x128xf32>, vector<128x32xf32>, vector<64x32xf32> -> vector<64x32xf32>
    %c0_11 = arith.constant 0 : index
    %c0_12 = arith.constant 0 : index
    %c0_13 = arith.constant 0 : index
    %18 = vector.load %arg5[%c0_11, %c0_12, %c0_13] : memref<1x64x32xf32, #tpu.memory_space<vmem>>, vector<1x64x32xf32>
    %19 = vector.shape_cast %18 : vector<1x64x32xf32> to vector<64x32xf32>
    %20 = vector.shape_cast %17 : vector<64x32xf32> to vector<1x64x32xf32>
    tpu.vector_store %arg5[%c0_11, %c0_12, %c0_13], %20 {strides = array<i32>} : memref<1x64x32xf32, #tpu.memory_space<vmem>>, vector<1x64x32xf32>,
    return
  }
  func.func @transform_0(%arg0: i32, %arg1: i32) -> (i32, i32, i32) {
    %c0_i32 = arith.constant 0 : i32
    %c0_i32_0 = arith.constant 0 : i32
    return %arg0, %arg1, %c0_i32 : i32, i32, i32
  }
  func.func @transform_1(%arg0: i32, %arg1: i32) -> (i32, i32) {
    %c0_i32 = arith.constant 0 : i32
    %c0_i32_0 = arith.constant 0 : i32
    %c0_i32_1 = arith.constant 0 : i32
    return %c0_i32, %c0_i32_0 : i32, i32
  }
  func.func @transform_2(%arg0: i32, %arg1: i32) -> (i32, i32) {
    %c0_i32 = arith.constant 0 : i32
    %c0_i32_0 = arith.constant 0 : i32
    %c0_i32_1 = arith.constant 0 : i32
    return %c0_i32, %c0_i32_0 : i32, i32
  }
  func.func @transform_3(%arg0: i32, %arg1: i32) -> (i32, i32, i32) {
    %c0_i32 = arith.constant 0 : i32
    %c0_i32_0 = arith.constant 0 : i32
    return %arg0, %arg1, %c0_i32 : i32, i32, i32
  }
}

module attributes {stable_mosaic.version = 11 : i64} {
  func.func @_out_kernel(%arg0: i32, %arg1: i32, %arg2: memref<1x16x140xf32, #tpu.memory_space<vmem>>, %arg3: memref<140x128xf32, #tpu.memory_space<vmem>>, %arg4: memref<1x1x128xf32, #tpu.memory_space<vmem>>, %arg5: memref<1x16x128xf32, #tpu.memory_space<vmem>>) attributes {dimension_semantics = [#tpu.dimension_semantics<parallel>, #tpu.dimension_semantics<parallel>], iteration_bounds = array<i64: 2, 1>, scalar_prefetch = 0 : i64, scratch_operands = 0 : i64, tpu.core_type = #tpu.core_type<tc>, window_params = [{transform_indices = @transform_0, window_bounds = array<i64: 1, 16, 140>}, {pipeline_mode = #tpu.pipeline_mode<synchronous>, transform_indices = @transform_1, window_bounds = array<i64: 140, 128>}, {transform_indices = @transform_2, window_bounds = array<i64: 1, 1, 128>}, {transform_indices = @transform_3, window_bounds = array<i64: 1, 16, 128>}]} {
    %c0 = arith.constant 0 : index
    %c0_0 = arith.constant 0 : index
    %c0_1 = arith.constant 0 : index
    %0 = vector.load %arg2[%c0, %c0_0, %c0_1] : memref<1x16x140xf32, #tpu.memory_space<vmem>>, vector<1x16x140xf32>
    %1 = vector.shape_cast %0 : vector<1x16x140xf32> to vector<16x140xf32>
    %c0_2 = arith.constant 0 : index
    %c0_3 = arith.constant 0 : index
    %2 = vector.load %arg3[%c0_2, %c0_3] : memref<140x128xf32, #tpu.memory_space<vmem>>, vector<140x128xf32>
    %cst = arith.constant dense<0.000000e+00> : vector<16x128xf32>
    %3 = tpu.matmul %1, %2, %cst {dimension_numbers = #tpu.dot_dimension_numbers<[1], [0], [0], [1], [0, 0, 1, 1], [], []>} : vector<16x140xf32>, vector<140x128xf32>, vector<16x128xf32> -> vector<16x128xf32>
    %c0_4 = arith.constant 0 : index
    %c0_5 = arith.constant 0 : index
    %c0_6 = arith.constant 0 : index
    %4 = vector.load %arg4[%c0_4, %c0_5, %c0_6] : memref<1x1x128xf32, #tpu.memory_space<vmem>>, vector<1x1x128xf32>
    %5 = vector.shape_cast %4 : vector<1x1x128xf32> to vector<1x128xf32>
    %6 = vector.broadcast %5 : vector<1x128xf32> to vector<16x128xf32>
    %7 = arith.addf %3, %6 : vector<16x128xf32>
    %c0_7 = arith.constant 0 : index
    %c0_8 = arith.constant 0 : index
    %c0_9 = arith.constant 0 : index
    %8 = vector.load %arg5[%c0_7, %c0_8, %c0_9] : memref<1x16x128xf32, #tpu.memory_space<vmem>>, vector<1x16x128xf32>
    %9 = vector.shape_cast %8 : vector<1x16x128xf32> to vector<16x128xf32>
    %10 = vector.shape_cast %7 : vector<16x128xf32> to vector<1x16x128xf32>
    tpu.vector_store %arg5[%c0_7, %c0_8, %c0_9], %10 {strides = array<i32>} : memref<1x16x128xf32, #tpu.memory_space<vmem>>, vector<1x16x128xf32>,
    return
  }
  func.func @transform_0(%arg0: i32, %arg1: i32) -> (i32, i32, i32) {
    %c0_i32 = arith.constant 0 : i32
    %c0_i32_0 = arith.constant 0 : i32
    return %arg0, %arg1, %c0_i32 : i32, i32, i32
  }
  func.func @transform_1(%arg0: i32, %arg1: i32) -> (i32, i32) {
    %c0_i32 = arith.constant 0 : i32
    %c0_i32_0 = arith.constant 0 : i32
    %c0_i32_1 = arith.constant 0 : i32
    return %c0_i32, %c0_i32_0 : i32, i32
  }
  func.func @transform_2(%arg0: i32, %arg1: i32) -> (i32, i32, i32) {
    %c0_i32 = arith.constant 0 : i32
    %c0_i32_0 = arith.constant 0 : i32
    %c0_i32_1 = arith.constant 0 : i32
    return %arg0, %c0_i32, %c0_i32_0 : i32, i32, i32
  }
  func.func @transform_3(%arg0: i32, %arg1: i32) -> (i32, i32, i32) {
    %c0_i32 = arith.constant 0 : i32
    %c0_i32_0 = arith.constant 0 : i32
    return %arg0, %arg1, %c0_i32 : i32, i32, i32
  }
}

</mosaic_0001>

<llo_original>
// kernel: hs_layer_forward.3
$region0: #{hs_layer_forward.3}
  #allocation0 [shape = 'u32[]', space=smem, size = 0x4, offset = 0x4, fixed_abs, tag = 'smem constant byte address 0x4 - core index']
  #allocation1 [shape = 'u32[144,128]{1,0:T(1,128)}', space=vmem, size = 0x12000, scoped, tag = 'internal scratch']
  %s0 = inlined_call_operand.vmem [shape: f32[2,64,3], index: 0, kind: input, shape index: {}, may-alias: {0,1}]
  %s1 = inlined_call_operand.vmem [shape: f32[2,64,3], index: 1, kind: input, shape index: {}, may-alias: {0,1}]
  %s2 = inlined_call_operand.vmem [shape: f32[2,1,64], index: 2, kind: input, shape index: {}]
  %s3 = inlined_call_operand.vmem [shape: s32[2,64,8], index: 3, kind: output, shape index: {}]
  %s4 = sld [smem:[#allocation0]]
  $region45: #{hs_layer_forward.3} parent=0
    _
  %s6 = ssub.s32 1, %s4
  %s7 = scalar_select 0, %s6, %s4
  loop: start=0, step=1, limit=4
  $region2: #{hs_layer_forward.3} parent=0 // loop_pre_header
    _
  $region3: #{hs_layer_forward.3} parent=0 // loop_header
    %s9 = sphi 0, %s13
    %p10 = scmp.ge.s32.totalorder %s9, 4
    %s16 = sphi 0, %s28
    %s17 = sphi 0, %s24
    %s18 = sphi 0, %s16
    %s19 = sphi 0, %s17
    %s20 = sphi 0, %s18
    %s21 = sphi 0, %s19
    %s33 = sphi 0, %s35
    %s36 = sphi 0, %s33
    %s37 = sphi 0, %s36
    %s53 = sphi 0, %s37
    %s59 = sphi 0, %s61
    %s62 = sphi 0, %s59
    %s63 = sphi 0, %s62
    %s79 = sphi 0, %s63
    %s85 = sphi 0, %s87
    %s88 = sphi 0, %s85
    %s89 = sphi 0, %s88
    %s105 = sphi 0, %s89
    %s113 = sphi 0, %s115
    %s116 = sphi 0, %s113
    %s117 = sphi 0, %s116
    %s133 = sphi 0, %s117
  $region4: #{hs_layer_forward.3} parent=0 // loop_header_branch
    %12 = sbr.rel (%p10) target = $region8
  $region5: #{hs_layer_forward.3} parent=0 // loop_body
    %s14 = ssub.s32 %s9, 1
    %s15 = ssub.s32 %s9, 2
    %s22 = sadd.s32 1, %s17
    %p23 = scmp.ge.s32.totalorder %s22, 1
    %s24 = scalar_select %p23, 0, %s22
    %s25 = sadd.s32 1, %s16
    %s26 = scalar_select %p23, %s25, %s16
    %p27 = scmp.ge.s32.totalorder %s26, 2
    %s28 = scalar_select %p27, 0, %s26
    %s29 = ssub.s32 %s16, %s28
    %s30 = ssub.s32 %s17, %s24
    %s31 = sor.u32 %s29, %s30
    %p32 = scmp.eq.s32.totalorder %s31, 0
    %s34 = sadd.s32 %s33, 1
    %s35 = scalar_select %p32, %s33, %s34
    %p38 = pneg %p32
    %p39 = scmp.eq.s32.totalorder %s9, 1
    %p40 = por %p38, %p39
    %p41 = scmp.ne.s32.totalorder %s33, %s36
    %p42 = scmp.eq.s32.totalorder %s9, 0
    %p43 = por %p41, %p42
    %p44 = scmp.ne.s32.totalorder %s33, %s36
    %p45 = scmp.eq.s32.totalorder %s14, 1
    %p46 = por %p44, %p45
    %p47 = scmp.ne.s32.totalorder %s36, %s37
    %p48 = scmp.eq.s32.totalorder %s14, 0
    %p49 = por %p47, %p48
    %p50 = scmp.ne.s32.totalorder %s36, %s37
    %p51 = scmp.eq.s32.totalorder %s15, 1
    %p52 = por %p50, %p51
    %p54 = scmp.ne.s32.totalorder %s37, %s53
    %p55 = scmp.eq.s32.totalorder %s15, 0
    %p56 = por %p54, %p55
    %s57 = ssub.s32 %s16, %s28
    %p58 = scmp.eq.s32.totalorder %s57, 0
    %s60 = sadd.s32 %s59, 1
    %s61 = scalar_select %p58, %s59, %s60
    %p64 = pneg %p58
    %p65 = scmp.eq.s32.totalorder %s9, 1
    %p66 = por %p64, %p65
    %p67 = scmp.ne.s32.totalorder %s59, %s62
    %p68 = scmp.eq.s32.totalorder %s9, 0
    %p69 = por %p67, %p68
    %p70 = scmp.ne.s32.totalorder %s59, %s62
    %p71 = scmp.eq.s32.totalorder %s14, 1
    %p72 = por %p70, %p71
    %p73 = scmp.ne.s32.totalorder %s62, %s63
    %p74 = scmp.eq.s32.totalorder %s14, 0
    %p75 = por %p73, %p74
    %p76 = scmp.ne.s32.totalorder %s62, %s63
    %p77 = scmp.eq.s32.totalorder %s15, 1
    %p78 = por %p76, %p77
    %p80 = scmp.ne.s32.totalorder %s63, %s79
    %p81 = scmp.eq.s32.totalorder %s15, 0
    %p82 = por %p80, %p81
    %s83 = ssub.s32 %s16, %s28
    %p84 = scmp.eq.s32.totalorder %s83, 0
    %s86 = sadd.s32 %s85, 1
    %s87 = scalar_select %p84, %s85, %s86
    %p90 = pneg %p84
    %p91 = scmp.eq.s32.totalorder %s9, 1
    %p92 = por %p90, %p91
    %p93 = scmp.ne.s32.totalorder %s85, %s88
    %p94 = scmp.eq.s32.totalorder %s9, 0
    %p95 = por %p93, %p94
    %p96 = scmp.ne.s32.totalorder %s85, %s88
    %p97 = scmp.eq.s32.totalorder %s14, 1
    %p98 = por %p96, %p97
    %p99 = scmp.ne.s32.totalorder %s88, %s89
    %p100 = scmp.eq.s32.totalorder %s14, 0
    %p101 = por %p99, %p100
    %p102 = scmp.ne.s32.totalorder %s88, %s89
    %p103 = scmp.eq.s32.totalorder %s15, 1
    %p104 = por %p102, %p103
    %p106 = scmp.ne.s32.totalorder %s89, %s105
    %p107 = scmp.eq.s32.totalorder %s15, 0
    %p108 = por %p106, %p107
    %s109 = ssub.s32 %s16, %s28
    %s110 = ssub.s32 %s17, %s24
    %s111 = sor.u32 %s109, %s110
    %p112 = scmp.eq.s32.totalorder %s111, 0
    %s114 = sadd.s32 %s113, 1
    %s115 = scalar_select %p112, %s113, %s114
    %p118 = pneg %p112
    %p119 = scmp.eq.s32.totalorder %s9, 1
    %p120 = por %p118, %p119
    %p121 = scmp.ne.s32.totalorder %s113, %s116
    %p122 = scmp.eq.s32.totalorder %s9, 0
    %p123 = por %p121, %p122
    %p124 = scmp.ne.s32.totalorder %s113, %s116
    %p125 = scmp.eq.s32.totalorder %s14, 1
    %p126 = por %p124, %p125
    %p127 = scmp.ne.s32.totalorder %s116, %s117
    %p128 = scmp.eq.s32.totalorder %s14, 0
    %p129 = por %p127, %p128
    %p130 = scmp.ne.s32.totalorder %s116, %s117
    %p131 = scmp.eq.s32.totalorder %s15, 1
    %p132 = por %p130, %p131
    %p134 = scmp.ne.s32.totalorder %s117, %s133
    %p135 = scmp.eq.s32.totalorder %s15, 0
    %p136 = por %p134, %p135
    %p137 = scmp.le.s32.totalorder 1, %s9
    %p138 = scmp.lt.s32.totalorder %s9, 3
    %p139 = pnand %p137, %p138
    %p140 = pneg %p139
    // Predicated region
    $region9: #{hs_layer_forward.3} parent=5 // pred_check
      _
    $region10: #{hs_layer_forward.3} parent=5 // pred_check_branch
      %142 = sbr.rel (%p139) target = $region12
    $region11: #{hs_layer_forward.3} parent=5 // pred_region
      %s143 = ssub.s32 %s9, 1
    $region12: #{hs_layer_forward.3} parent=5 // pred_fallthru
      _
    %p144 = scmp.lt.s32.totalorder %s9, 2
    // Predicated region
    $region13: #{hs_layer_forward.3} parent=5 // pred_check
      %p145 = pneg %p144
    $region14: #{hs_layer_forward.3} parent=5 // pred_check_branch
      %147 = sbr.rel (%p145) target = $region16
    $region15: #{hs_layer_forward.3} parent=5 // pred_region
      // Predicated region
      $region17: #{hs_layer_forward.3} parent=15 // pred_check
        %p148 = pneg %p43
      $region18: #{hs_layer_forward.3} parent=15 // pred_check_branch
        %150 = sbr.rel (%p148) target = $region20
      $region19: #{hs_layer_forward.3} parent=15 // pred_region
        %s151 = smul.u32 8, %s17
        %p152 = scmp.lt.s32.totalorder %s16, 1
        %s153 = scalar_select %p152, %s16, 1
        %p154 = scmp.lt.s32.totalorder %s151, 7
        %s155 = scalar_select %p154, %s151, 7
        %s156 = smul.addr %s153, 8
        %s157 = sadd.s32 %s155, %s156
        %s158 = smul.addr %s157, 8
        %s159 = scalar_lea.vmem %s0, %s158
        %s160 = smul.u32 8, %s17
      $region20: #{hs_layer_forward.3} parent=15 // pred_fallthru
        _
      // Predicated region
      $region21: #{hs_layer_forward.3} parent=15 // pred_check
        %p161 = pneg %p69
      $region22: #{hs_layer_forward.3} parent=15 // pred_check_branch
        %163 = sbr.rel (%p161) target = $region24
      $region23: #{hs_layer_forward.3} parent=15 // pred_region
        %p164 = scmp.lt.s32.totalorder %s16, 1
        %s165 = scalar_select %p164, %s16, 1
        %s166 = smul.addr %s165, 8
        %s167 = smul.addr %s166, 8
        %s168 = scalar_lea.vmem %s1, %s167
      $region24: #{hs_layer_forward.3} parent=15 // pred_fallthru
        _
      // Predicated region
      $region25: #{hs_layer_forward.3} parent=15 // pred_check
        %p169 = pneg %p95
      $region26: #{hs_layer_forward.3} parent=15 // pred_check_branch
        %171 = sbr.rel (%p169) target = $region28
      $region27: #{hs_layer_forward.3} parent=15 // pred_region
        %p172 = scmp.lt.s32.totalorder %s16, 1
        %s173 = scalar_select %p172, %s16, 1
        %s174 = scalar_lea.vmem %s2, %s173
      $region28: #{hs_layer_forward.3} parent=15 // pred_fallthru
        _
    $region16: #{hs_layer_forward.3} parent=5 // pred_fallthru
      _
    %p175 = scmp.le.s32.totalorder 1, %s9
    %p176 = scmp.lt.s32.totalorder %s9, 3
    %p177 = pnand %p175, %p176
    %p178 = pneg %p177
    // Predicated region
    $region29: #{hs_layer_forward.3} parent=5 // pred_check
      _
    $region30: #{hs_layer_forward.3} parent=5 // pred_check_branch
      %180 = sbr.rel (%p177) target = $region32
    $region31: #{hs_layer_forward.3} parent=5 // pred_region
      %s181 = ssub.s32 %s9, 1
      %s182 = smul.u32 8, %s19
      %p183 = scmp.lt.s32.totalorder %s18, 1
      %s184 = scalar_select %p183, %s18, 1
      %p185 = scmp.lt.s32.totalorder %s182, 7
      %s186 = scalar_select %p185, %s182, 7
      %s187 = smul.addr %s184, 8
      %s188 = sadd.s32 %s186, %s187
      %s189 = smul.addr %s188, 8
      %s190 = scalar_lea.vmem %s0, %s189
      %p191 = pneg %p49
      %p192 = pneg %p46
      %p193 = scmp.lt.s32.totalorder %s18, 1
      %s194 = scalar_select %p193, %s18, 1
      %s195 = smul.addr %s194, 8
      %s196 = smul.addr %s195, 8
      %s197 = scalar_lea.vmem %s1, %s196
      %p198 = pneg %p75
      %p199 = pneg %p72
      %p200 = scmp.lt.s32.totalorder %s18, 1
      %s201 = scalar_select %p200, %s18, 1
      %s202 = scalar_lea.vmem %s2, %s201
      %p203 = pneg %p101
      %p204 = pneg %p98
      %p205 = pneg %p129
      %p206 = pneg %p126
      %s207 = smul.u32 8, %s19
      %p208 = scmp.lt.s32.totalorder %s18, 1
      %s209 = scalar_select %p208, %s18, 1
      %p210 = scmp.lt.s32.totalorder %s207, 7
      %s211 = scalar_select %p210, %s207, 7
      %s212 = smul.addr %s209, 8
      %s213 = sadd.s32 %s211, %s212
      %s214 = smul.addr %s213, 8
      %s215 = scalar_lea.vmem %s3, %s214
      %s216 = smul.u32 8, %s19
      %p217 = scmp.lt.s32.totalorder %s18, 1
      %s218 = scalar_select %p217, %s18, 1
      %p219 = scmp.lt.s32.totalorder %s216, 7
      %s220 = scalar_select %p219, %s216, 7
      %s221 = smul.addr %s218, 8
      %s222 = sadd.s32 %s220, %s221
      %s223 = smul.addr %s222, 8
      %s224 = scalar_lea.vmem %s0, %s223
      %s225 = smul.u32 8, %s19
      %p226 = scmp.lt.s32.totalorder %s18, 1
      %s227 = scalar_select %p226, %s18, 1
      %s228 = smul.addr %s227, 8
      %s229 = smul.addr %s228, 8
      %s230 = scalar_lea.vmem %s1, %s229
      %p231 = scmp.lt.s32.totalorder %s18, 1
      %s232 = scalar_select %p231, %s18, 1
      %s233 = scalar_lea.vmem %s2, %s232
      %s234 = smul.u32 8, %s19
      %p235 = scmp.lt.s32.totalorder %s18, 1
      %s236 = scalar_select %p235, %s18, 1
      %p237 = scmp.lt.s32.totalorder %s234, 7
      %s238 = scalar_select %p237, %s234, 7
      %s239 = smul.addr %s236, 8
      %s240 = sadd.s32 %s238, %s239
      %s241 = smul.addr %s240, 8
      %s242 = scalar_lea.vmem %s3, %s241
      %s243 = smul.u32 8, %s19
      %v244 = vld [vmem:[%s224] sm:$0xff]
      %v245 = vld [vmem:[%s224 + $0x8] sm:$0xff]
      %v246 = vld [vmem:[%s224 + $0x10] sm:$0xff]
      %v247 = vld [vmem:[%s224 + $0x18] sm:$0xff]
      %v248 = vld [vmem:[%s224 + $0x20] sm:$0xff]
      %v249 = vld [vmem:[%s224 + $0x28] sm:$0xff]
      %v250 = vld [vmem:[%s224 + $0x30] sm:$0xff]
      %v251 = vld [vmem:[%s224 + $0x38] sm:$0xff]
      %v252 = vld [vmem:[%s230] sm:$0xff]
      %v253 = vld [vmem:[%s230 + $0x8] sm:$0xff]
      %v254 = vld [vmem:[%s230 + $0x10] sm:$0xff]
      %v255 = vld [vmem:[%s230 + $0x18] sm:$0xff]
      %v256 = vld [vmem:[%s230 + $0x20] sm:$0xff]
      %v257 = vld [vmem:[%s230 + $0x28] sm:$0xff]
      %v258 = vld [vmem:[%s230 + $0x30] sm:$0xff]
      %v259 = vld [vmem:[%s230 + $0x38] sm:$0xff]
      %vm260 = vcmask 23552
      %v262 = vsel %vm260, %v244, 0
      %v265 = vsel %vm260, %v245, 0
      %v268 = vsel %vm260, %v246, 0
      %v271 = vsel %vm260, %v247, 0
      %v274 = vsel %vm260, %v248, 0
      %v277 = vsel %vm260, %v249, 0
      %v280 = vsel %vm260, %v250, 0
      %v283 = vsel %vm260, %v251, 0
      %v286 = vsel %vm260, %v252, 0
      %v289 = vsel %vm260, %v253, 0
      %v292 = vsel %vm260, %v254, 0
      %v295 = vsel %vm260, %v255, 0
      %v298 = vsel %vm260, %v256, 0
      %v301 = vsel %vm260, %v257, 0
      %v304 = vsel %vm260, %v258, 0
      %v307 = vsel %vm260, %v259, 0
      %309 = vmatprep.subr.mxu0 0.0
      %310 = vmatpush1.xpose.msra.mxu0 %v286
      %311 = vmatprep.subr.mxu0 0.0
      %312 = vmatpush1.xpose.msra.mxu0 %v289
      %313 = vmatprep.subr.mxu0 0.0
      %314 = vmatpush1.xpose.msra.mxu0 %v292
      %315 = vmatprep.subr.mxu0 0.0
      %316 = vmatpush1.xpose.msra.mxu0 %v295
      %317 = vmatprep.subr.mxu0 0.0
      %318 = vmatpush1.xpose.msra.mxu0 %v298
      %319 = vmatprep.subr.mxu0 0.0
      %320 = vmatpush1.xpose.msra.mxu0 %v301
      %321 = vmatprep.subr.mxu0 0.0
      %322 = vmatpush1.xpose.msra.mxu0 %v304
      %323 = vmatprep.subr.mxu0 0.0
      %324 = vmatpush1.xpose.msra.mxu0 %v307
      %325 = vmatprep.subr.mxu0 0.0
      %326 = vmatpush1.xpose.msra.mxu0 0.0
      %327 = vmatprep.subr.mxu0 0.0
      %328 = vmatpush1.xpose.msra.mxu0 0.0
      %329 = vmatprep.subr.mxu0 0.0
      %330 = vmatpush1.xpose.msra.mxu0 0.0
      %331 = vmatprep.subr.mxu0 0.0
      %332 = vmatpush1.xpose.msra.mxu0 0.0
      %333 = vmatprep.subr.mxu0 0.0
      %334 = vmatpush1.xpose.msra.mxu0 0.0
      %335 = vmatprep.subr.mxu0 0.0
      %336 = vmatpush1.xpose.msra.mxu0 0.0
      %337 = vmatprep.subr.mxu0 0.0
      %338 = vmatpush1.xpose.msra.mxu0 0.0
      %339 = vmatprep.subr.mxu0 0.0
      %340 = vmatpush1.xpose.msra.mxu0 0.0
      %341 = vmatprep.subr.mxu0 0.0
      %342 = vmatpush1.xpose.msra.mxu0 0.0
      %343 = vmatprep.subr.mxu0 0.0
      %344 = vmatpush1.xpose.msra.mxu0 0.0
      %345 = vmatprep.subr.mxu0 0.0
      %346 = vmatpush1.xpose.msra.mxu0 0.0
      %347 = vmatprep.subr.mxu0 0.0
      %348 = vmatpush1.xpose.msra.mxu0 0.0
      %349 = vmatprep.subr.mxu0 0.0
      %350 = vmatpush1.xpose.msra.mxu0 0.0
      %351 = vmatprep.subr.mxu0 0.0
      %352 = vmatpush1.xpose.msra.mxu0 0.0
      %353 = vmatprep.subr.mxu0 0.0
      %354 = vmatpush1.xpose.msra.mxu0 0.0
      %355 = vmatprep.subr.mxu0 0.0
      %356 = vmatpush1.xpose.msra.mxu0 0.0
      %357 = vmatprep.subr.mxu0 0.0
      %358 = vmatpush1.xpose.msra.mxu0 0.0
      %359 = vmatprep.subr.mxu0 0.0
      %360 = vmatpush1.xpose.msra.mxu0 0.0
      %361 = vmatprep.subr.mxu0 0.0
      %362 = vmatpush1.xpose.msra.mxu0 0.0
      %363 = vmatprep.subr.mxu0 0.0
      %364 = vmatpush1.xpose.msra.mxu0 0.0
      %365 = vmatprep.subr.mxu0 0.0
      %366 = vmatpush1.xpose.msra.mxu0 0.0
      %367 = vmatprep.subr.mxu0 0.0
      %368 = vmatpush1.xpose.msra.mxu0 0.0
      %369 = vmatprep.subr.mxu0 0.0
      %370 = vmatpush1.xpose.msra.mxu0 0.0
      %371 = vmatprep.subr.mxu0 0.0
      %372 = vmatpush1.xpose.msra.mxu0 0.0
      %373 = vmatprep.mubr.f32.mxu0 0.0
      %374 = vmatmul.mubr.f32.gmra.mrb[0].mxu0 %v262
      %v375 = vpop.f32.mrb[0].mxu0
      %v376 = vadd.f32 0.0, %v375
      %v377 = vpop.f32.mrb[0].mxu0
      %378 = vmatprep.mubr.f32.mxu0 0.0
      %379 = vmatmul.mubr.f32.gmra.mrb[0].mxu0 %v265
      %v380 = vpop.f32.mrb[0].mxu0
      %v381 = vadd.f32 0.0, %v380
      %v382 = vpop.f32.mrb[0].mxu0
      %383 = vmatprep.mubr.f32.mxu0 0.0
      %384 = vmatmul.mubr.f32.gmra.mrb[0].mxu0 %v268
      %v385 = vpop.f32.mrb[0].mxu0
      %v386 = vadd.f32 0.0, %v385
      %v387 = vpop.f32.mrb[0].mxu0
      %388 = vmatprep.mubr.f32.mxu0 0.0
      %389 = vmatmul.mubr.f32.gmra.mrb[0].mxu0 %v271
      %v390 = vpop.f32.mrb[0].mxu0
      %v391 = vadd.f32 0.0, %v390
      %v392 = vpop.f32.mrb[0].mxu0
      %393 = vmatprep.mubr.f32.mxu0 0.0
      %394 = vmatmul.mubr.f32.gmra.mrb[0].mxu0 %v274
      %v395 = vpop.f32.mrb[0].mxu0
      %v396 = vadd.f32 0.0, %v395
      %v397 = vpop.f32.mrb[0].mxu0
      %398 = vmatprep.mubr.f32.mxu0 0.0
      %399 = vmatmul.mubr.f32.gmra.mrb[0].mxu0 %v277
      %v400 = vpop.f32.mrb[0].mxu0
      %v401 = vadd.f32 0.0, %v400
      %v402 = vpop.f32.mrb[0].mxu0
      %403 = vmatprep.mubr.f32.mxu0 0.0
      %404 = vmatmul.mubr.f32.gmra.mrb[0].mxu0 %v280
      %v405 = vpop.f32.mrb[0].mxu0
      %v406 = vadd.f32 0.0, %v405
      %v407 = vpop.f32.mrb[0].mxu0
      %408 = vmatprep.mubr.f32.mxu0 0.0
      %409 = vmatmul.mubr.f32.gmra.mrb[0].mxu0 %v283
      %v410 = vpop.f32.mrb[0].mxu0
      %v411 = vadd.f32 0.0, %v410
      %v412 = vpop.f32.mrb[0].mxu0
      %413 = vdwg.mxu0
      %v414 = vmul.f32 %v244, %v244
      %v415 = vmul.f32 %v245, %v245
      %v416 = vmul.f32 %v246, %v246
      %v417 = vmul.f32 %v247, %v247
      %v418 = vmul.f32 %v248, %v248
      %v419 = vmul.f32 %v249, %v249
      %v420 = vmul.f32 %v250, %v250
      %v421 = vmul.f32 %v251, %v251
      %v422 = vsel %vm260, %v414, 0.0
      %423 = vadd.xlane.f32.xlu0 %v422
      %v424 = vpop.xlane.xlu0 %423
      %v425 = vsel %vm260, %v415, 0.0
      %426 = vadd.xlane.f32.xlu0 %v425
      %v427 = vpop.xlane.xlu0 %426
      %v428 = vsel %vm260, %v416, 0.0
      %429 = vadd.xlane.f32.xlu0 %v428
      %v430 = vpop.xlane.xlu0 %429
      %v431 = vsel %vm260, %v417, 0.0
      %432 = vadd.xlane.f32.xlu0 %v431
      %v433 = vpop.xlane.xlu0 %432
      %v434 = vsel %vm260, %v418, 0.0
      %435 = vadd.xlane.f32.xlu0 %v434
      %v436 = vpop.xlane.xlu0 %435
      %v437 = vsel %vm260, %v419, 0.0
      %438 = vadd.xlane.f32.xlu0 %v437
      %v439 = vpop.xlane.xlu0 %438
      %v440 = vsel %vm260, %v420, 0.0
      %441 = vadd.xlane.f32.xlu0 %v440
      %v442 = vpop.xlane.xlu0 %441
      %v443 = vsel %vm260, %v421, 0.0
      %444 = vadd.xlane.f32.xlu0 %v443
      %v445 = vpop.xlane.xlu0 %444
      %v446 = vmul.f32 %v376, -2.0
      %v447 = vmul.f32 %v381, -2.0
      %v448 = vmul.f32 %v386, -2.0
      %v449 = vmul.f32 %v391, -2.0
      %v450 = vmul.f32 %v396, -2.0
      %v451 = vmul.f32 %v401, -2.0
      %v452 = vmul.f32 %v406, -2.0
      %v453 = vmul.f32 %v411, -2.0
      %v454 = vadd.f32 %v446, %v424
      %v455 = vadd.f32 %v447, %v427
      %v456 = vadd.f32 %v448, %v430
      %v457 = vadd.f32 %v449, %v433
      %v458 = vadd.f32 %v450, %v436
      %v459 = vadd.f32 %v451, %v439
      %v460 = vadd.f32 %v452, %v442
      %v461 = vadd.f32 %v453, %v445
      %v462 = vld [vmem:[%s233] sm:$0x1]
      %v464 = vlaneseq
      %v465 = vshrl.u32 %v464, 7
      %v466 = vsub.s32 0, %v465
      %v467 = vrot.slane %v462, %v466
      %v469 = vadd.f32 %v454, %v467
      %v470 = vadd.f32 %v455, %v467
      %v471 = vadd.f32 %v456, %v467
      %v472 = vadd.f32 %v457, %v467
      %v473 = vadd.f32 %v458, %v467
      %v474 = vadd.f32 %v459, %v467
      %v475 = vadd.f32 %v460, %v467
      %v476 = vadd.f32 %v461, %v467
      %v477 = vlaneseq
      %v478 = vand.u32 %v477, 127
      %v479 = vcvt.s32.f32 %v478
      %vm480 = vcmask 523264
      %v481 = vsel %vm480, %v469, inf
      %482 = vmin.xlane.f32.xlu0 %v481
      %v483 = vpop.xlane.xlu0 %482
      %v484 = vsel %vm480, %v470, inf
      %485 = vmin.xlane.f32.xlu0 %v484
      %v486 = vpop.xlane.xlu0 %485
      %v487 = vsel %vm480, %v471, inf
      %488 = vmin.xlane.f32.xlu0 %v487
      %v489 = vpop.xlane.xlu0 %488
      %v490 = vsel %vm480, %v472, inf
      %491 = vmin.xlane.f32.xlu0 %v490
      %v492 = vpop.xlane.xlu0 %491
      %v493 = vsel %vm480, %v473, inf
      %494 = vmin.xlane.f32.xlu0 %v493
      %v495 = vpop.xlane.xlu0 %494
      %v496 = vsel %vm480, %v474, inf
      %497 = vmin.xlane.f32.xlu0 %v496
      %v498 = vpop.xlane.xlu0 %497
      %v499 = vsel %vm480, %v475, inf
      %500 = vmin.xlane.f32.xlu0 %v499
      %v501 = vpop.xlane.xlu0 %500
      %v502 = vsel %vm480, %v476, inf
      %503 = vmin.xlane.f32.xlu0 %v502
      %v504 = vpop.xlane.xlu0 %503
      %vm505 = vcmp.le.f32.partialorder %v469, %v483
      %vm506 = vcmp.le.f32.partialorder %v470, %v486
      %vm507 = vcmp.le.f32.partialorder %v471, %v489
      %vm508 = vcmp.le.f32.partialorder %v472, %v492
      %vm509 = vcmp.le.f32.partialorder %v473, %v495
      %vm510 = vcmp.le.f32.partialorder %v474, %v498
      %vm511 = vcmp.le.f32.partialorder %v475, %v501
      %vm512 = vcmp.le.f32.partialorder %v476, %v504
      %v513 = vsel %vm505, %v479, 64.0
      %v514 = vsel %vm506, %v479, 64.0
      %v515 = vsel %vm507, %v479, 64.0
      %v516 = vsel %vm508, %v479, 64.0
      %v517 = vsel %vm509, %v479, 64.0
      %v518 = vsel %vm510, %v479, 64.0
      %v519 = vsel %vm511, %v479, 64.0
      %v520 = vsel %vm512, %v479, 64.0
      %v521 = vsel %vm480, %v513, inf
      %522 = vmin.xlane.f32.xlu0 %v521
      %v523 = vpop.xlane.xlu0 %522
      %v524 = vsel %vm480, %v514, inf
      %525 = vmin.xlane.f32.xlu0 %v524
      %v526 = vpop.xlane.xlu0 %525
      %v527 = vsel %vm480, %v515, inf
      %528 = vmin.xlane.f32.xlu0 %v527
      %v529 = vpop.xlane.xlu0 %528
      %v530 = vsel %vm480, %v516, inf
      %531 = vmin.xlane.f32.xlu0 %v530
      %v532 = vpop.xlane.xlu0 %531
      %v533 = vsel %vm480, %v517, inf
      %534 = vmin.xlane.f32.xlu0 %v533
      %v535 = vpop.xlane.xlu0 %534
      %v536 = vsel %vm480, %v518, inf
      %537 = vmin.xlane.f32.xlu0 %v536
      %v538 = vpop.xlane.xlu0 %537
      %v539 = vsel %vm480, %v519, inf
      %540 = vmin.xlane.f32.xlu0 %v539
      %v541 = vpop.xlane.xlu0 %540
      %v542 = vsel %vm480, %v520, inf
      %543 = vmin.xlane.f32.xlu0 %v542
      %v544 = vpop.xlane.xlu0 %543
      %vm545 = vcmp.eq.f32.partialorder %v479, %v523
      %vm546 = vcmp.eq.f32.partialorder %v479, %v526
      %vm547 = vcmp.eq.f32.partialorder %v479, %v529
      %vm548 = vcmp.eq.f32.partialorder %v479, %v532
      %vm549 = vcmp.eq.f32.partialorder %v479, %v535
      %vm550 = vcmp.eq.f32.partialorder %v479, %v538
      %vm551 = vcmp.eq.f32.partialorder %v479, %v541
      %vm552 = vcmp.eq.f32.partialorder %v479, %v544
      %v553 = vsel %vm545, 3e+38, %v469
      %v554 = vsel %vm546, 3e+38, %v470
      %v555 = vsel %vm547, 3e+38, %v471
      %v556 = vsel %vm548, 3e+38, %v472
      %v557 = vsel %vm549, 3e+38, %v473
      %v558 = vsel %vm550, 3e+38, %v474
      %v559 = vsel %vm551, 3e+38, %v475
      %v560 = vsel %vm552, 3e+38, %v476
      %v561 = vsel %vm480, %v553, inf
      %562 = vmin.xlane.f32.xlu0 %v561
      %v563 = vpop.xlane.xlu0 %562
      %v564 = vsel %vm480, %v554, inf
      %565 = vmin.xlane.f32.xlu0 %v564
      %v566 = vpop.xlane.xlu0 %565
      %v567 = vsel %vm480, %v555, inf
      %568 = vmin.xlane.f32.xlu0 %v567
      %v569 = vpop.xlane.xlu0 %568
      %v570 = vsel %vm480, %v556, inf
      %571 = vmin.xlane.f32.xlu0 %v570
      %v572 = vpop.xlane.xlu0 %571
      %v573 = vsel %vm480, %v557, inf
      %574 = vmin.xlane.f32.xlu0 %v573
      %v575 = vpop.xlane.xlu0 %574
      %v576 = vsel %vm480, %v558, inf
      %577 = vmin.xlane.f32.xlu0 %v576
      %v578 = vpop.xlane.xlu0 %577
      %v579 = vsel %vm480, %v559, inf
      %580 = vmin.xlane.f32.xlu0 %v579
      %v581 = vpop.xlane.xlu0 %580
      %v582 = vsel %vm480, %v560, inf
      %583 = vmin.xlane.f32.xlu0 %v582
      %v584 = vpop.xlane.xlu0 %583
      %vm585 = vcmp.le.f32.partialorder %v553, %v563
      %vm586 = vcmp.le.f32.partialorder %v554, %v566
      %vm587 = vcmp.le.f32.partialorder %v555, %v569
      %vm588 = vcmp.le.f32.partialorder %v556, %v572
      %vm589 = vcmp.le.f32.partialorder %v557, %v575
      %vm590 = vcmp.le.f32.partialorder %v558, %v578
      %vm591 = vcmp.le.f32.partialorder %v559, %v581
      %vm592 = vcmp.le.f32.partialorder %v560, %v584
      %v593 = vsel %vm585, %v479, 64.0
      %v594 = vsel %vm586, %v479, 64.0
      %v595 = vsel %vm587, %v479, 64.0
      %v596 = vsel %vm588, %v479, 64.0
      %v597 = vsel %vm589, %v479, 64.0
      %v598 = vsel %vm590, %v479, 64.0
      %v599 = vsel %vm591, %v479, 64.0
      %v600 = vsel %vm592, %v479, 64.0
      %v601 = vsel %vm480, %v593, inf
      %602 = vmin.xlane.f32.xlu0 %v601
      %v603 = vpop.xlane.xlu0 %602
      %v604 = vsel %vm480, %v594, inf
      %605 = vmin.xlane.f32.xlu0 %v604
      %v606 = vpop.xlane.xlu0 %605
      %v607 = vsel %vm480, %v595, inf
      %608 = vmin.xlane.f32.xlu0 %v607
      %v609 = vpop.xlane.xlu0 %608
      %v610 = vsel %vm480, %v596, inf
      %611 = vmin.xlane.f32.xlu0 %v610
      %v612 = vpop.xlane.xlu0 %611
      %v613 = vsel %vm480, %v597, inf
      %614 = vmin.xlane.f32.xlu0 %v613
      %v615 = vpop.xlane.xlu0 %614
      %v616 = vsel %vm480, %v598, inf
      %617 = vmin.xlane.f32.xlu0 %v616
      %v618 = vpop.xlane.xlu0 %617
      %v619 = vsel %vm480, %v599, inf
      %620 = vmin.xlane.f32.xlu0 %v619
      %v621 = vpop.xlane.xlu0 %620
      %v622 = vsel %vm480, %v600, inf
      %623 = vmin.xlane.f32.xlu0 %v622
      %v624 = vpop.xlane.xlu0 %623
      %vm625 = vcmp.eq.s32.totalorder %v478, 0
      %v626 = vcvt.f32.s32.to.zero.pseudo %v603
      %v627 = vcvt.f32.s32.to.zero.pseudo %v606
      %v628 = vcvt.f32.s32.to.zero.pseudo %v609
      %v629 = vcvt.f32.s32.to.zero.pseudo %v612
      %v630 = vcvt.f32.s32.to.zero.pseudo %v615
      %v631 = vcvt.f32.s32.to.zero.pseudo %v618
      %v632 = vcvt.f32.s32.to.zero.pseudo %v621
      %v633 = vcvt.f32.s32.to.zero.pseudo %v624
      %v634 = vsel %vm625, %v626, 0
      %v635 = vsel %vm625, %v627, 0
      %v636 = vsel %vm625, %v628, 0
      %v637 = vsel %vm625, %v629, 0
      %v638 = vsel %vm625, %v630, 0
      %v639 = vsel %vm625, %v631, 0
      %v640 = vsel %vm625, %v632, 0
      %v641 = vsel %vm625, %v633, 0
      %vm642 = vcmp.eq.f32.partialorder %v479, %v603
      %vm643 = vcmp.eq.f32.partialorder %v479, %v606
      %vm644 = vcmp.eq.f32.partialorder %v479, %v609
      %vm645 = vcmp.eq.f32.partialorder %v479, %v612
      %vm646 = vcmp.eq.f32.partialorder %v479, %v615
      %vm647 = vcmp.eq.f32.partialorder %v479, %v618
      %vm648 = vcmp.eq.f32.partialorder %v479, %v621
      %vm649 = vcmp.eq.f32.partialorder %v479, %v624
      %v650 = vsel %vm642, 3e+38, %v553
      %v651 = vsel %vm643, 3e+38, %v554
      %v652 = vsel %vm644, 3e+38, %v555
      %v653 = vsel %vm645, 3e+38, %v556
      %v654 = vsel %vm646, 3e+38, %v557
      %v655 = vsel %vm647, 3e+38, %v558
      %v656 = vsel %vm648, 3e+38, %v559
      %v657 = vsel %vm649, 3e+38, %v560
      %v658 = vsel %vm480, %v650, inf
      %659 = vmin.xlane.f32.xlu0 %v658
      %v660 = vpop.xlane.xlu0 %659
      %v661 = vsel %vm480, %v651, inf
      %662 = vmin.xlane.f32.xlu0 %v661
      %v663 = vpop.xlane.xlu0 %662
      %v664 = vsel %vm480, %v652, inf
      %665 = vmin.xlane.f32.xlu0 %v664
      %v666 = vpop.xlane.xlu0 %665
      %v667 = vsel %vm480, %v653, inf
      %668 = vmin.xlane.f32.xlu0 %v667
      %v669 = vpop.xlane.xlu0 %668
      %v670 = vsel %vm480, %v654, inf
      %671 = vmin.xlane.f32.xlu0 %v670
      %v672 = vpop.xlane.xlu0 %671
      %v673 = vsel %vm480, %v655, inf
      %674 = vmin.xlane.f32.xlu0 %v673
      %v675 = vpop.xlane.xlu0 %674
      %v676 = vsel %vm480, %v656, inf
      %677 = vmin.xlane.f32.xlu0 %v676
      %v678 = vpop.xlane.xlu0 %677
      %v679 = vsel %vm480, %v657, inf
      %680 = vmin.xlane.f32.xlu0 %v679
      %v681 = vpop.xlane.xlu0 %680
      %vm682 = vcmp.le.f32.partialorder %v650, %v660
      %vm683 = vcmp.le.f32.partialorder %v651, %v663
      %vm684 = vcmp.le.f32.partialorder %v652, %v666
      %vm685 = vcmp.le.f32.partialorder %v653, %v669
      %vm686 = vcmp.le.f32.partialorder %v654, %v672
      %vm687 = vcmp.le.f32.partialorder %v655, %v675
      %vm688 = vcmp.le.f32.partialorder %v656, %v678
      %vm689 = vcmp.le.f32.partialorder %v657, %v681
      %v690 = vsel %vm682, %v479, 64.0
      %v691 = vsel %vm683, %v479, 64.0
      %v692 = vsel %vm684, %v479, 64.0
      %v693 = vsel %vm685, %v479, 64.0
      %v694 = vsel %vm686, %v479, 64.0
      %v695 = vsel %vm687, %v479, 64.0
      %v696 = vsel %vm688, %v479, 64.0
      %v697 = vsel %vm689, %v479, 64.0
      %v698 = vsel %vm480, %v690, inf
      %699 = vmin.xlane.f32.xlu0 %v698
      %v700 = vpop.xlane.xlu0 %699
      %v701 = vsel %vm480, %v691, inf
      %702 = vmin.xlane.f32.xlu0 %v701
      %v703 = vpop.xlane.xlu0 %702
      %v704 = vsel %vm480, %v692, inf
      %705 = vmin.xlane.f32.xlu0 %v704
      %v706 = vpop.xlane.xlu0 %705
      %v707 = vsel %vm480, %v693, inf
      %708 = vmin.xlane.f32.xlu0 %v707
      %v709 = vpop.xlane.xlu0 %708
      %v710 = vsel %vm480, %v694, inf
      %711 = vmin.xlane.f32.xlu0 %v710
      %v712 = vpop.xlane.xlu0 %711
      %v713 = vsel %vm480, %v695, inf
      %714 = vmin.xlane.f32.xlu0 %v713
      %v715 = vpop.xlane.xlu0 %714
      %v716 = vsel %vm480, %v696, inf
      %717 = vmin.xlane.f32.xlu0 %v716
      %v718 = vpop.xlane.xlu0 %717
      %v719 = vsel %vm480, %v697, inf
      %720 = vmin.xlane.f32.xlu0 %v719
      %v721 = vpop.xlane.xlu0 %720
      %vm722 = vcmp.eq.s32.totalorder %v478, 1
      %v723 = vcvt.f32.s32.to.zero.pseudo %v700
      %v724 = vcvt.f32.s32.to.zero.pseudo %v703
      %v725 = vcvt.f32.s32.to.zero.pseudo %v706
      %v726 = vcvt.f32.s32.to.zero.pseudo %v709
      %v727 = vcvt.f32.s32.to.zero.pseudo %v712
      %v728 = vcvt.f32.s32.to.zero.pseudo %v715
      %v729 = vcvt.f32.s32.to.zero.pseudo %v718
      %v730 = vcvt.f32.s32.to.zero.pseudo %v721
      %v731 = vsel %vm722, %v723, %v634
      %v732 = vsel %vm722, %v724, %v635
      %v733 = vsel %vm722, %v725, %v636
      %v734 = vsel %vm722, %v726, %v637
      %v735 = vsel %vm722, %v727, %v638
      %v736 = vsel %vm722, %v728, %v639
      %v737 = vsel %vm722, %v729, %v640
      %v738 = vsel %vm722, %v730, %v641
      %vm739 = vcmp.eq.f32.partialorder %v479, %v700
      %vm740 = vcmp.eq.f32.partialorder %v479, %v703
      %vm741 = vcmp.eq.f32.partialorder %v479, %v706
      %vm742 = vcmp.eq.f32.partialorder %v479, %v709
      %vm743 = vcmp.eq.f32.partialorder %v479, %v712
      %vm744 = vcmp.eq.f32.partialorder %v479, %v715
      %vm745 = vcmp.eq.f32.partialorder %v479, %v718
      %vm746 = vcmp.eq.f32.partialorder %v479, %v721
      %v747 = vsel %vm739, 3e+38, %v650
      %v748 = vsel %vm740, 3e+38, %v651
      %v749 = vsel %vm741, 3e+38, %v652
      %v750 = vsel %vm742, 3e+38, %v653
      %v751 = vsel %vm743, 3e+38, %v654
      %v752 = vsel %vm744, 3e+38, %v655
      %v753 = vsel %vm745, 3e+38, %v656
      %v754 = vsel %vm746, 3e+38, %v657
      %v755 = vsel %vm480, %v747, inf
      %756 = vmin.xlane.f32.xlu0 %v755
      %v757 = vpop.xlane.xlu0 %756
      %v758 = vsel %vm480, %v748, inf
      %759 = vmin.xlane.f32.xlu0 %v758
      %v760 = vpop.xlane.xlu0 %759
      %v761 = vsel %vm480, %v749, inf
      %762 = vmin.xlane.f32.xlu0 %v761
      %v763 = vpop.xlane.xlu0 %762
      %v764 = vsel %vm480, %v750, inf
      %765 = vmin.xlane.f32.xlu0 %v764
      %v766 = vpop.xlane.xlu0 %765
      %v767 = vsel %vm480, %v751, inf
      %768 = vmin.xlane.f32.xlu0 %v767
      %v769 = vpop.xlane.xlu0 %768
      %v770 = vsel %vm480, %v752, inf
      %771 = vmin.xlane.f32.xlu0 %v770
      %v772 = vpop.xlane.xlu0 %771
      %v773 = vsel %vm480, %v753, inf
      %774 = vmin.xlane.f32.xlu0 %v773
      %v775 = vpop.xlane.xlu0 %774
      %v776 = vsel %vm480, %v754, inf
      %777 = vmin.xlane.f32.xlu0 %v776
      %v778 = vpop.xlane.xlu0 %777
      %vm779 = vcmp.le.f32.partialorder %v747, %v757
      %vm780 = vcmp.le.f32.partialorder %v748, %v760
      %vm781 = vcmp.le.f32.partialorder %v749, %v763
      %vm782 = vcmp.le.f32.partialorder %v750, %v766
      %vm783 = vcmp.le.f32.partialorder %v751, %v769
      %vm784 = vcmp.le.f32.partialorder %v752, %v772
      %vm785 = vcmp.le.f32.partialorder %v753, %v775
      %vm786 = vcmp.le.f32.partialorder %v754, %v778
      %v787 = vsel %vm779, %v479, 64.0
      %v788 = vsel %vm780, %v479, 64.0
      %v789 = vsel %vm781, %v479, 64.0
      %v790 = vsel %vm782, %v479, 64.0
      %v791 = vsel %vm783, %v479, 64.0
      %v792 = vsel %vm784, %v479, 64.0
      %v793 = vsel %vm785, %v479, 64.0
      %v794 = vsel %vm786, %v479, 64.0
      %v795 = vsel %vm480, %v787, inf
      %796 = vmin.xlane.f32.xlu0 %v795
      %v797 = vpop.xlane.xlu0 %796
      %v798 = vsel %vm480, %v788, inf
      %799 = vmin.xlane.f32.xlu0 %v798
      %v800 = vpop.xlane.xlu0 %799
      %v801 = vsel %vm480, %v789, inf
      %802 = vmin.xlane.f32.xlu0 %v801
      %v803 = vpop.xlane.xlu0 %802
      %v804 = vsel %vm480, %v790, inf
      %805 = vmin.xlane.f32.xlu0 %v804
      %v806 = vpop.xlane.xlu0 %805
      %v807 = vsel %vm480, %v791, inf
      %808 = vmin.xlane.f32.xlu0 %v807
      %v809 = vpop.xlane.xlu0 %808
      %v810 = vsel %vm480, %v792, inf
      %811 = vmin.xlane.f32.xlu0 %v810
      %v812 = vpop.xlane.xlu0 %811
      %v813 = vsel %vm480, %v793, inf
      %814 = vmin.xlane.f32.xlu0 %v813
      %v815 = vpop.xlane.xlu0 %814
      %v816 = vsel %vm480, %v794, inf
      %817 = vmin.xlane.f32.xlu0 %v816
      %v818 = vpop.xlane.xlu0 %817
      %vm819 = vcmp.eq.s32.totalorder %v478, 2
      %v820 = vcvt.f32.s32.to.zero.pseudo %v797
      %v821 = vcvt.f32.s32.to.zero.pseudo %v800
      %v822 = vcvt.f32.s32.to.zero.pseudo %v803
      %v823 = vcvt.f32.s32.to.zero.pseudo %v806
      %v824 = vcvt.f32.s32.to.zero.pseudo %v809
      %v825 = vcvt.f32.s32.to.zero.pseudo %v812
      %v826 = vcvt.f32.s32.to.zero.pseudo %v815
      %v827 = vcvt.f32.s32.to.zero.pseudo %v818
      %v828 = vsel %vm819, %v820, %v731
      %v829 = vsel %vm819, %v821, %v732
      %v830 = vsel %vm819, %v822, %v733
      %v831 = vsel %vm819, %v823, %v734
      %v832 = vsel %vm819, %v824, %v735
      %v833 = vsel %vm819, %v825, %v736
      %v834 = vsel %vm819, %v826, %v737
      %v835 = vsel %vm819, %v827, %v738
      %vm836 = vcmp.eq.f32.partialorder %v479, %v797
      %vm837 = vcmp.eq.f32.partialorder %v479, %v800
      %vm838 = vcmp.eq.f32.partialorder %v479, %v803
      %vm839 = vcmp.eq.f32.partialorder %v479, %v806
      %vm840 = vcmp.eq.f32.partialorder %v479, %v809
      %vm841 = vcmp.eq.f32.partialorder %v479, %v812
      %vm842 = vcmp.eq.f32.partialorder %v479, %v815
      %vm843 = vcmp.eq.f32.partialorder %v479, %v818
      %v844 = vsel %vm836, 3e+38, %v747
      %v845 = vsel %vm837, 3e+38, %v748
      %v846 = vsel %vm838, 3e+38, %v749
      %v847 = vsel %vm839, 3e+38, %v750
      %v848 = vsel %vm840, 3e+38, %v751
      %v849 = vsel %vm841, 3e+38, %v752
      %v850 = vsel %vm842, 3e+38, %v753
      %v851 = vsel %vm843, 3e+38, %v754
      %v852 = vsel %vm480, %v844, inf
      %853 = vmin.xlane.f32.xlu0 %v852
      %v854 = vpop.xlane.xlu0 %853
      %v855 = vsel %vm480, %v845, inf
      %856 = vmin.xlane.f32.xlu0 %v855
      %v857 = vpop.xlane.xlu0 %856
      %v858 = vsel %vm480, %v846, inf
      %859 = vmin.xlane.f32.xlu0 %v858
      %v860 = vpop.xlane.xlu0 %859
      %v861 = vsel %vm480, %v847, inf
      %862 = vmin.xlane.f32.xlu0 %v861
      %v863 = vpop.xlane.xlu0 %862
      %v864 = vsel %vm480, %v848, inf
      %865 = vmin.xlane.f32.xlu0 %v864
      %v866 = vpop.xlane.xlu0 %865
      %v867 = vsel %vm480, %v849, inf
      %868 = vmin.xlane.f32.xlu0 %v867
      %v869 = vpop.xlane.xlu0 %868
      %v870 = vsel %vm480, %v850, inf
      %871 = vmin.xlane.f32.xlu0 %v870
      %v872 = vpop.xlane.xlu0 %871
      %v873 = vsel %vm480, %v851, inf
      %874 = vmin.xlane.f32.xlu0 %v873
      %v875 = vpop.xlane.xlu0 %874
      %vm876 = vcmp.le.f32.partialorder %v844, %v854
      %vm877 = vcmp.le.f32.partialorder %v845, %v857
      %vm878 = vcmp.le.f32.partialorder %v846, %v860
      %vm879 = vcmp.le.f32.partialorder %v847, %v863
      %vm880 = vcmp.le.f32.partialorder %v848, %v866
      %vm881 = vcmp.le.f32.partialorder %v849, %v869
      %vm882 = vcmp.le.f32.partialorder %v850, %v872
      %vm883 = vcmp.le.f32.partialorder %v851, %v875
      %v884 = vsel %vm876, %v479, 64.0
      %v885 = vsel %vm877, %v479, 64.0
      %v886 = vsel %vm878, %v479, 64.0
      %v887 = vsel %vm879, %v479, 64.0
      %v888 = vsel %vm880, %v479, 64.0
      %v889 = vsel %vm881, %v479, 64.0
      %v890 = vsel %vm882, %v479, 64.0
      %v891 = vsel %vm883, %v479, 64.0
      %v892 = vsel %vm480, %v884, inf
      %893 = vmin.xlane.f32.xlu0 %v892
      %v894 = vpop.xlane.xlu0 %893
      %v895 = vsel %vm480, %v885, inf
      %896 = vmin.xlane.f32.xlu0 %v895
      %v897 = vpop.xlane.xlu0 %896
      %v898 = vsel %vm480, %v886, inf
      %899 = vmin.xlane.f32.xlu0 %v898
      %v900 = vpop.xlane.xlu0 %899
      %v901 = vsel %vm480, %v887, inf
      %902 = vmin.xlane.f32.xlu0 %v901
      %v903 = vpop.xlane.xlu0 %902
      %v904 = vsel %vm480, %v888, inf
      %905 = vmin.xlane.f32.xlu0 %v904
      %v906 = vpop.xlane.xlu0 %905
      %v907 = vsel %vm480, %v889, inf
      %908 = vmin.xlane.f32.xlu0 %v907
      %v909 = vpop.xlane.xlu0 %908
      %v910 = vsel %vm480, %v890, inf
      %911 = vmin.xlane.f32.xlu0 %v910
      %v912 = vpop.xlane.xlu0 %911
      %v913 = vsel %vm480, %v891, inf
      %914 = vmin.xlane.f32.xlu0 %v913
      %v915 = vpop.xlane.xlu0 %914
      %vm916 = vcmp.eq.s32.totalorder %v478, 3
      %v917 = vcvt.f32.s32.to.zero.pseudo %v894
      %v918 = vcvt.f32.s32.to.zero.pseudo %v897
      %v919 = vcvt.f32.s32.to.zero.pseudo %v900
      %v920 = vcvt.f32.s32.to.zero.pseudo %v903
      %v921 = vcvt.f32.s32.to.zero.pseudo %v906
      %v922 = vcvt.f32.s32.to.zero.pseudo %v909
      %v923 = vcvt.f32.s32.to.zero.pseudo %v912
      %v924 = vcvt.f32.s32.to.zero.pseudo %v915
      %v925 = vsel %vm916, %v917, %v828
      %v926 = vsel %vm916, %v918, %v829
      %v927 = vsel %vm916, %v919, %v830
      %v928 = vsel %vm916, %v920, %v831
      %v929 = vsel %vm916, %v921, %v832
      %v930 = vsel %vm916, %v922, %v833
      %v931 = vsel %vm916, %v923, %v834
      %v932 = vsel %vm916, %v924, %v835
      %vm933 = vcmp.eq.f32.partialorder %v479, %v894
      %vm934 = vcmp.eq.f32.partialorder %v479, %v897
      %vm935 = vcmp.eq.f32.partialorder %v479, %v900
      %vm936 = vcmp.eq.f32.partialorder %v479, %v903
      %vm937 = vcmp.eq.f32.partialorder %v479, %v906
      %vm938 = vcmp.eq.f32.partialorder %v479, %v909
      %vm939 = vcmp.eq.f32.partialorder %v479, %v912
      %vm940 = vcmp.eq.f32.partialorder %v479, %v915
      %v941 = vsel %vm933, 3e+38, %v844
      %v942 = vsel %vm934, 3e+38, %v845
      %v943 = vsel %vm935, 3e+38, %v846
      %v944 = vsel %vm936, 3e+38, %v847
      %v945 = vsel %vm937, 3e+38, %v848
      %v946 = vsel %vm938, 3e+38, %v849
      %v947 = vsel %vm939, 3e+38, %v850
      %v948 = vsel %vm940, 3e+38, %v851
      %v949 = vsel %vm480, %v941, inf
      %950 = vmin.xlane.f32.xlu0 %v949
      %v951 = vpop.xlane.xlu0 %950
      %v952 = vsel %vm480, %v942, inf
      %953 = vmin.xlane.f32.xlu0 %v952
      %v954 = vpop.xlane.xlu0 %953
      %v955 = vsel %vm480, %v943, inf
      %956 = vmin.xlane.f32.xlu0 %v955
      %v957 = vpop.xlane.xlu0 %956
      %v958 = vsel %vm480, %v944, inf
      %959 = vmin.xlane.f32.xlu0 %v958
      %v960 = vpop.xlane.xlu0 %959
      %v961 = vsel %vm480, %v945, inf
      %962 = vmin.xlane.f32.xlu0 %v961
      %v963 = vpop.xlane.xlu0 %962
      %v964 = vsel %vm480, %v946, inf
      %965 = vmin.xlane.f32.xlu0 %v964
      %v966 = vpop.xlane.xlu0 %965
      %v967 = vsel %vm480, %v947, inf
      %968 = vmin.xlane.f32.xlu0 %v967
      %v969 = vpop.xlane.xlu0 %968
      %v970 = vsel %vm480, %v948, inf
      %971 = vmin.xlane.f32.xlu0 %v970
      %v972 = vpop.xlane.xlu0 %971
      %vm973 = vcmp.le.f32.partialorder %v941, %v951
      %vm974 = vcmp.le.f32.partialorder %v942, %v954
      %vm975 = vcmp.le.f32.partialorder %v943, %v957
      %vm976 = vcmp.le.f32.partialorder %v944, %v960
      %vm977 = vcmp.le.f32.partialorder %v945, %v963
      %vm978 = vcmp.le.f32.partialorder %v946, %v966
      %vm979 = vcmp.le.f32.partialorder %v947, %v969
      %vm980 = vcmp.le.f32.partialorder %v948, %v972
      %v981 = vsel %vm973, %v479, 64.0
      %v982 = vsel %vm974, %v479, 64.0
      %v983 = vsel %vm975, %v479, 64.0
      %v984 = vsel %vm976, %v479, 64.0
      %v985 = vsel %vm977, %v479, 64.0
      %v986 = vsel %vm978, %v479, 64.0
      %v987 = vsel %vm979, %v479, 64.0
      %v988 = vsel %vm980, %v479, 64.0
      %v989 = vsel %vm480, %v981, inf
      %990 = vmin.xlane.f32.xlu0 %v989
      %v991 = vpop.xlane.xlu0 %990
      %v992 = vsel %vm480, %v982, inf
      %993 = vmin.xlane.f32.xlu0 %v992
      %v994 = vpop.xlane.xlu0 %993
      %v995 = vsel %vm480, %v983, inf
      %996 = vmin.xlane.f32.xlu0 %v995
      %v997 = vpop.xlane.xlu0 %996
      %v998 = vsel %vm480, %v984, inf
      %999 = vmin.xlane.f32.xlu0 %v998
      %v1000 = vpop.xlane.xlu0 %999
      %v1001 = vsel %vm480, %v985, inf
      %1002 = vmin.xlane.f32.xlu0 %v1001
      %v1003 = vpop.xlane.xlu0 %1002
      %v1004 = vsel %vm480, %v986, inf
      %1005 = vmin.xlane.f32.xlu0 %v1004
      %v1006 = vpop.xlane.xlu0 %1005
      %v1007 = vsel %vm480, %v987, inf
      %1008 = vmin.xlane.f32.xlu0 %v1007
      %v1009 = vpop.xlane.xlu0 %1008
      %v1010 = vsel %vm480, %v988, inf
      %1011 = vmin.xlane.f32.xlu0 %v1010
      %v1012 = vpop.xlane.xlu0 %1011
      %vm1013 = vcmp.eq.s32.totalorder %v478, 4
      %v1014 = vcvt.f32.s32.to.zero.pseudo %v991
      %v1015 = vcvt.f32.s32.to.zero.pseudo %v994
      %v1016 = vcvt.f32.s32.to.zero.pseudo %v997
      %v1017 = vcvt.f32.s32.to.zero.pseudo %v1000
      %v1018 = vcvt.f32.s32.to.zero.pseudo %v1003
      %v1019 = vcvt.f32.s32.to.zero.pseudo %v1006
      %v1020 = vcvt.f32.s32.to.zero.pseudo %v1009
      %v1021 = vcvt.f32.s32.to.zero.pseudo %v1012
      %v1022 = vsel %vm1013, %v1014, %v925
      %v1023 = vsel %vm1013, %v1015, %v926
      %v1024 = vsel %vm1013, %v1016, %v927
      %v1025 = vsel %vm1013, %v1017, %v928
      %v1026 = vsel %vm1013, %v1018, %v929
      %v1027 = vsel %vm1013, %v1019, %v930
      %v1028 = vsel %vm1013, %v1020, %v931
      %v1029 = vsel %vm1013, %v1021, %v932
      %vm1030 = vcmp.eq.f32.partialorder %v479, %v991
      %vm1031 = vcmp.eq.f32.partialorder %v479, %v994
      %vm1032 = vcmp.eq.f32.partialorder %v479, %v997
      %vm1033 = vcmp.eq.f32.partialorder %v479, %v1000
      %vm1034 = vcmp.eq.f32.partialorder %v479, %v1003
      %vm1035 = vcmp.eq.f32.partialorder %v479, %v1006
      %vm1036 = vcmp.eq.f32.partialorder %v479, %v1009
      %vm1037 = vcmp.eq.f32.partialorder %v479, %v1012
      %v1038 = vsel %vm1030, 3e+38, %v941
      %v1039 = vsel %vm1031, 3e+38, %v942
      %v1040 = vsel %vm1032, 3e+38, %v943
      %v1041 = vsel %vm1033, 3e+38, %v944
      %v1042 = vsel %vm1034, 3e+38, %v945
      %v1043 = vsel %vm1035, 3e+38, %v946
      %v1044 = vsel %vm1036, 3e+38, %v947
      %v1045 = vsel %vm1037, 3e+38, %v948
      %v1046 = vsel %vm480, %v1038, inf
      %1047 = vmin.xlane.f32.xlu0 %v1046
      %v1048 = vpop.xlane.xlu0 %1047
      %v1049 = vsel %vm480, %v1039, inf
      %1050 = vmin.xlane.f32.xlu0 %v1049
      %v1051 = vpop.xlane.xlu0 %1050
      %v1052 = vsel %vm480, %v1040, inf
      %1053 = vmin.xlane.f32.xlu0 %v1052
      %v1054 = vpop.xlane.xlu0 %1053
      %v1055 = vsel %vm480, %v1041, inf
      %1056 = vmin.xlane.f32.xlu0 %v1055
      %v1057 = vpop.xlane.xlu0 %1056
      %v1058 = vsel %vm480, %v1042, inf
      %1059 = vmin.xlane.f32.xlu0 %v1058
      %v1060 = vpop.xlane.xlu0 %1059
      %v1061 = vsel %vm480, %v1043, inf
      %1062 = vmin.xlane.f32.xlu0 %v1061
      %v1063 = vpop.xlane.xlu0 %1062
      %v1064 = vsel %vm480, %v1044, inf
      %1065 = vmin.xlane.f32.xlu0 %v1064
      %v1066 = vpop.xlane.xlu0 %1065
      %v1067 = vsel %vm480, %v1045, inf
      %1068 = vmin.xlane.f32.xlu0 %v1067
      %v1069 = vpop.xlane.xlu0 %1068
      %vm1070 = vcmp.le.f32.partialorder %v1038, %v1048
      %vm1071 = vcmp.le.f32.partialorder %v1039, %v1051
      %vm1072 = vcmp.le.f32.partialorder %v1040, %v1054
      %vm1073 = vcmp.le.f32.partialorder %v1041, %v1057
      %vm1074 = vcmp.le.f32.partialorder %v1042, %v1060
      %vm1075 = vcmp.le.f32.partialorder %v1043, %v1063
      %vm1076 = vcmp.le.f32.partialorder %v1044, %v1066
      %vm1077 = vcmp.le.f32.partialorder %v1045, %v1069
      %v1078 = vsel %vm1070, %v479, 64.0
      %v1079 = vsel %vm1071, %v479, 64.0
      %v1080 = vsel %vm1072, %v479, 64.0
      %v1081 = vsel %vm1073, %v479, 64.0
      %v1082 = vsel %vm1074, %v479, 64.0
      %v1083 = vsel %vm1075, %v479, 64.0
      %v1084 = vsel %vm1076, %v479, 64.0
      %v1085 = vsel %vm1077, %v479, 64.0
      %v1086 = vsel %vm480, %v1078, inf
      %1087 = vmin.xlane.f32.xlu0 %v1086
      %v1088 = vpop.xlane.xlu0 %1087
      %v1089 = vsel %vm480, %v1079, inf
      %1090 = vmin.xlane.f32.xlu0 %v1089
      %v1091 = vpop.xlane.xlu0 %1090
      %v1092 = vsel %vm480, %v1080, inf
      %1093 = vmin.xlane.f32.xlu0 %v1092
      %v1094 = vpop.xlane.xlu0 %1093
      %v1095 = vsel %vm480, %v1081, inf
      %1096 = vmin.xlane.f32.xlu0 %v1095
      %v1097 = vpop.xlane.xlu0 %1096
      %v1098 = vsel %vm480, %v1082, inf
      %1099 = vmin.xlane.f32.xlu0 %v1098
      %v1100 = vpop.xlane.xlu0 %1099
      %v1101 = vsel %vm480, %v1083, inf
      %1102 = vmin.xlane.f32.xlu0 %v1101
      %v1103 = vpop.xlane.xlu0 %1102
      %v1104 = vsel %vm480, %v1084, inf
      %1105 = vmin.xlane.f32.xlu0 %v1104
      %v1106 = vpop.xlane.xlu0 %1105
      %v1107 = vsel %vm480, %v1085, inf
      %1108 = vmin.xlane.f32.xlu0 %v1107
      %v1109 = vpop.xlane.xlu0 %1108
      %vm1110 = vcmp.eq.s32.totalorder %v478, 5
      %v1111 = vcvt.f32.s32.to.zero.pseudo %v1088
      %v1112 = vcvt.f32.s32.to.zero.pseudo %v1091
      %v1113 = vcvt.f32.s32.to.zero.pseudo %v1094
      %v1114 = vcvt.f32.s32.to.zero.pseudo %v1097
      %v1115 = vcvt.f32.s32.to.zero.pseudo %v1100
      %v1116 = vcvt.f32.s32.to.zero.pseudo %v1103
      %v1117 = vcvt.f32.s32.to.zero.pseudo %v1106
      %v1118 = vcvt.f32.s32.to.zero.pseudo %v1109
      %v1119 = vsel %vm1110, %v1111, %v1022
      %v1120 = vsel %vm1110, %v1112, %v1023
      %v1121 = vsel %vm1110, %v1113, %v1024
      %v1122 = vsel %vm1110, %v1114, %v1025
      %v1123 = vsel %vm1110, %v1115, %v1026
      %v1124 = vsel %vm1110, %v1116, %v1027
      %v1125 = vsel %vm1110, %v1117, %v1028
      %v1126 = vsel %vm1110, %v1118, %v1029
      %vm1127 = vcmp.eq.f32.partialorder %v479, %v1088
      %vm1128 = vcmp.eq.f32.partialorder %v479, %v1091
      %vm1129 = vcmp.eq.f32.partialorder %v479, %v1094
      %vm1130 = vcmp.eq.f32.partialorder %v479, %v1097
      %vm1131 = vcmp.eq.f32.partialorder %v479, %v1100
      %vm1132 = vcmp.eq.f32.partialorder %v479, %v1103
      %vm1133 = vcmp.eq.f32.partialorder %v479, %v1106
      %vm1134 = vcmp.eq.f32.partialorder %v479, %v1109
      %v1135 = vsel %vm1127, 3e+38, %v1038
      %v1136 = vsel %vm1128, 3e+38, %v1039
      %v1137 = vsel %vm1129, 3e+38, %v1040
      %v1138 = vsel %vm1130, 3e+38, %v1041
      %v1139 = vsel %vm1131, 3e+38, %v1042
      %v1140 = vsel %vm1132, 3e+38, %v1043
      %v1141 = vsel %vm1133, 3e+38, %v1044
      %v1142 = vsel %vm1134, 3e+38, %v1045
      %v1143 = vsel %vm480, %v1135, inf
      %1144 = vmin.xlane.f32.xlu0 %v1143
      %v1145 = vpop.xlane.xlu0 %1144
      %v1146 = vsel %vm480, %v1136, inf
      %1147 = vmin.xlane.f32.xlu0 %v1146
      %v1148 = vpop.xlane.xlu0 %1147
      %v1149 = vsel %vm480, %v1137, inf
      %1150 = vmin.xlane.f32.xlu0 %v1149
      %v1151 = vpop.xlane.xlu0 %1150
      %v1152 = vsel %vm480, %v1138, inf
      %1153 = vmin.xlane.f32.xlu0 %v1152
      %v1154 = vpop.xlane.xlu0 %1153
      %v1155 = vsel %vm480, %v1139, inf
      %1156 = vmin.xlane.f32.xlu0 %v1155
      %v1157 = vpop.xlane.xlu0 %1156
      %v1158 = vsel %vm480, %v1140, inf
      %1159 = vmin.xlane.f32.xlu0 %v1158
      %v1160 = vpop.xlane.xlu0 %1159
      %v1161 = vsel %vm480, %v1141, inf
      %1162 = vmin.xlane.f32.xlu0 %v1161
      %v1163 = vpop.xlane.xlu0 %1162
      %v1164 = vsel %vm480, %v1142, inf
      %1165 = vmin.xlane.f32.xlu0 %v1164
      %v1166 = vpop.xlane.xlu0 %1165
      %vm1167 = vcmp.le.f32.partialorder %v1135, %v1145
      %vm1168 = vcmp.le.f32.partialorder %v1136, %v1148
      %vm1169 = vcmp.le.f32.partialorder %v1137, %v1151
      %vm1170 = vcmp.le.f32.partialorder %v1138, %v1154
      %vm1171 = vcmp.le.f32.partialorder %v1139, %v1157
      %vm1172 = vcmp.le.f32.partialorder %v1140, %v1160
      %vm1173 = vcmp.le.f32.partialorder %v1141, %v1163
      %vm1174 = vcmp.le.f32.partialorder %v1142, %v1166
      %v1175 = vsel %vm1167, %v479, 64.0
      %v1176 = vsel %vm1168, %v479, 64.0
      %v1177 = vsel %vm1169, %v479, 64.0
      %v1178 = vsel %vm1170, %v479, 64.0
      %v1179 = vsel %vm1171, %v479, 64.0
      %v1180 = vsel %vm1172, %v479, 64.0
      %v1181 = vsel %vm1173, %v479, 64.0
      %v1182 = vsel %vm1174, %v479, 64.0
      %v1183 = vsel %vm480, %v1175, inf
      %1184 = vmin.xlane.f32.xlu0 %v1183
      %v1185 = vpop.xlane.xlu0 %1184
      %v1186 = vsel %vm480, %v1176, inf
      %1187 = vmin.xlane.f32.xlu0 %v1186
      %v1188 = vpop.xlane.xlu0 %1187
      %v1189 = vsel %vm480, %v1177, inf
      %1190 = vmin.xlane.f32.xlu0 %v1189
      %v1191 = vpop.xlane.xlu0 %1190
      %v1192 = vsel %vm480, %v1178, inf
      %1193 = vmin.xlane.f32.xlu0 %v1192
      %v1194 = vpop.xlane.xlu0 %1193
      %v1195 = vsel %vm480, %v1179, inf
      %1196 = vmin.xlane.f32.xlu0 %v1195
      %v1197 = vpop.xlane.xlu0 %1196
      %v1198 = vsel %vm480, %v1180, inf
      %1199 = vmin.xlane.f32.xlu0 %v1198
      %v1200 = vpop.xlane.xlu0 %1199
      %v1201 = vsel %vm480, %v1181, inf
      %1202 = vmin.xlane.f32.xlu0 %v1201
      %v1203 = vpop.xlane.xlu0 %1202
      %v1204 = vsel %vm480, %v1182, inf
      %1205 = vmin.xlane.f32.xlu0 %v1204
      %v1206 = vpop.xlane.xlu0 %1205
      %vm1207 = vcmp.eq.s32.totalorder %v478, 6
      %v1208 = vcvt.f32.s32.to.zero.pseudo %v1185
      %v1209 = vcvt.f32.s32.to.zero.pseudo %v1188
      %v1210 = vcvt.f32.s32.to.zero.pseudo %v1191
      %v1211 = vcvt.f32.s32.to.zero.pseudo %v1194
      %v1212 = vcvt.f32.s32.to.zero.pseudo %v1197
      %v1213 = vcvt.f32.s32.to.zero.pseudo %v1200
      %v1214 = vcvt.f32.s32.to.zero.pseudo %v1203
      %v1215 = vcvt.f32.s32.to.zero.pseudo %v1206
      %v1216 = vsel %vm1207, %v1208, %v1119
      %v1217 = vsel %vm1207, %v1209, %v1120
      %v1218 = vsel %vm1207, %v1210, %v1121
      %v1219 = vsel %vm1207, %v1211, %v1122
      %v1220 = vsel %vm1207, %v1212, %v1123
      %v1221 = vsel %vm1207, %v1213, %v1124
      %v1222 = vsel %vm1207, %v1214, %v1125
      %v1223 = vsel %vm1207, %v1215, %v1126
      %vm1224 = vcmp.eq.f32.partialorder %v479, %v1185
      %vm1225 = vcmp.eq.f32.partialorder %v479, %v1188
      %vm1226 = vcmp.eq.f32.partialorder %v479, %v1191
      %vm1227 = vcmp.eq.f32.partialorder %v479, %v1194
      %vm1228 = vcmp.eq.f32.partialorder %v479, %v1197
      %vm1229 = vcmp.eq.f32.partialorder %v479, %v1200
      %vm1230 = vcmp.eq.f32.partialorder %v479, %v1203
      %vm1231 = vcmp.eq.f32.partialorder %v479, %v1206
      %v1232 = vsel %vm1224, 3e+38, %v1135
      %v1233 = vsel %vm1225, 3e+38, %v1136
      %v1234 = vsel %vm1226, 3e+38, %v1137
      %v1235 = vsel %vm1227, 3e+38, %v1138
      %v1236 = vsel %vm1228, 3e+38, %v1139
      %v1237 = vsel %vm1229, 3e+38, %v1140
      %v1238 = vsel %vm1230, 3e+38, %v1141
      %v1239 = vsel %vm1231, 3e+38, %v1142
      %v1240 = vsel %vm480, %v1232, inf
      %1241 = vmin.xlane.f32.xlu0 %v1240
      %v1242 = vpop.xlane.xlu0 %1241
      %v1243 = vsel %vm480, %v1233, inf
      %1244 = vmin.xlane.f32.xlu0 %v1243
      %v1245 = vpop.xlane.xlu0 %1244
      %v1246 = vsel %vm480, %v1234, inf
      %1247 = vmin.xlane.f32.xlu0 %v1246
      %v1248 = vpop.xlane.xlu0 %1247
      %v1249 = vsel %vm480, %v1235, inf
      %1250 = vmin.xlane.f32.xlu0 %v1249
      %v1251 = vpop.xlane.xlu0 %1250
      %v1252 = vsel %vm480, %v1236, inf
      %1253 = vmin.xlane.f32.xlu0 %v1252
      %v1254 = vpop.xlane.xlu0 %1253
      %v1255 = vsel %vm480, %v1237, inf
      %1256 = vmin.xlane.f32.xlu0 %v1255
      %v1257 = vpop.xlane.xlu0 %1256
      %v1258 = vsel %vm480, %v1238, inf
      %1259 = vmin.xlane.f32.xlu0 %v1258
      %v1260 = vpop.xlane.xlu0 %1259
      %v1261 = vsel %vm480, %v1239, inf
      %1262 = vmin.xlane.f32.xlu0 %v1261
      %v1263 = vpop.xlane.xlu0 %1262
      %vm1264 = vcmp.le.f32.partialorder %v1232, %v1242
      %vm1265 = vcmp.le.f32.partialorder %v1233, %v1245
      %vm1266 = vcmp.le.f32.partialorder %v1234, %v1248
      %vm1267 = vcmp.le.f32.partialorder %v1235, %v1251
      %vm1268 = vcmp.le.f32.partialorder %v1236, %v1254
      %vm1269 = vcmp.le.f32.partialorder %v1237, %v1257
      %vm1270 = vcmp.le.f32.partialorder %v1238, %v1260
      %vm1271 = vcmp.le.f32.partialorder %v1239, %v1263
      %v1272 = vsel %vm1264, %v479, 64.0
      %v1273 = vsel %vm1265, %v479, 64.0
      %v1274 = vsel %vm1266, %v479, 64.0
      %v1275 = vsel %vm1267, %v479, 64.0
      %v1276 = vsel %vm1268, %v479, 64.0
      %v1277 = vsel %vm1269, %v479, 64.0
      %v1278 = vsel %vm1270, %v479, 64.0
      %v1279 = vsel %vm1271, %v479, 64.0
      %v1280 = vsel %vm480, %v1272, inf
      %1281 = vmin.xlane.f32.xlu0 %v1280
      %v1282 = vpop.xlane.xlu0 %1281
      %v1283 = vsel %vm480, %v1273, inf
      %1284 = vmin.xlane.f32.xlu0 %v1283
      %v1285 = vpop.xlane.xlu0 %1284
      %v1286 = vsel %vm480, %v1274, inf
      %1287 = vmin.xlane.f32.xlu0 %v1286
      %v1288 = vpop.xlane.xlu0 %1287
      %v1289 = vsel %vm480, %v1275, inf
      %1290 = vmin.xlane.f32.xlu0 %v1289
      %v1291 = vpop.xlane.xlu0 %1290
      %v1292 = vsel %vm480, %v1276, inf
      %1293 = vmin.xlane.f32.xlu0 %v1292
      %v1294 = vpop.xlane.xlu0 %1293
      %v1295 = vsel %vm480, %v1277, inf
      %1296 = vmin.xlane.f32.xlu0 %v1295
      %v1297 = vpop.xlane.xlu0 %1296
      %v1298 = vsel %vm480, %v1278, inf
      %1299 = vmin.xlane.f32.xlu0 %v1298
      %v1300 = vpop.xlane.xlu0 %1299
      %v1301 = vsel %vm480, %v1279, inf
      %1302 = vmin.xlane.f32.xlu0 %v1301
      %v1303 = vpop.xlane.xlu0 %1302
      %vm1304 = vcmp.eq.s32.totalorder %v478, 7
      %v1305 = vcvt.f32.s32.to.zero.pseudo %v1282
      %v1306 = vcvt.f32.s32.to.zero.pseudo %v1285
      %v1307 = vcvt.f32.s32.to.zero.pseudo %v1288
      %v1308 = vcvt.f32.s32.to.zero.pseudo %v1291
      %v1309 = vcvt.f32.s32.to.zero.pseudo %v1294
      %v1310 = vcvt.f32.s32.to.zero.pseudo %v1297
      %v1311 = vcvt.f32.s32.to.zero.pseudo %v1300
      %v1312 = vcvt.f32.s32.to.zero.pseudo %v1303
      %v1313 = vsel %vm1304, %v1305, %v1216
      %v1314 = vsel %vm1304, %v1306, %v1217
      %v1315 = vsel %vm1304, %v1307, %v1218
      %v1316 = vsel %vm1304, %v1308, %v1219
      %v1317 = vsel %vm1304, %v1309, %v1220
      %v1318 = vsel %vm1304, %v1310, %v1221
      %v1319 = vsel %vm1304, %v1311, %v1222
      %v1320 = vsel %vm1304, %v1312, %v1223
      %vm1321 = vcmask 64512
      %1322 = vst.msk [vmem:[%s242] sm:$0xff] %vm1321, %v1313
      %1323 = vst.msk [vmem:[%s242 + $0x8] sm:$0xff] %vm1321, %v1314
      %1324 = vst.msk [vmem:[%s242 + $0x10] sm:$0xff] %vm1321, %v1315
      %1325 = vst.msk [vmem:[%s242 + $0x18] sm:$0xff] %vm1321, %v1316
      %1326 = vst.msk [vmem:[%s242 + $0x20] sm:$0xff] %vm1321, %v1317
      %1327 = vst.msk [vmem:[%s242 + $0x28] sm:$0xff] %vm1321, %v1318
      %1328 = vst.msk [vmem:[%s242 + $0x30] sm:$0xff] %vm1321, %v1319
      %1329 = vst.msk [vmem:[%s242 + $0x38] sm:$0xff] %vm1321, %v1320
      %s1330 = smul.u32 8, %s19
      %p1331 = scmp.lt.s32.totalorder %s18, 1
      %s1332 = scalar_select %p1331, %s18, 1
      %p1333 = scmp.lt.s32.totalorder %s1330, 7
      %s1334 = scalar_select %p1333, %s1330, 7
      %s1335 = smul.addr %s1332, 8
      %s1336 = sadd.s32 %s1334, %s1335
      %s1337 = smul.addr %s1336, 8
      %s1338 = scalar_lea.vmem %s3, %s1337
      // Predicated region
      $region33: #{hs_layer_forward.3} parent=31 // pred_check
        %p1339 = pneg %p126
      $region34: #{hs_layer_forward.3} parent=31 // pred_check_branch
        %1341 = sbr.rel (%p1339) target = $region36
      $region35: #{hs_layer_forward.3} parent=31 // pred_region
        %s1342 = smul.u32 8, %s19
      $region36: #{hs_layer_forward.3} parent=31 // pred_fallthru
        _
    $region32: #{hs_layer_forward.3} parent=5 // pred_fallthru
      _
    %p1343 = scmp.le.s32.totalorder 2, %s9
    // Predicated region
    $region37: #{hs_layer_forward.3} parent=5 // pred_check
      %p1344 = pneg %p1343
    $region38: #{hs_layer_forward.3} parent=5 // pred_check_branch
      %1346 = sbr.rel (%p1344) target = $region40
    $region39: #{hs_layer_forward.3} parent=5 // pred_region
      %s1347 = ssub.s32 %s9, 2
      // Predicated region
      $region41: #{hs_layer_forward.3} parent=39 // pred_check
        %p1348 = pneg %p132
      $region42: #{hs_layer_forward.3} parent=39 // pred_check_branch
        %1350 = sbr.rel (%p1348) target = $region44
      $region43: #{hs_layer_forward.3} parent=39 // pred_region
        %s1351 = smul.u32 8, %s21
        %p1352 = scmp.lt.s32.totalorder %s20, 1
        %s1353 = scalar_select %p1352, %s20, 1
        %p1354 = scmp.lt.s32.totalorder %s1351, 7
        %s1355 = scalar_select %p1354, %s1351, 7
        %s1356 = smul.addr %s1353, 8
        %s1357 = sadd.s32 %s1355, %s1356
        %s1358 = smul.addr %s1357, 8
        %s1359 = scalar_lea.vmem %s3, %s1358
      $region44: #{hs_layer_forward.3} parent=39 // pred_fallthru
        _
    $region40: #{hs_layer_forward.3} parent=5 // pred_fallthru
      _
  $region6: #{hs_layer_forward.3} parent=0 // loop_footer
    %s13 = sadd.s32 1, %s9
  $region7: #{hs_layer_forward.3} parent=0 // loop_footer_branch
    %8 = sbr.rel target = $region3
  $region8: #{hs_layer_forward.3} parent=0 // loop_exit
    _

// kernel: hs_layer_forward.4
$region0: #{hs_layer_forward.4}
  #allocation0 [shape = 'u32[]', space=smem, size = 0x4, offset = 0x4, fixed_abs, tag = 'smem constant byte address 0x4 - core index']
  #allocation1 [shape = 'u32[144,128]{1,0:T(1,128)}', space=vmem, size = 0x12000, scoped, tag = 'internal scratch']
  %s0 = inlined_call_operand.vmem [shape: f32[2,512,3], index: 0, kind: input, shape index: {}]
  %s1 = inlined_call_operand.vmem [shape: f32[3,128], index: 1, kind: input, shape index: {}]
  %s2 = inlined_call_operand.vmem [shape: f32[128,32], index: 2, kind: input, shape index: {}]
  %s3 = inlined_call_operand.vmem [shape: f32[2,64,32], index: 3, kind: output, shape index: {}]
  %s4 = sld [smem:[#allocation0]]
  $region45: #{hs_layer_forward.4} parent=0
    _
  %s6 = ssub.s32 1, %s4
  %s7 = scalar_select 0, %s6, %s4
  loop: start=0, step=1, limit=4
  $region2: #{hs_layer_forward.4} parent=0 // loop_pre_header
    _
  $region3: #{hs_layer_forward.4} parent=0 // loop_header
    %s9 = sphi 0, %s13
    %p10 = scmp.ge.s32.totalorder %s9, 4
    %s16 = sphi 0, %s28
    %s17 = sphi 0, %s24
    %s18 = sphi 0, %s16
    %s19 = sphi 0, %s17
    %s20 = sphi 0, %s18
    %s21 = sphi 0, %s19
    %s33 = sphi 0, %s35
    %s36 = sphi 0, %s33
    %s37 = sphi 0, %s36
    %s53 = sphi 0, %s37
    %s57 = sphi 0, %s57
    %s59 = sphi 0, %s57
    %s60 = sphi 0, %s59
    %s74 = sphi 0, %s60
    %s78 = sphi 0, %s78
    %s80 = sphi 0, %s78
    %s81 = sphi 0, %s80
    %s95 = sphi 0, %s81
    %s103 = sphi 0, %s105
    %s106 = sphi 0, %s103
    %s107 = sphi 0, %s106
    %s123 = sphi 0, %s107
  $region4: #{hs_layer_forward.4} parent=0 // loop_header_branch
    %12 = sbr.rel (%p10) target = $region8
  $region5: #{hs_layer_forward.4} parent=0 // loop_body
    %s14 = ssub.s32 %s9, 1
    %s15 = ssub.s32 %s9, 2
    %s22 = sadd.s32 1, %s17
    %p23 = scmp.ge.s32.totalorder %s22, 1
    %s24 = scalar_select %p23, 0, %s22
    %s25 = sadd.s32 1, %s16
    %s26 = scalar_select %p23, %s25, %s16
    %p27 = scmp.ge.s32.totalorder %s26, 2
    %s28 = scalar_select %p27, 0, %s26
    %s29 = ssub.s32 %s16, %s28
    %s30 = ssub.s32 %s17, %s24
    %s31 = sor.u32 %s29, %s30
    %p32 = scmp.eq.s32.totalorder %s31, 0
    %s34 = sadd.s32 %s33, 1
    %s35 = scalar_select %p32, %s33, %s34
    %p38 = pneg %p32
    %p39 = scmp.eq.s32.totalorder %s9, 1
    %p40 = por %p38, %p39
    %p41 = scmp.ne.s32.totalorder %s33, %s36
    %p42 = scmp.eq.s32.totalorder %s9, 0
    %p43 = por %p41, %p42
    %p44 = scmp.ne.s32.totalorder %s33, %s36
    %p45 = scmp.eq.s32.totalorder %s14, 1
    %p46 = por %p44, %p45
    %p47 = scmp.ne.s32.totalorder %s36, %s37
    %p48 = scmp.eq.s32.totalorder %s14, 0
    %p49 = por %p47, %p48
    %p50 = scmp.ne.s32.totalorder %s36, %s37
    %p51 = scmp.eq.s32.totalorder %s15, 1
    %p52 = por %p50, %p51
    %p54 = scmp.ne.s32.totalorder %s37, %s53
    %p55 = scmp.eq.s32.totalorder %s15, 0
    %p56 = por %p54, %p55
    %s58 = sadd.s32 %s57, 1
    %p61 = scmp.eq.s32.totalorder %s9, 1
    %p62 = scmp.ne.s32.totalorder %s57, %s59
    %p63 = scmp.eq.s32.totalorder %s9, 0
    %p64 = por %p62, %p63
    %p65 = scmp.ne.s32.totalorder %s57, %s59
    %p66 = scmp.eq.s32.totalorder %s14, 1
    %p67 = por %p65, %p66
    %p68 = scmp.ne.s32.totalorder %s59, %s60
    %p69 = scmp.eq.s32.totalorder %s14, 0
    %p70 = por %p68, %p69
    %p71 = scmp.ne.s32.totalorder %s59, %s60
    %p72 = scmp.eq.s32.totalorder %s15, 1
    %p73 = por %p71, %p72
    %p75 = scmp.ne.s32.totalorder %s60, %s74
    %p76 = scmp.eq.s32.totalorder %s15, 0
    %p77 = por %p75, %p76
    %s79 = sadd.s32 %s78, 1
    %p82 = scmp.eq.s32.totalorder %s9, 1
    %p83 = scmp.ne.s32.totalorder %s78, %s80
    %p84 = scmp.eq.s32.totalorder %s9, 0
    %p85 = por %p83, %p84
    %p86 = scmp.ne.s32.totalorder %s78, %s80
    %p87 = scmp.eq.s32.totalorder %s14, 1
    %p88 = por %p86, %p87
    %p89 = scmp.ne.s32.totalorder %s80, %s81
    %p90 = scmp.eq.s32.totalorder %s14, 0
    %p91 = por %p89, %p90
    %p92 = scmp.ne.s32.totalorder %s80, %s81
    %p93 = scmp.eq.s32.totalorder %s15, 1
    %p94 = por %p92, %p93
    %p96 = scmp.ne.s32.totalorder %s81, %s95
    %p97 = scmp.eq.s32.totalorder %s15, 0
    %p98 = por %p96, %p97
    %s99 = ssub.s32 %s16, %s28
    %s100 = ssub.s32 %s17, %s24
    %s101 = sor.u32 %s99, %s100
    %p102 = scmp.eq.s32.totalorder %s101, 0
    %s104 = sadd.s32 %s103, 1
    %s105 = scalar_select %p102, %s103, %s104
    %p108 = pneg %p102
    %p109 = scmp.eq.s32.totalorder %s9, 1
    %p110 = por %p108, %p109
    %p111 = scmp.ne.s32.totalorder %s103, %s106
    %p112 = scmp.eq.s32.totalorder %s9, 0
    %p113 = por %p111, %p112
    %p114 = scmp.ne.s32.totalorder %s103, %s106
    %p115 = scmp.eq.s32.totalorder %s14, 1
    %p116 = por %p114, %p115
    %p117 = scmp.ne.s32.totalorder %s106, %s107
    %p118 = scmp.eq.s32.totalorder %s14, 0
    %p119 = por %p117, %p118
    %p120 = scmp.ne.s32.totalorder %s106, %s107
    %p121 = scmp.eq.s32.totalorder %s15, 1
    %p122 = por %p120, %p121
    %p124 = scmp.ne.s32.totalorder %s107, %s123
    %p125 = scmp.eq.s32.totalorder %s15, 0
    %p126 = por %p124, %p125
    %p127 = scmp.le.s32.totalorder 1, %s9
    %p128 = scmp.lt.s32.totalorder %s9, 3
    %p129 = pnand %p127, %p128
    %p130 = pneg %p129
    // Predicated region
    $region9: #{hs_layer_forward.4} parent=5 // pred_check
      _
    $region10: #{hs_layer_forward.4} parent=5 // pred_check_branch
      %132 = sbr.rel (%p129) target = $region12
    $region11: #{hs_layer_forward.4} parent=5 // pred_region
      %s133 = ssub.s32 %s9, 1
      // Predicated region
      $region13: #{hs_layer_forward.4} parent=11 // pred_check
        %p134 = pneg %p70
      $region14: #{hs_layer_forward.4} parent=11 // pred_check_branch
        %136 = sbr.rel (%p134) target = $region16
      $region15: #{hs_layer_forward.4} parent=11 // pred_region
        _
      $region16: #{hs_layer_forward.4} parent=11 // pred_fallthru
        _
      // Predicated region
      $region17: #{hs_layer_forward.4} parent=11 // pred_check
        %p137 = pneg %p91
      $region18: #{hs_layer_forward.4} parent=11 // pred_check_branch
        %139 = sbr.rel (%p137) target = $region20
      $region19: #{hs_layer_forward.4} parent=11 // pred_region
        _
      $region20: #{hs_layer_forward.4} parent=11 // pred_fallthru
        _
    $region12: #{hs_layer_forward.4} parent=5 // pred_fallthru
      _
    %p140 = scmp.lt.s32.totalorder %s9, 2
    // Predicated region
    $region21: #{hs_layer_forward.4} parent=5 // pred_check
      %p141 = pneg %p140
    $region22: #{hs_layer_forward.4} parent=5 // pred_check_branch
      %143 = sbr.rel (%p141) target = $region24
    $region23: #{hs_layer_forward.4} parent=5 // pred_region
      // Predicated region
      $region25: #{hs_layer_forward.4} parent=23 // pred_check
        %p144 = pneg %p43
      $region26: #{hs_layer_forward.4} parent=23 // pred_check_branch
        %146 = sbr.rel (%p144) target = $region28
      $region27: #{hs_layer_forward.4} parent=23 // pred_region
        %s147 = smul.u32 64, %s17
        %p148 = scmp.lt.s32.totalorder %s16, 1
        %s149 = scalar_select %p148, %s16, 1
        %p150 = scmp.lt.s32.totalorder %s147, 63
        %s151 = scalar_select %p150, %s147, 63
        %s152 = smul.addr %s149, 64
        %s153 = sadd.s32 %s151, %s152
        %s154 = smul.addr %s153, 8
        %s155 = scalar_lea.vmem %s0, %s154
        %s156 = smul.u32 64, %s17
      $region28: #{hs_layer_forward.4} parent=23 // pred_fallthru
        _
    $region24: #{hs_layer_forward.4} parent=5 // pred_fallthru
      _
    %p157 = scmp.le.s32.totalorder 1, %s9
    %p158 = scmp.lt.s32.totalorder %s9, 3
    %p159 = pnand %p157, %p158
    %p160 = pneg %p159
    // Predicated region
    $region29: #{hs_layer_forward.4} parent=5 // pred_check
      _
    $region30: #{hs_layer_forward.4} parent=5 // pred_check_branch
      %162 = sbr.rel (%p159) target = $region32
    $region31: #{hs_layer_forward.4} parent=5 // pred_region
      %s163 = ssub.s32 %s9, 1
      %s164 = smul.u32 64, %s19
      %p165 = scmp.lt.s32.totalorder %s18, 1
      %s166 = scalar_select %p165, %s18, 1
      %p167 = scmp.lt.s32.totalorder %s164, 63
      %s168 = scalar_select %p167, %s164, 63
      %s169 = smul.addr %s166, 64
      %s170 = sadd.s32 %s168, %s169
      %s171 = smul.addr %s170, 8
      %s172 = scalar_lea.vmem %s0, %s171
      %p173 = pneg %p49
      %p174 = pneg %p46
      %p175 = pneg %p70
      %p176 = pneg %p67
      %p177 = pneg %p91
      %p178 = pneg %p88
      %p179 = pneg %p119
      %p180 = pneg %p116
      %s181 = smul.u32 8, %s19
      %p182 = scmp.lt.s32.totalorder %s18, 1
      %s183 = scalar_select %p182, %s18, 1
      %p184 = scmp.lt.s32.totalorder %s181, 7
      %s185 = scalar_select %p184, %s181, 7
      %s186 = smul.addr %s183, 8
      %s187 = sadd.s32 %s185, %s186
      %s188 = smul.addr %s187, 8
      %s189 = scalar_lea.vmem %s3, %s188
      %s190 = smul.u32 64, %s19
      %p191 = scmp.lt.s32.totalorder %s18, 1
      %s192 = scalar_select %p191, %s18, 1
      %p193 = scmp.lt.s32.totalorder %s190, 63
      %s194 = scalar_select %p193, %s190, 63
      %s195 = smul.addr %s192, 64
      %s196 = sadd.s32 %s194, %s195
      %s197 = smul.addr %s196, 8
      %s198 = scalar_lea.vmem %s0, %s197
      %s199 = smul.u32 64, %s19
      %s200 = smul.u32 8, %s19
      %p201 = scmp.lt.s32.totalorder %s18, 1
      %s202 = scalar_select %p201, %s18, 1
      %p203 = scmp.lt.s32.totalorder %s200, 7
      %s204 = scalar_select %p203, %s200, 7
      %s205 = smul.addr %s202, 8
      %s206 = sadd.s32 %s204, %s205
      %s207 = smul.addr %s206, 8
      %s208 = scalar_lea.vmem %s3, %s207
      %s209 = smul.u32 8, %s19
      %v210 = vld [vmem:[%s198] sm:$0xff]
      %v211 = vld [vmem:[%s198 + $0x8] sm:$0xff]
      %v212 = vld [vmem:[%s198 + $0x10] sm:$0xff]
      %v213 = vld [vmem:[%s198 + $0x18] sm:$0xff]
      %v214 = vld [vmem:[%s198 + $0x20] sm:$0xff]
      %v215 = vld [vmem:[%s198 + $0x28] sm:$0xff]
      %v216 = vld [vmem:[%s198 + $0x30] sm:$0xff]
      %v217 = vld [vmem:[%s198 + $0x38] sm:$0xff]
      %v218 = vld [vmem:[%s198 + $0x40] sm:$0xff]
      %v219 = vld [vmem:[%s198 + $0x48] sm:$0xff]
      %v220 = vld [vmem:[%s198 + $0x50] sm:$0xff]
      %v221 = vld [vmem:[%s198 + $0x58] sm:$0xff]
      %v222 = vld [vmem:[%s198 + $0x60] sm:$0xff]
      %v223 = vld [vmem:[%s198 + $0x68] sm:$0xff]
      %v224 = vld [vmem:[%s198 + $0x70] sm:$0xff]
      %v225 = vld [vmem:[%s198 + $0x78] sm:$0xff]
      %v226 = vld [vmem:[%s198 + $0x80] sm:$0xff]
      %v227 = vld [vmem:[%s198 + $0x88] sm:$0xff]
      %v228 = vld [vmem:[%s198 + $0x90] sm:$0xff]
      %v229 = vld [vmem:[%s198 + $0x98] sm:$0xff]
      %v230 = vld [vmem:[%s198 + $0xa0] sm:$0xff]
      %v231 = vld [vmem:[%s198 + $0xa8] sm:$0xff]
      %v232 = vld [vmem:[%s198 + $0xb0] sm:$0xff]
      %v233 = vld [vmem:[%s198 + $0xb8] sm:$0xff]
      %v234 = vld [vmem:[%s198 + $0xc0] sm:$0xff]
      %v235 = vld [vmem:[%s198 + $0xc8] sm:$0xff]
      %v236 = vld [vmem:[%s198 + $0xd0] sm:$0xff]
      %v237 = vld [vmem:[%s198 + $0xd8] sm:$0xff]
      %v238 = vld [vmem:[%s198 + $0xe0] sm:$0xff]
      %v239 = vld [vmem:[%s198 + $0xe8] sm:$0xff]
      %v240 = vld [vmem:[%s198 + $0xf0] sm:$0xff]
      %v241 = vld [vmem:[%s198 + $0xf8] sm:$0xff]
      %v242 = vld [vmem:[%s198 + $0x100] sm:$0xff]
      %v243 = vld [vmem:[%s198 + $0x108] sm:$0xff]
      %v244 = vld [vmem:[%s198 + $0x110] sm:$0xff]
      %v245 = vld [vmem:[%s198 + $0x118] sm:$0xff]
      %v246 = vld [vmem:[%s198 + $0x120] sm:$0xff]
      %v247 = vld [vmem:[%s198 + $0x128] sm:$0xff]
      %v248 = vld [vmem:[%s198 + $0x130] sm:$0xff]
      %v249 = vld [vmem:[%s198 + $0x138] sm:$0xff]
      %v250 = vld [vmem:[%s198 + $0x140] sm:$0xff]
      %v251 = vld [vmem:[%s198 + $0x148] sm:$0xff]
      %v252 = vld [vmem:[%s198 + $0x150] sm:$0xff]
      %v253 = vld [vmem:[%s198 + $0x158] sm:$0xff]
      %v254 = vld [vmem:[%s198 + $0x160] sm:$0xff]
      %v255 = vld [vmem:[%s198 + $0x168] sm:$0xff]
      %v256 = vld [vmem:[%s198 + $0x170] sm:$0xff]
      %v257 = vld [vmem:[%s198 + $0x178] sm:$0xff]
      %v258 = vld [vmem:[%s198 + $0x180] sm:$0xff]
      %v259 = vld [vmem:[%s198 + $0x188] sm:$0xff]
      %v260 = vld [vmem:[%s198 + $0x190] sm:$0xff]
      %v261 = vld [vmem:[%s198 + $0x198] sm:$0xff]
      %v262 = vld [vmem:[%s198 + $0x1a0] sm:$0xff]
      %v263 = vld [vmem:[%s198 + $0x1a8] sm:$0xff]
      %v264 = vld [vmem:[%s198 + $0x1b0] sm:$0xff]
      %v265 = vld [vmem:[%s198 + $0x1b8] sm:$0xff]
      %v266 = vld [vmem:[%s198 + $0x1c0] sm:$0xff]
      %v267 = vld [vmem:[%s198 + $0x1c8] sm:$0xff]
      %v268 = vld [vmem:[%s198 + $0x1d0] sm:$0xff]
      %v269 = vld [vmem:[%s198 + $0x1d8] sm:$0xff]
      %v270 = vld [vmem:[%s198 + $0x1e0] sm:$0xff]
      %v271 = vld [vmem:[%s198 + $0x1e8] sm:$0xff]
      %v272 = vld [vmem:[%s198 + $0x1f0] sm:$0xff]
      %v273 = vld [vmem:[%s198 + $0x1f8] sm:$0xff]
      %v274 = vmul.f32 %v210, %v210
      %v275 = vmul.f32 %v211, %v211
      %v276 = vmul.f32 %v212, %v212
      %v277 = vmul.f32 %v213, %v213
      %v278 = vmul.f32 %v214, %v214
      %v279 = vmul.f32 %v215, %v215
      %v280 = vmul.f32 %v216, %v216
      %v281 = vmul.f32 %v217, %v217
      %v282 = vmul.f32 %v218, %v218
      %v283 = vmul.f32 %v219, %v219
      %v284 = vmul.f32 %v220, %v220
      %v285 = vmul.f32 %v221, %v221
      %v286 = vmul.f32 %v222, %v222
      %v287 = vmul.f32 %v223, %v223
      %v288 = vmul.f32 %v224, %v224
      %v289 = vmul.f32 %v225, %v225
      %v290 = vmul.f32 %v226, %v226
      %v291 = vmul.f32 %v227, %v227
      %v292 = vmul.f32 %v228, %v228
      %v293 = vmul.f32 %v229, %v229
      %v294 = vmul.f32 %v230, %v230
      %v295 = vmul.f32 %v231, %v231
      %v296 = vmul.f32 %v232, %v232
      %v297 = vmul.f32 %v233, %v233
      %v298 = vmul.f32 %v234, %v234
      %v299 = vmul.f32 %v235, %v235
      %v300 = vmul.f32 %v236, %v236
      %v301 = vmul.f32 %v237, %v237
      %v302 = vmul.f32 %v238, %v238
      %v303 = vmul.f32 %v239, %v239
      %v304 = vmul.f32 %v240, %v240
      %v305 = vmul.f32 %v241, %v241
      %v306 = vmul.f32 %v242, %v242
      %v307 = vmul.f32 %v243, %v243
      %v308 = vmul.f32 %v244, %v244
      %v309 = vmul.f32 %v245, %v245
      %v310 = vmul.f32 %v246, %v246
      %v311 = vmul.f32 %v247, %v247
      %v312 = vmul.f32 %v248, %v248
      %v313 = vmul.f32 %v249, %v249
      %v314 = vmul.f32 %v250, %v250
      %v315 = vmul.f32 %v251, %v251
      %v316 = vmul.f32 %v252, %v252
      %v317 = vmul.f32 %v253, %v253
      %v318 = vmul.f32 %v254, %v254
      %v319 = vmul.f32 %v255, %v255
      %v320 = vmul.f32 %v256, %v256
      %v321 = vmul.f32 %v257, %v257
      %v322 = vmul.f32 %v258, %v258
      %v323 = vmul.f32 %v259, %v259
      %v324 = vmul.f32 %v260, %v260
      %v325 = vmul.f32 %v261, %v261
      %v326 = vmul.f32 %v262, %v262
      %v327 = vmul.f32 %v263, %v263
      %v328 = vmul.f32 %v264, %v264
      %v329 = vmul.f32 %v265, %v265
      %v330 = vmul.f32 %v266, %v266
      %v331 = vmul.f32 %v267, %v267
      %v332 = vmul.f32 %v268, %v268
      %v333 = vmul.f32 %v269, %v269
      %v334 = vmul.f32 %v270, %v270
      %v335 = vmul.f32 %v271, %v271
      %v336 = vmul.f32 %v272, %v272
      %v337 = vmul.f32 %v273, %v273
      %vm338 = vcmask 23552
      %v339 = vsel %vm338, %v274, 0.0
      %340 = vadd.xlane.f32.xlu0 %v339
      %v341 = vpop.xlane.xlu0 %340
      %v342 = vsel %vm338, %v275, 0.0
      %343 = vadd.xlane.f32.xlu0 %v342
      %v344 = vpop.xlane.xlu0 %343
      %v345 = vsel %vm338, %v276, 0.0
      %346 = vadd.xlane.f32.xlu0 %v345
      %v347 = vpop.xlane.xlu0 %346
      %v348 = vsel %vm338, %v277, 0.0
      %349 = vadd.xlane.f32.xlu0 %v348
      %v350 = vpop.xlane.xlu0 %349
      %v351 = vsel %vm338, %v278, 0.0
      %352 = vadd.xlane.f32.xlu0 %v351
      %v353 = vpop.xlane.xlu0 %352
      %v354 = vsel %vm338, %v279, 0.0
      %355 = vadd.xlane.f32.xlu0 %v354
      %v356 = vpop.xlane.xlu0 %355
      %v357 = vsel %vm338, %v280, 0.0
      %358 = vadd.xlane.f32.xlu0 %v357
      %v359 = vpop.xlane.xlu0 %358
      %v360 = vsel %vm338, %v281, 0.0
      %361 = vadd.xlane.f32.xlu0 %v360
      %v362 = vpop.xlane.xlu0 %361
      %v363 = vsel %vm338, %v282, 0.0
      %364 = vadd.xlane.f32.xlu0 %v363
      %v365 = vpop.xlane.xlu0 %364
      %v366 = vsel %vm338, %v283, 0.0
      %367 = vadd.xlane.f32.xlu0 %v366
      %v368 = vpop.xlane.xlu0 %367
      %v369 = vsel %vm338, %v284, 0.0
      %370 = vadd.xlane.f32.xlu0 %v369
      %v371 = vpop.xlane.xlu0 %370
      %v372 = vsel %vm338, %v285, 0.0
      %373 = vadd.xlane.f32.xlu0 %v372
      %v374 = vpop.xlane.xlu0 %373
      %v375 = vsel %vm338, %v286, 0.0
      %376 = vadd.xlane.f32.xlu0 %v375
      %v377 = vpop.xlane.xlu0 %376
      %v378 = vsel %vm338, %v287, 0.0
      %379 = vadd.xlane.f32.xlu0 %v378
      %v380 = vpop.xlane.xlu0 %379
      %v381 = vsel %vm338, %v288, 0.0
      %382 = vadd.xlane.f32.xlu0 %v381
      %v383 = vpop.xlane.xlu0 %382
      %v384 = vsel %vm338, %v289, 0.0
      %385 = vadd.xlane.f32.xlu0 %v384
      %v386 = vpop.xlane.xlu0 %385
      %v387 = vsel %vm338, %v290, 0.0
      %388 = vadd.xlane.f32.xlu0 %v387
      %v389 = vpop.xlane.xlu0 %388
      %v390 = vsel %vm338, %v291, 0.0
      %391 = vadd.xlane.f32.xlu0 %v390
      %v392 = vpop.xlane.xlu0 %391
      %v393 = vsel %vm338, %v292, 0.0
      %394 = vadd.xlane.f32.xlu0 %v393
      %v395 = vpop.xlane.xlu0 %394
      %v396 = vsel %vm338, %v293, 0.0
      %397 = vadd.xlane.f32.xlu0 %v396
      %v398 = vpop.xlane.xlu0 %397
      %v399 = vsel %vm338, %v294, 0.0
      %400 = vadd.xlane.f32.xlu0 %v399
      %v401 = vpop.xlane.xlu0 %400
      %v402 = vsel %vm338, %v295, 0.0
      %403 = vadd.xlane.f32.xlu0 %v402
      %v404 = vpop.xlane.xlu0 %403
      %v405 = vsel %vm338, %v296, 0.0
      %406 = vadd.xlane.f32.xlu0 %v405
      %v407 = vpop.xlane.xlu0 %406
      %v408 = vsel %vm338, %v297, 0.0
      %409 = vadd.xlane.f32.xlu0 %v408
      %v410 = vpop.xlane.xlu0 %409
      %v411 = vsel %vm338, %v298, 0.0
      %412 = vadd.xlane.f32.xlu0 %v411
      %v413 = vpop.xlane.xlu0 %412
      %v414 = vsel %vm338, %v299, 0.0
      %415 = vadd.xlane.f32.xlu0 %v414
      %v416 = vpop.xlane.xlu0 %415
      %v417 = vsel %vm338, %v300, 0.0
      %418 = vadd.xlane.f32.xlu0 %v417
      %v419 = vpop.xlane.xlu0 %418
      %v420 = vsel %vm338, %v301, 0.0
      %421 = vadd.xlane.f32.xlu0 %v420
      %v422 = vpop.xlane.xlu0 %421
      %v423 = vsel %vm338, %v302, 0.0
      %424 = vadd.xlane.f32.xlu0 %v423
      %v425 = vpop.xlane.xlu0 %424
      %v426 = vsel %vm338, %v303, 0.0
      %427 = vadd.xlane.f32.xlu0 %v426
      %v428 = vpop.xlane.xlu0 %427
      %v429 = vsel %vm338, %v304, 0.0
      %430 = vadd.xlane.f32.xlu0 %v429
      %v431 = vpop.xlane.xlu0 %430
      %v432 = vsel %vm338, %v305, 0.0
      %433 = vadd.xlane.f32.xlu0 %v432
      %v434 = vpop.xlane.xlu0 %433
      %v435 = vsel %vm338, %v306, 0.0
      %436 = vadd.xlane.f32.xlu0 %v435
      %v437 = vpop.xlane.xlu0 %436
      %v438 = vsel %vm338, %v307, 0.0
      %439 = vadd.xlane.f32.xlu0 %v438
      %v440 = vpop.xlane.xlu0 %439
      %v441 = vsel %vm338, %v308, 0.0
      %442 = vadd.xlane.f32.xlu0 %v441
      %v443 = vpop.xlane.xlu0 %442
      %v444 = vsel %vm338, %v309, 0.0
      %445 = vadd.xlane.f32.xlu0 %v444
      %v446 = vpop.xlane.xlu0 %445
      %v447 = vsel %vm338, %v310, 0.0
      %448 = vadd.xlane.f32.xlu0 %v447
      %v449 = vpop.xlane.xlu0 %448
      %v450 = vsel %vm338, %v311, 0.0
      %451 = vadd.xlane.f32.xlu0 %v450
      %v452 = vpop.xlane.xlu0 %451
      %v453 = vsel %vm338, %v312, 0.0
      %454 = vadd.xlane.f32.xlu0 %v453
      %v455 = vpop.xlane.xlu0 %454
      %v456 = vsel %vm338, %v313, 0.0
      %457 = vadd.xlane.f32.xlu0 %v456
      %v458 = vpop.xlane.xlu0 %457
      %v459 = vsel %vm338, %v314, 0.0
      %460 = vadd.xlane.f32.xlu0 %v459
      %v461 = vpop.xlane.xlu0 %460
      %v462 = vsel %vm338, %v315, 0.0
      %463 = vadd.xlane.f32.xlu0 %v462
      %v464 = vpop.xlane.xlu0 %463
      %v465 = vsel %vm338, %v316, 0.0
      %466 = vadd.xlane.f32.xlu0 %v465
      %v467 = vpop.xlane.xlu0 %466
      %v468 = vsel %vm338, %v317, 0.0
      %469 = vadd.xlane.f32.xlu0 %v468
      %v470 = vpop.xlane.xlu0 %469
      %v471 = vsel %vm338, %v318, 0.0
      %472 = vadd.xlane.f32.xlu0 %v471
      %v473 = vpop.xlane.xlu0 %472
      %v474 = vsel %vm338, %v319, 0.0
      %475 = vadd.xlane.f32.xlu0 %v474
      %v476 = vpop.xlane.xlu0 %475
      %v477 = vsel %vm338, %v320, 0.0
      %478 = vadd.xlane.f32.xlu0 %v477
      %v479 = vpop.xlane.xlu0 %478
      %v480 = vsel %vm338, %v321, 0.0
      %481 = vadd.xlane.f32.xlu0 %v480
      %v482 = vpop.xlane.xlu0 %481
      %v483 = vsel %vm338, %v322, 0.0
      %484 = vadd.xlane.f32.xlu0 %v483
      %v485 = vpop.xlane.xlu0 %484
      %v486 = vsel %vm338, %v323, 0.0
      %487 = vadd.xlane.f32.xlu0 %v486
      %v488 = vpop.xlane.xlu0 %487
      %v489 = vsel %vm338, %v324, 0.0
      %490 = vadd.xlane.f32.xlu0 %v489
      %v491 = vpop.xlane.xlu0 %490
      %v492 = vsel %vm338, %v325, 0.0
      %493 = vadd.xlane.f32.xlu0 %v492
      %v494 = vpop.xlane.xlu0 %493
      %v495 = vsel %vm338, %v326, 0.0
      %496 = vadd.xlane.f32.xlu0 %v495
      %v497 = vpop.xlane.xlu0 %496
      %v498 = vsel %vm338, %v327, 0.0
      %499 = vadd.xlane.f32.xlu0 %v498
      %v500 = vpop.xlane.xlu0 %499
      %v501 = vsel %vm338, %v328, 0.0
      %502 = vadd.xlane.f32.xlu0 %v501
      %v503 = vpop.xlane.xlu0 %502
      %v504 = vsel %vm338, %v329, 0.0
      %505 = vadd.xlane.f32.xlu0 %v504
      %v506 = vpop.xlane.xlu0 %505
      %v507 = vsel %vm338, %v330, 0.0
      %508 = vadd.xlane.f32.xlu0 %v507
      %v509 = vpop.xlane.xlu0 %508
      %v510 = vsel %vm338, %v331, 0.0
      %511 = vadd.xlane.f32.xlu0 %v510
      %v512 = vpop.xlane.xlu0 %511
      %v513 = vsel %vm338, %v332, 0.0
      %514 = vadd.xlane.f32.xlu0 %v513
      %v515 = vpop.xlane.xlu0 %514
      %v516 = vsel %vm338, %v333, 0.0
      %517 = vadd.xlane.f32.xlu0 %v516
      %v518 = vpop.xlane.xlu0 %517
      %v519 = vsel %vm338, %v334, 0.0
      %520 = vadd.xlane.f32.xlu0 %v519
      %v521 = vpop.xlane.xlu0 %520
      %v522 = vsel %vm338, %v335, 0.0
      %523 = vadd.xlane.f32.xlu0 %v522
      %v524 = vpop.xlane.xlu0 %523
      %v525 = vsel %vm338, %v336, 0.0
      %526 = vadd.xlane.f32.xlu0 %v525
      %v527 = vpop.xlane.xlu0 %526
      %v528 = vsel %vm338, %v337, 0.0
      %529 = vadd.xlane.f32.xlu0 %v528
      %v530 = vpop.xlane.xlu0 %529
      %v531 = vrsqrt.pop %v341
      %v532 = vmul.f32 %v341, %v531
      %vm533 = vcmp.eq.f32.partialorder %v341, inf
      %v534 = vsel %vm533, %v341, %v532
      %vm535 = vcmp.eq.f32.partialorder %v341, 0.0
      %v536 = vand.u32 %v341, 2147483648
      %v537 = vsel %vm535, %v536, %v534
      %v538 = vrsqrt.pop %v344
      %v539 = vmul.f32 %v344, %v538
      %vm540 = vcmp.eq.f32.partialorder %v344, inf
      %v541 = vsel %vm540, %v344, %v539
      %vm542 = vcmp.eq.f32.partialorder %v344, 0.0
      %v543 = vand.u32 %v344, 2147483648
      %v544 = vsel %vm542, %v543, %v541
      %v545 = vrsqrt.pop %v347
      %v546 = vmul.f32 %v347, %v545
      %vm547 = vcmp.eq.f32.partialorder %v347, inf
      %v548 = vsel %vm547, %v347, %v546
      %vm549 = vcmp.eq.f32.partialorder %v347, 0.0
      %v550 = vand.u32 %v347, 2147483648
      %v551 = vsel %vm549, %v550, %v548
      %v552 = vrsqrt.pop %v350
      %v553 = vmul.f32 %v350, %v552
      %vm554 = vcmp.eq.f32.partialorder %v350, inf
      %v555 = vsel %vm554, %v350, %v553
      %vm556 = vcmp.eq.f32.partialorder %v350, 0.0
      %v557 = vand.u32 %v350, 2147483648
      %v558 = vsel %vm556, %v557, %v555
      %v559 = vrsqrt.pop %v353
      %v560 = vmul.f32 %v353, %v559
      %vm561 = vcmp.eq.f32.partialorder %v353, inf
      %v562 = vsel %vm561, %v353, %v560
      %vm563 = vcmp.eq.f32.partialorder %v353, 0.0
      %v564 = vand.u32 %v353, 2147483648
      %v565 = vsel %vm563, %v564, %v562
      %v566 = vrsqrt.pop %v356
      %v567 = vmul.f32 %v356, %v566
      %vm568 = vcmp.eq.f32.partialorder %v356, inf
      %v569 = vsel %vm568, %v356, %v567
      %vm570 = vcmp.eq.f32.partialorder %v356, 0.0
      %v571 = vand.u32 %v356, 2147483648
      %v572 = vsel %vm570, %v571, %v569
      %v573 = vrsqrt.pop %v359
      %v574 = vmul.f32 %v359, %v573
      %vm575 = vcmp.eq.f32.partialorder %v359, inf
      %v576 = vsel %vm575, %v359, %v574
      %vm577 = vcmp.eq.f32.partialorder %v359, 0.0
      %v578 = vand.u32 %v359, 2147483648
      %v579 = vsel %vm577, %v578, %v576
      %v580 = vrsqrt.pop %v362
      %v581 = vmul.f32 %v362, %v580
      %vm582 = vcmp.eq.f32.partialorder %v362, inf
      %v583 = vsel %vm582, %v362, %v581
      %vm584 = vcmp.eq.f32.partialorder %v362, 0.0
      %v585 = vand.u32 %v362, 2147483648
      %v586 = vsel %vm584, %v585, %v583
      %v587 = vrsqrt.pop %v365
      %v588 = vmul.f32 %v365, %v587
      %vm589 = vcmp.eq.f32.partialorder %v365, inf
      %v590 = vsel %vm589, %v365, %v588
      %vm591 = vcmp.eq.f32.partialorder %v365, 0.0
      %v592 = vand.u32 %v365, 2147483648
      %v593 = vsel %vm591, %v592, %v590
      %v594 = vrsqrt.pop %v368
      %v595 = vmul.f32 %v368, %v594
      %vm596 = vcmp.eq.f32.partialorder %v368, inf
      %v597 = vsel %vm596, %v368, %v595
      %vm598 = vcmp.eq.f32.partialorder %v368, 0.0
      %v599 = vand.u32 %v368, 2147483648
      %v600 = vsel %vm598, %v599, %v597
      %v601 = vrsqrt.pop %v371
      %v602 = vmul.f32 %v371, %v601
      %vm603 = vcmp.eq.f32.partialorder %v371, inf
      %v604 = vsel %vm603, %v371, %v602
      %vm605 = vcmp.eq.f32.partialorder %v371, 0.0
      %v606 = vand.u32 %v371, 2147483648
      %v607 = vsel %vm605, %v606, %v604
      %v608 = vrsqrt.pop %v374
      %v609 = vmul.f32 %v374, %v608
      %vm610 = vcmp.eq.f32.partialorder %v374, inf
      %v611 = vsel %vm610, %v374, %v609
      %vm612 = vcmp.eq.f32.partialorder %v374, 0.0
      %v613 = vand.u32 %v374, 2147483648
      %v614 = vsel %vm612, %v613, %v611
      %v615 = vrsqrt.pop %v377
      %v616 = vmul.f32 %v377, %v615
      %vm617 = vcmp.eq.f32.partialorder %v377, inf
      %v618 = vsel %vm617, %v377, %v616
      %vm619 = vcmp.eq.f32.partialorder %v377, 0.0
      %v620 = vand.u32 %v377, 2147483648
      %v621 = vsel %vm619, %v620, %v618
      %v622 = vrsqrt.pop %v380
      %v623 = vmul.f32 %v380, %v622
      %vm624 = vcmp.eq.f32.partialorder %v380, inf
      %v625 = vsel %vm624, %v380, %v623
      %vm626 = vcmp.eq.f32.partialorder %v380, 0.0
      %v627 = vand.u32 %v380, 2147483648
      %v628 = vsel %vm626, %v627, %v625
      %v629 = vrsqrt.pop %v383
      %v630 = vmul.f32 %v383, %v629
      %vm631 = vcmp.eq.f32.partialorder %v383, inf
      %v632 = vsel %vm631, %v383, %v630
      %vm633 = vcmp.eq.f32.partialorder %v383, 0.0
      %v634 = vand.u32 %v383, 2147483648
      %v635 = vsel %vm633, %v634, %v632
      %v636 = vrsqrt.pop %v386
      %v637 = vmul.f32 %v386, %v636
      %vm638 = vcmp.eq.f32.partialorder %v386, inf
      %v639 = vsel %vm638, %v386, %v637
      %vm640 = vcmp.eq.f32.partialorder %v386, 0.0
      %v641 = vand.u32 %v386, 2147483648
      %v642 = vsel %vm640, %v641, %v639
      %v643 = vrsqrt.pop %v389
      %v644 = vmul.f32 %v389, %v643
      %vm645 = vcmp.eq.f32.partialorder %v389, inf
      %v646 = vsel %vm645, %v389, %v644
      %vm647 = vcmp.eq.f32.partialorder %v389, 0.0
      %v648 = vand.u32 %v389, 2147483648
      %v649 = vsel %vm647, %v648, %v646
      %v650 = vrsqrt.pop %v392
      %v651 = vmul.f32 %v392, %v650
      %vm652 = vcmp.eq.f32.partialorder %v392, inf
      %v653 = vsel %vm652, %v392, %v651
      %vm654 = vcmp.eq.f32.partialorder %v392, 0.0
      %v655 = vand.u32 %v392, 2147483648
      %v656 = vsel %vm654, %v655, %v653
      %v657 = vrsqrt.pop %v395
      %v658 = vmul.f32 %v395, %v657
      %vm659 = vcmp.eq.f32.partialorder %v395, inf
      %v660 = vsel %vm659, %v395, %v658
      %vm661 = vcmp.eq.f32.partialorder %v395, 0.0
      %v662 = vand.u32 %v395, 2147483648
      %v663 = vsel %vm661, %v662, %v660
      %v664 = vrsqrt.pop %v398
      %v665 = vmul.f32 %v398, %v664
      %vm666 = vcmp.eq.f32.partialorder %v398, inf
      %v667 = vsel %vm666, %v398, %v665
      %vm668 = vcmp.eq.f32.partialorder %v398, 0.0
      %v669 = vand.u32 %v398, 2147483648
      %v670 = vsel %vm668, %v669, %v667
      %v671 = vrsqrt.pop %v401
      %v672 = vmul.f32 %v401, %v671
      %vm673 = vcmp.eq.f32.partialorder %v401, inf
      %v674 = vsel %vm673, %v401, %v672
      %vm675 = vcmp.eq.f32.partialorder %v401, 0.0
      %v676 = vand.u32 %v401, 2147483648
      %v677 = vsel %vm675, %v676, %v674
      %v678 = vrsqrt.pop %v404
      %v679 = vmul.f32 %v404, %v678
      %vm680 = vcmp.eq.f32.partialorder %v404, inf
      %v681 = vsel %vm680, %v404, %v679
      %vm682 = vcmp.eq.f32.partialorder %v404, 0.0
      %v683 = vand.u32 %v404, 2147483648
      %v684 = vsel %vm682, %v683, %v681
      %v685 = vrsqrt.pop %v407
      %v686 = vmul.f32 %v407, %v685
      %vm687 = vcmp.eq.f32.partialorder %v407, inf
      %v688 = vsel %vm687, %v407, %v686
      %vm689 = vcmp.eq.f32.partialorder %v407, 0.0
      %v690 = vand.u32 %v407, 2147483648
      %v691 = vsel %vm689, %v690, %v688
      %v692 = vrsqrt.pop %v410
      %v693 = vmul.f32 %v410, %v692
      %vm694 = vcmp.eq.f32.partialorder %v410, inf
      %v695 = vsel %vm694, %v410, %v693
      %vm696 = vcmp.eq.f32.partialorder %v410, 0.0
      %v697 = vand.u32 %v410, 2147483648
      %v698 = vsel %vm696, %v697, %v695
      %v699 = vrsqrt.pop %v413
      %v700 = vmul.f32 %v413, %v699
      %vm701 = vcmp.eq.f32.partialorder %v413, inf
      %v702 = vsel %vm701, %v413, %v700
      %vm703 = vcmp.eq.f32.partialorder %v413, 0.0
      %v704 = vand.u32 %v413, 2147483648
      %v705 = vsel %vm703, %v704, %v702
      %v706 = vrsqrt.pop %v416
      %v707 = vmul.f32 %v416, %v706
      %vm708 = vcmp.eq.f32.partialorder %v416, inf
      %v709 = vsel %vm708, %v416, %v707
      %vm710 = vcmp.eq.f32.partialorder %v416, 0.0
      %v711 = vand.u32 %v416, 2147483648
      %v712 = vsel %vm710, %v711, %v709
      %v713 = vrsqrt.pop %v419
      %v714 = vmul.f32 %v419, %v713
      %vm715 = vcmp.eq.f32.partialorder %v419, inf
      %v716 = vsel %vm715, %v419, %v714
      %vm717 = vcmp.eq.f32.partialorder %v419, 0.0
      %v718 = vand.u32 %v419, 2147483648
      %v719 = vsel %vm717, %v718, %v716
      %v720 = vrsqrt.pop %v422
      %v721 = vmul.f32 %v422, %v720
      %vm722 = vcmp.eq.f32.partialorder %v422, inf
      %v723 = vsel %vm722, %v422, %v721
      %vm724 = vcmp.eq.f32.partialorder %v422, 0.0
      %v725 = vand.u32 %v422, 2147483648
      %v726 = vsel %vm724, %v725, %v723
      %v727 = vrsqrt.pop %v425
      %v728 = vmul.f32 %v425, %v727
      %vm729 = vcmp.eq.f32.partialorder %v425, inf
      %v730 = vsel %vm729, %v425, %v728
      %vm731 = vcmp.eq.f32.partialorder %v425, 0.0
      %v732 = vand.u32 %v425, 2147483648
      %v733 = vsel %vm731, %v732, %v730
      %v734 = vrsqrt.pop %v428
      %v735 = vmul.f32 %v428, %v734
      %vm736 = vcmp.eq.f32.partialorder %v428, inf
      %v737 = vsel %vm736, %v428, %v735
      %vm738 = vcmp.eq.f32.partialorder %v428, 0.0
      %v739 = vand.u32 %v428, 2147483648
      %v740 = vsel %vm738, %v739, %v737
      %v741 = vrsqrt.pop %v431
      %v742 = vmul.f32 %v431, %v741
      %vm743 = vcmp.eq.f32.partialorder %v431, inf
      %v744 = vsel %vm743, %v431, %v742
      %vm745 = vcmp.eq.f32.partialorder %v431, 0.0
      %v746 = vand.u32 %v431, 2147483648
      %v747 = vsel %vm745, %v746, %v744
      %v748 = vrsqrt.pop %v434
      %v749 = vmul.f32 %v434, %v748
      %vm750 = vcmp.eq.f32.partialorder %v434, inf
      %v751 = vsel %vm750, %v434, %v749
      %vm752 = vcmp.eq.f32.partialorder %v434, 0.0
      %v753 = vand.u32 %v434, 2147483648
      %v754 = vsel %vm752, %v753, %v751
      %v755 = vrsqrt.pop %v437
      %v756 = vmul.f32 %v437, %v755
      %vm757 = vcmp.eq.f32.partialorder %v437, inf
      %v758 = vsel %vm757, %v437, %v756
      %vm759 = vcmp.eq.f32.partialorder %v437, 0.0
      %v760 = vand.u32 %v437, 2147483648
      %v761 = vsel %vm759, %v760, %v758
      %v762 = vrsqrt.pop %v440
      %v763 = vmul.f32 %v440, %v762
      %vm764 = vcmp.eq.f32.partialorder %v440, inf
      %v765 = vsel %vm764, %v440, %v763
      %vm766 = vcmp.eq.f32.partialorder %v440, 0.0
      %v767 = vand.u32 %v440, 2147483648
      %v768 = vsel %vm766, %v767, %v765
      %v769 = vrsqrt.pop %v443
      %v770 = vmul.f32 %v443, %v769
      %vm771 = vcmp.eq.f32.partialorder %v443, inf
      %v772 = vsel %vm771, %v443, %v770
      %vm773 = vcmp.eq.f32.partialorder %v443, 0.0
      %v774 = vand.u32 %v443, 2147483648
      %v775 = vsel %vm773, %v774, %v772
      %v776 = vrsqrt.pop %v446
      %v777 = vmul.f32 %v446, %v776
      %vm778 = vcmp.eq.f32.partialorder %v446, inf
      %v779 = vsel %vm778, %v446, %v777
      %vm780 = vcmp.eq.f32.partialorder %v446, 0.0
      %v781 = vand.u32 %v446, 2147483648
      %v782 = vsel %vm780, %v781, %v779
      %v783 = vrsqrt.pop %v449
      %v784 = vmul.f32 %v449, %v783
      %vm785 = vcmp.eq.f32.partialorder %v449, inf
      %v786 = vsel %vm785, %v449, %v784
      %vm787 = vcmp.eq.f32.partialorder %v449, 0.0
      %v788 = vand.u32 %v449, 2147483648
      %v789 = vsel %vm787, %v788, %v786
      %v790 = vrsqrt.pop %v452
      %v791 = vmul.f32 %v452, %v790
      %vm792 = vcmp.eq.f32.partialorder %v452, inf
      %v793 = vsel %vm792, %v452, %v791
      %vm794 = vcmp.eq.f32.partialorder %v452, 0.0
      %v795 = vand.u32 %v452, 2147483648
      %v796 = vsel %vm794, %v795, %v793
      %v797 = vrsqrt.pop %v455
      %v798 = vmul.f32 %v455, %v797
      %vm799 = vcmp.eq.f32.partialorder %v455, inf
      %v800 = vsel %vm799, %v455, %v798
      %vm801 = vcmp.eq.f32.partialorder %v455, 0.0
      %v802 = vand.u32 %v455, 2147483648
      %v803 = vsel %vm801, %v802, %v800
      %v804 = vrsqrt.pop %v458
      %v805 = vmul.f32 %v458, %v804
      %vm806 = vcmp.eq.f32.partialorder %v458, inf
      %v807 = vsel %vm806, %v458, %v805
      %vm808 = vcmp.eq.f32.partialorder %v458, 0.0
      %v809 = vand.u32 %v458, 2147483648
      %v810 = vsel %vm808, %v809, %v807
      %v811 = vrsqrt.pop %v461
      %v812 = vmul.f32 %v461, %v811
      %vm813 = vcmp.eq.f32.partialorder %v461, inf
      %v814 = vsel %vm813, %v461, %v812
      %vm815 = vcmp.eq.f32.partialorder %v461, 0.0
      %v816 = vand.u32 %v461, 2147483648
      %v817 = vsel %vm815, %v816, %v814
      %v818 = vrsqrt.pop %v464
      %v819 = vmul.f32 %v464, %v818
      %vm820 = vcmp.eq.f32.partialorder %v464, inf
      %v821 = vsel %vm820, %v464, %v819
      %vm822 = vcmp.eq.f32.partialorder %v464, 0.0
      %v823 = vand.u32 %v464, 2147483648
      %v824 = vsel %vm822, %v823, %v821
      %v825 = vrsqrt.pop %v467
      %v826 = vmul.f32 %v467, %v825
      %vm827 = vcmp.eq.f32.partialorder %v467, inf
      %v828 = vsel %vm827, %v467, %v826
      %vm829 = vcmp.eq.f32.partialorder %v467, 0.0
      %v830 = vand.u32 %v467, 2147483648
      %v831 = vsel %vm829, %v830, %v828
      %v832 = vrsqrt.pop %v470
      %v833 = vmul.f32 %v470, %v832
      %vm834 = vcmp.eq.f32.partialorder %v470, inf
      %v835 = vsel %vm834, %v470, %v833
      %vm836 = vcmp.eq.f32.partialorder %v470, 0.0
      %v837 = vand.u32 %v470, 2147483648
      %v838 = vsel %vm836, %v837, %v835
      %v839 = vrsqrt.pop %v473
      %v840 = vmul.f32 %v473, %v839
      %vm841 = vcmp.eq.f32.partialorder %v473, inf
      %v842 = vsel %vm841, %v473, %v840
      %vm843 = vcmp.eq.f32.partialorder %v473, 0.0
      %v844 = vand.u32 %v473, 2147483648
      %v845 = vsel %vm843, %v844, %v842
      %v846 = vrsqrt.pop %v476
      %v847 = vmul.f32 %v476, %v846
      %vm848 = vcmp.eq.f32.partialorder %v476, inf
      %v849 = vsel %vm848, %v476, %v847
      %vm850 = vcmp.eq.f32.partialorder %v476, 0.0
      %v851 = vand.u32 %v476, 2147483648
      %v852 = vsel %vm850, %v851, %v849
      %v853 = vrsqrt.pop %v479
      %v854 = vmul.f32 %v479, %v853
      %vm855 = vcmp.eq.f32.partialorder %v479, inf
      %v856 = vsel %vm855, %v479, %v854
      %vm857 = vcmp.eq.f32.partialorder %v479, 0.0
      %v858 = vand.u32 %v479, 2147483648
      %v859 = vsel %vm857, %v858, %v856
      %v860 = vrsqrt.pop %v482
      %v861 = vmul.f32 %v482, %v860
      %vm862 = vcmp.eq.f32.partialorder %v482, inf
      %v863 = vsel %vm862, %v482, %v861
      %vm864 = vcmp.eq.f32.partialorder %v482, 0.0
      %v865 = vand.u32 %v482, 2147483648
      %v866 = vsel %vm864, %v865, %v863
      %v867 = vrsqrt.pop %v485
      %v868 = vmul.f32 %v485, %v867
      %vm869 = vcmp.eq.f32.partialorder %v485, inf
      %v870 = vsel %vm869, %v485, %v868
      %vm871 = vcmp.eq.f32.partialorder %v485, 0.0
      %v872 = vand.u32 %v485, 2147483648
      %v873 = vsel %vm871, %v872, %v870
      %v874 = vrsqrt.pop %v488
      %v875 = vmul.f32 %v488, %v874
      %vm876 = vcmp.eq.f32.partialorder %v488, inf
      %v877 = vsel %vm876, %v488, %v875
      %vm878 = vcmp.eq.f32.partialorder %v488, 0.0
      %v879 = vand.u32 %v488, 2147483648
      %v880 = vsel %vm878, %v879, %v877
      %v881 = vrsqrt.pop %v491
      %v882 = vmul.f32 %v491, %v881
      %vm883 = vcmp.eq.f32.partialorder %v491, inf
      %v884 = vsel %vm883, %v491, %v882
      %vm885 = vcmp.eq.f32.partialorder %v491, 0.0
      %v886 = vand.u32 %v491, 2147483648
      %v887 = vsel %vm885, %v886, %v884
      %v888 = vrsqrt.pop %v494
      %v889 = vmul.f32 %v494, %v888
      %vm890 = vcmp.eq.f32.partialorder %v494, inf
      %v891 = vsel %vm890, %v494, %v889
      %vm892 = vcmp.eq.f32.partialorder %v494, 0.0
      %v893 = vand.u32 %v494, 2147483648
      %v894 = vsel %vm892, %v893, %v891
      %v895 = vrsqrt.pop %v497
      %v896 = vmul.f32 %v497, %v895
      %vm897 = vcmp.eq.f32.partialorder %v497, inf
      %v898 = vsel %vm897, %v497, %v896
      %vm899 = vcmp.eq.f32.partialorder %v497, 0.0
      %v900 = vand.u32 %v497, 2147483648
      %v901 = vsel %vm899, %v900, %v898
      %v902 = vrsqrt.pop %v500
      %v903 = vmul.f32 %v500, %v902
      %vm904 = vcmp.eq.f32.partialorder %v500, inf
      %v905 = vsel %vm904, %v500, %v903
      %vm906 = vcmp.eq.f32.partialorder %v500, 0.0
      %v907 = vand.u32 %v500, 2147483648
      %v908 = vsel %vm906, %v907, %v905
      %v909 = vrsqrt.pop %v503
      %v910 = vmul.f32 %v503, %v909
      %vm911 = vcmp.eq.f32.partialorder %v503, inf
      %v912 = vsel %vm911, %v503, %v910
      %vm913 = vcmp.eq.f32.partialorder %v503, 0.0
      %v914 = vand.u32 %v503, 2147483648
      %v915 = vsel %vm913, %v914, %v912
      %v916 = vrsqrt.pop %v506
      %v917 = vmul.f32 %v506, %v916
      %vm918 = vcmp.eq.f32.partialorder %v506, inf
      %v919 = vsel %vm918, %v506, %v917
      %vm920 = vcmp.eq.f32.partialorder %v506, 0.0
      %v921 = vand.u32 %v506, 2147483648
      %v922 = vsel %vm920, %v921, %v919
      %v923 = vrsqrt.pop %v509
      %v924 = vmul.f32 %v509, %v923
      %vm925 = vcmp.eq.f32.partialorder %v509, inf
      %v926 = vsel %vm925, %v509, %v924
      %vm927 = vcmp.eq.f32.partialorder %v509, 0.0
      %v928 = vand.u32 %v509, 2147483648
      %v929 = vsel %vm927, %v928, %v926
      %v930 = vrsqrt.pop %v512
      %v931 = vmul.f32 %v512, %v930
      %vm932 = vcmp.eq.f32.partialorder %v512, inf
      %v933 = vsel %vm932, %v512, %v931
      %vm934 = vcmp.eq.f32.partialorder %v512, 0.0
      %v935 = vand.u32 %v512, 2147483648
      %v936 = vsel %vm934, %v935, %v933
      %v937 = vrsqrt.pop %v515
      %v938 = vmul.f32 %v515, %v937
      %vm939 = vcmp.eq.f32.partialorder %v515, inf
      %v940 = vsel %vm939, %v515, %v938
      %vm941 = vcmp.eq.f32.partialorder %v515, 0.0
      %v942 = vand.u32 %v515, 2147483648
      %v943 = vsel %vm941, %v942, %v940
      %v944 = vrsqrt.pop %v518
      %v945 = vmul.f32 %v518, %v944
      %vm946 = vcmp.eq.f32.partialorder %v518, inf
      %v947 = vsel %vm946, %v518, %v945
      %vm948 = vcmp.eq.f32.partialorder %v518, 0.0
      %v949 = vand.u32 %v518, 2147483648
      %v950 = vsel %vm948, %v949, %v947
      %v951 = vrsqrt.pop %v521
      %v952 = vmul.f32 %v521, %v951
      %vm953 = vcmp.eq.f32.partialorder %v521, inf
      %v954 = vsel %vm953, %v521, %v952
      %vm955 = vcmp.eq.f32.partialorder %v521, 0.0
      %v956 = vand.u32 %v521, 2147483648
      %v957 = vsel %vm955, %v956, %v954
      %v958 = vrsqrt.pop %v524
      %v959 = vmul.f32 %v524, %v958
      %vm960 = vcmp.eq.f32.partialorder %v524, inf
      %v961 = vsel %vm960, %v524, %v959
      %vm962 = vcmp.eq.f32.partialorder %v524, 0.0
      %v963 = vand.u32 %v524, 2147483648
      %v964 = vsel %vm962, %v963, %v961
      %v965 = vrsqrt.pop %v527
      %v966 = vmul.f32 %v527, %v965
      %vm967 = vcmp.eq.f32.partialorder %v527, inf
      %v968 = vsel %vm967, %v527, %v966
      %vm969 = vcmp.eq.f32.partialorder %v527, 0.0
      %v970 = vand.u32 %v527, 2147483648
      %v971 = vsel %vm969, %v970, %v968
      %v972 = vrsqrt.pop %v530
      %v973 = vmul.f32 %v530, %v972
      %vm974 = vcmp.eq.f32.partialorder %v530, inf
      %v975 = vsel %vm974, %v530, %v973
      %vm976 = vcmp.eq.f32.partialorder %v530, 0.0
      %v977 = vand.u32 %v530, 2147483648
      %v978 = vsel %vm976, %v977, %v975
      %v979 = vmax.f32 %v537, 1e-12
      %v980 = vmax.f32 %v544, 1e-12
      %v981 = vmax.f32 %v551, 1e-12
      %v982 = vmax.f32 %v558, 1e-12
      %v983 = vmax.f32 %v565, 1e-12
      %v984 = vmax.f32 %v572, 1e-12
      %v985 = vmax.f32 %v579, 1e-12
      %v986 = vmax.f32 %v586, 1e-12
      %v987 = vmax.f32 %v593, 1e-12
      %v988 = vmax.f32 %v600, 1e-12
      %v989 = vmax.f32 %v607, 1e-12
      %v990 = vmax.f32 %v614, 1e-12
      %v991 = vmax.f32 %v621, 1e-12
      %v992 = vmax.f32 %v628, 1e-12
      %v993 = vmax.f32 %v635, 1e-12
      %v994 = vmax.f32 %v642, 1e-12
      %v995 = vmax.f32 %v649, 1e-12
      %v996 = vmax.f32 %v656, 1e-12
      %v997 = vmax.f32 %v663, 1e-12
      %v998 = vmax.f32 %v670, 1e-12
      %v999 = vmax.f32 %v677, 1e-12
      %v1000 = vmax.f32 %v684, 1e-12
      %v1001 = vmax.f32 %v691, 1e-12
      %v1002 = vmax.f32 %v698, 1e-12
      %v1003 = vmax.f32 %v705, 1e-12
      %v1004 = vmax.f32 %v712, 1e-12
      %v1005 = vmax.f32 %v719, 1e-12
      %v1006 = vmax.f32 %v726, 1e-12
      %v1007 = vmax.f32 %v733, 1e-12
      %v1008 = vmax.f32 %v740, 1e-12
      %v1009 = vmax.f32 %v747, 1e-12
      %v1010 = vmax.f32 %v754, 1e-12
      %v1011 = vmax.f32 %v761, 1e-12
      %v1012 = vmax.f32 %v768, 1e-12
      %v1013 = vmax.f32 %v775, 1e-12
      %v1014 = vmax.f32 %v782, 1e-12
      %v1015 = vmax.f32 %v789, 1e-12
      %v1016 = vmax.f32 %v796, 1e-12
      %v1017 = vmax.f32 %v803, 1e-12
      %v1018 = vmax.f32 %v810, 1e-12
      %v1019 = vmax.f32 %v817, 1e-12
      %v1020 = vmax.f32 %v824, 1e-12
      %v1021 = vmax.f32 %v831, 1e-12
      %v1022 = vmax.f32 %v838, 1e-12
      %v1023 = vmax.f32 %v845, 1e-12
      %v1024 = vmax.f32 %v852, 1e-12
      %v1025 = vmax.f32 %v859, 1e-12
      %v1026 = vmax.f32 %v866, 1e-12
      %v1027 = vmax.f32 %v873, 1e-12
      %v1028 = vmax.f32 %v880, 1e-12
      %v1029 = vmax.f32 %v887, 1e-12
      %v1030 = vmax.f32 %v894, 1e-12
      %v1031 = vmax.f32 %v901, 1e-12
      %v1032 = vmax.f32 %v908, 1e-12
      %v1033 = vmax.f32 %v915, 1e-12
      %v1034 = vmax.f32 %v922, 1e-12
      %v1035 = vmax.f32 %v929, 1e-12
      %v1036 = vmax.f32 %v936, 1e-12
      %v1037 = vmax.f32 %v943, 1e-12
      %v1038 = vmax.f32 %v950, 1e-12
      %v1039 = vmax.f32 %v957, 1e-12
      %v1040 = vmax.f32 %v964, 1e-12
      %v1041 = vmax.f32 %v971, 1e-12
      %v1042 = vmax.f32 %v978, 1e-12
      %v1043 = vrcp.pop %v979
      %v1044 = vmul.f32 %v210, %v1043
      %v1045 = vrcp.pop %v980
      %v1046 = vmul.f32 %v211, %v1045
      %v1047 = vrcp.pop %v981
      %v1048 = vmul.f32 %v212, %v1047
      %v1049 = vrcp.pop %v982
      %v1050 = vmul.f32 %v213, %v1049
      %v1051 = vrcp.pop %v983
      %v1052 = vmul.f32 %v214, %v1051
      %v1053 = vrcp.pop %v984
      %v1054 = vmul.f32 %v215, %v1053
      %v1055 = vrcp.pop %v985
      %v1056 = vmul.f32 %v216, %v1055
      %v1057 = vrcp.pop %v986
      %v1058 = vmul.f32 %v217, %v1057
      %v1059 = vrcp.pop %v987
      %v1060 = vmul.f32 %v218, %v1059
      %v1061 = vrcp.pop %v988
      %v1062 = vmul.f32 %v219, %v1061
      %v1063 = vrcp.pop %v989
      %v1064 = vmul.f32 %v220, %v1063
      %v1065 = vrcp.pop %v990
      %v1066 = vmul.f32 %v221, %v1065
      %v1067 = vrcp.pop %v991
      %v1068 = vmul.f32 %v222, %v1067
      %v1069 = vrcp.pop %v992
      %v1070 = vmul.f32 %v223, %v1069
      %v1071 = vrcp.pop %v993
      %v1072 = vmul.f32 %v224, %v1071
      %v1073 = vrcp.pop %v994
      %v1074 = vmul.f32 %v225, %v1073
      %v1075 = vrcp.pop %v995
      %v1076 = vmul.f32 %v226, %v1075
      %v1077 = vrcp.pop %v996
      %v1078 = vmul.f32 %v227, %v1077
      %v1079 = vrcp.pop %v997
      %v1080 = vmul.f32 %v228, %v1079
      %v1081 = vrcp.pop %v998
      %v1082 = vmul.f32 %v229, %v1081
      %v1083 = vrcp.pop %v999
      %v1084 = vmul.f32 %v230, %v1083
      %v1085 = vrcp.pop %v1000
      %v1086 = vmul.f32 %v231, %v1085
      %v1087 = vrcp.pop %v1001
      %v1088 = vmul.f32 %v232, %v1087
      %v1089 = vrcp.pop %v1002
      %v1090 = vmul.f32 %v233, %v1089
      %v1091 = vrcp.pop %v1003
      %v1092 = vmul.f32 %v234, %v1091
      %v1093 = vrcp.pop %v1004
      %v1094 = vmul.f32 %v235, %v1093
      %v1095 = vrcp.pop %v1005
      %v1096 = vmul.f32 %v236, %v1095
      %v1097 = vrcp.pop %v1006
      %v1098 = vmul.f32 %v237, %v1097
      %v1099 = vrcp.pop %v1007
      %v1100 = vmul.f32 %v238, %v1099
      %v1101 = vrcp.pop %v1008
      %v1102 = vmul.f32 %v239, %v1101
      %v1103 = vrcp.pop %v1009
      %v1104 = vmul.f32 %v240, %v1103
      %v1105 = vrcp.pop %v1010
      %v1106 = vmul.f32 %v241, %v1105
      %v1107 = vrcp.pop %v1011
      %v1108 = vmul.f32 %v242, %v1107
      %v1109 = vrcp.pop %v1012
      %v1110 = vmul.f32 %v243, %v1109
      %v1111 = vrcp.pop %v1013
      %v1112 = vmul.f32 %v244, %v1111
      %v1113 = vrcp.pop %v1014
      %v1114 = vmul.f32 %v245, %v1113
      %v1115 = vrcp.pop %v1015
      %v1116 = vmul.f32 %v246, %v1115
      %v1117 = vrcp.pop %v1016
      %v1118 = vmul.f32 %v247, %v1117
      %v1119 = vrcp.pop %v1017
      %v1120 = vmul.f32 %v248, %v1119
      %v1121 = vrcp.pop %v1018
      %v1122 = vmul.f32 %v249, %v1121
      %v1123 = vrcp.pop %v1019
      %v1124 = vmul.f32 %v250, %v1123
      %v1125 = vrcp.pop %v1020
      %v1126 = vmul.f32 %v251, %v1125
      %v1127 = vrcp.pop %v1021
      %v1128 = vmul.f32 %v252, %v1127
      %v1129 = vrcp.pop %v1022
      %v1130 = vmul.f32 %v253, %v1129
      %v1131 = vrcp.pop %v1023
      %v1132 = vmul.f32 %v254, %v1131
      %v1133 = vrcp.pop %v1024
      %v1134 = vmul.f32 %v255, %v1133
      %v1135 = vrcp.pop %v1025
      %v1136 = vmul.f32 %v256, %v1135
      %v1137 = vrcp.pop %v1026
      %v1138 = vmul.f32 %v257, %v1137
      %v1139 = vrcp.pop %v1027
      %v1140 = vmul.f32 %v258, %v1139
      %v1141 = vrcp.pop %v1028
      %v1142 = vmul.f32 %v259, %v1141
      %v1143 = vrcp.pop %v1029
      %v1144 = vmul.f32 %v260, %v1143
      %v1145 = vrcp.pop %v1030
      %v1146 = vmul.f32 %v261, %v1145
      %v1147 = vrcp.pop %v1031
      %v1148 = vmul.f32 %v262, %v1147
      %v1149 = vrcp.pop %v1032
      %v1150 = vmul.f32 %v263, %v1149
      %v1151 = vrcp.pop %v1033
      %v1152 = vmul.f32 %v264, %v1151
      %v1153 = vrcp.pop %v1034
      %v1154 = vmul.f32 %v265, %v1153
      %v1155 = vrcp.pop %v1035
      %v1156 = vmul.f32 %v266, %v1155
      %v1157 = vrcp.pop %v1036
      %v1158 = vmul.f32 %v267, %v1157
      %v1159 = vrcp.pop %v1037
      %v1160 = vmul.f32 %v268, %v1159
      %v1161 = vrcp.pop %v1038
      %v1162 = vmul.f32 %v269, %v1161
      %v1163 = vrcp.pop %v1039
      %v1164 = vmul.f32 %v270, %v1163
      %v1165 = vrcp.pop %v1040
      %v1166 = vmul.f32 %v271, %v1165
      %v1167 = vrcp.pop %v1041
      %v1168 = vmul.f32 %v272, %v1167
      %v1169 = vrcp.pop %v1042
      %v1170 = vmul.f32 %v273, %v1169
      %v1171 = vld [vmem:[%s1] sm:$0x7]
      %v1173 = vsel %vm338, %v1044, 0
      %v1176 = vsel %vm338, %v1046, 0
      %v1179 = vsel %vm338, %v1048, 0
      %v1182 = vsel %vm338, %v1050, 0
      %v1185 = vsel %vm338, %v1052, 0
      %v1188 = vsel %vm338, %v1054, 0
      %v1191 = vsel %vm338, %v1056, 0
      %v1194 = vsel %vm338, %v1058, 0
      %v1197 = vsel %vm338, %v1060, 0
      %v1200 = vsel %vm338, %v1062, 0
      %v1203 = vsel %vm338, %v1064, 0
      %v1206 = vsel %vm338, %v1066, 0
      %v1209 = vsel %vm338, %v1068, 0
      %v1212 = vsel %vm338, %v1070, 0
      %v1215 = vsel %vm338, %v1072, 0
      %v1218 = vsel %vm338, %v1074, 0
      %v1221 = vsel %vm338, %v1076, 0
      %v1224 = vsel %vm338, %v1078, 0
      %v1227 = vsel %vm338, %v1080, 0
      %v1230 = vsel %vm338, %v1082, 0
      %v1233 = vsel %vm338, %v1084, 0
      %v1236 = vsel %vm338, %v1086, 0
      %v1239 = vsel %vm338, %v1088, 0
      %v1242 = vsel %vm338, %v1090, 0
      %v1245 = vsel %vm338, %v1092, 0
      %v1248 = vsel %vm338, %v1094, 0
      %v1251 = vsel %vm338, %v1096, 0
      %v1254 = vsel %vm338, %v1098, 0
      %v1257 = vsel %vm338, %v1100, 0
      %v1260 = vsel %vm338, %v1102, 0
      %v1263 = vsel %vm338, %v1104, 0
      %v1266 = vsel %vm338, %v1106, 0
      %v1269 = vsel %vm338, %v1108, 0
      %v1272 = vsel %vm338, %v1110, 0
      %v1275 = vsel %vm338, %v1112, 0
      %v1278 = vsel %vm338, %v1114, 0
      %v1281 = vsel %vm338, %v1116, 0
      %v1284 = vsel %vm338, %v1118, 0
      %v1287 = vsel %vm338, %v1120, 0
      %v1290 = vsel %vm338, %v1122, 0
      %v1293 = vsel %vm338, %v1124, 0
      %v1296 = vsel %vm338, %v1126, 0
      %v1299 = vsel %vm338, %v1128, 0
      %v1302 = vsel %vm338, %v1130, 0
      %v1305 = vsel %vm338, %v1132, 0
      %v1308 = vsel %vm338, %v1134, 0
      %v1311 = vsel %vm338, %v1136, 0
      %v1314 = vsel %vm338, %v1138, 0
      %v1317 = vsel %vm338, %v1140, 0
      %v1320 = vsel %vm338, %v1142, 0
      %v1323 = vsel %vm338, %v1144, 0
      %v1326 = vsel %vm338, %v1146, 0
      %v1329 = vsel %vm338, %v1148, 0
      %v1332 = vsel %vm338, %v1150, 0
      %v1335 = vsel %vm338, %v1152, 0
      %v1338 = vsel %vm338, %v1154, 0
      %v1341 = vsel %vm338, %v1156, 0
      %v1344 = vsel %vm338, %v1158, 0
      %v1347 = vsel %vm338, %v1160, 0
      %v1350 = vsel %vm338, %v1162, 0
      %v1353 = vsel %vm338, %v1164, 0
      %v1356 = vsel %vm338, %v1166, 0
      %v1359 = vsel %vm338, %v1168, 0
      %v1362 = vsel %vm338, %v1170, 0
      %vm1364 = vcmask 1042432
      %v1366 = vsel %vm1364, %v1171, 0
      %1368 = vmatprep.subr.mxu0 0.0
      %1369 = vmatpush1.msra.mxu0 %v1366
      %1370 = vmatprep.subr.mxu0 0.0
      %1371 = vmatpush1.msra.mxu0 0.0
      %1372 = vmatprep.subr.mxu0 0.0
      %1373 = vmatpush1.msra.mxu0 0.0
      %1374 = vmatprep.subr.mxu0 0.0
      %1375 = vmatpush1.msra.mxu0 0.0
      %1376 = vmatprep.subr.mxu0 0.0
      %1377 = vmatpush1.msra.mxu0 0.0
      %1378 = vmatprep.subr.mxu0 0.0
      %1379 = vmatpush1.msra.mxu0 0.0
      %1380 = vmatprep.subr.mxu0 0.0
      %1381 = vmatpush1.msra.mxu0 0.0
      %1382 = vmatprep.subr.mxu0 0.0
      %1383 = vmatpush1.msra.mxu0 0.0
      %1384 = vmatprep.subr.mxu0 0.0
      %1385 = vmatpush1.msra.mxu0 0.0
      %1386 = vmatprep.subr.mxu0 0.0
      %1387 = vmatpush1.msra.mxu0 0.0
      %1388 = vmatprep.subr.mxu0 0.0
      %1389 = vmatpush1.msra.mxu0 0.0
      %1390 = vmatprep.subr.mxu0 0.0
      %1391 = vmatpush1.msra.mxu0 0.0
      %1392 = vmatprep.subr.mxu0 0.0
      %1393 = vmatpush1.msra.mxu0 0.0
      %1394 = vmatprep.subr.mxu0 0.0
      %1395 = vmatpush1.msra.mxu0 0.0
      %1396 = vmatprep.subr.mxu0 0.0
      %1397 = vmatpush1.msra.mxu0 0.0
      %1398 = vmatprep.subr.mxu0 0.0
      %1399 = vmatpush1.msra.mxu0 0.0
      %1400 = vmatprep.subr.mxu0 0.0
      %1401 = vmatpush1.msra.mxu0 0.0
      %1402 = vmatprep.subr.mxu0 0.0
      %1403 = vmatpush1.msra.mxu0 0.0
      %1404 = vmatprep.subr.mxu0 0.0
      %1405 = vmatpush1.msra.mxu0 0.0
      %1406 = vmatprep.subr.mxu0 0.0
      %1407 = vmatpush1.msra.mxu0 0.0
      %1408 = vmatprep.subr.mxu0 0.0
      %1409 = vmatpush1.msra.mxu0 0.0
      %1410 = vmatprep.subr.mxu0 0.0
      %1411 = vmatpush1.msra.mxu0 0.0
      %1412 = vmatprep.subr.mxu0 0.0
      %1413 = vmatpush1.msra.mxu0 0.0
      %1414 = vmatprep.subr.mxu0 0.0
      %1415 = vmatpush1.msra.mxu0 0.0
      %1416 = vmatprep.subr.mxu0 0.0
      %1417 = vmatpush1.msra.mxu0 0.0
      %1418 = vmatprep.subr.mxu0 0.0
      %1419 = vmatpush1.msra.mxu0 0.0
      %1420 = vmatprep.subr.mxu0 0.0
      %1421 = vmatpush1.msra.mxu0 0.0
      %1422 = vmatprep.subr.mxu0 0.0
      %1423 = vmatpush1.msra.mxu0 0.0
      %1424 = vmatprep.subr.mxu0 0.0
      %1425 = vmatpush1.msra.mxu0 0.0
      %1426 = vmatprep.subr.mxu0 0.0
      %1427 = vmatpush1.msra.mxu0 0.0
      %1428 = vmatprep.subr.mxu0 0.0
      %1429 = vmatpush1.msra.mxu0 0.0
      %1430 = vmatprep.subr.mxu0 0.0
      %1431 = vmatpush1.msra.mxu0 0.0
      %1432 = vmatprep.mubr.f32.mxu0 0.0
      %1433 = vmatmul.mubr.f32.gmra.mrb[0].mxu0 %v1173
      %v1434 = vpop.f32.mrb[0].mxu0
      %v1435 = vadd.f32 0.0, %v1434
      %v1436 = vpop.f32.mrb[0].mxu0
      %1437 = vmatprep.mubr.f32.mxu0 0.0
      %1438 = vmatmul.mubr.f32.gmra.mrb[0].mxu0 %v1176
      %v1439 = vpop.f32.mrb[0].mxu0
      %v1440 = vadd.f32 0.0, %v1439
      %v1441 = vpop.f32.mrb[0].mxu0
      %1442 = vmatprep.mubr.f32.mxu0 0.0
      %1443 = vmatmul.mubr.f32.gmra.mrb[0].mxu0 %v1179
      %v1444 = vpop.f32.mrb[0].mxu0
      %v1445 = vadd.f32 0.0, %v1444
      %v1446 = vpop.f32.mrb[0].mxu0
      %1447 = vmatprep.mubr.f32.mxu0 0.0
      %1448 = vmatmul.mubr.f32.gmra.mrb[0].mxu0 %v1182
      %v1449 = vpop.f32.mrb[0].mxu0
      %v1450 = vadd.f32 0.0, %v1449
      %v1451 = vpop.f32.mrb[0].mxu0
      %1452 = vmatprep.mubr.f32.mxu0 0.0
      %1453 = vmatmul.mubr.f32.gmra.mrb[0].mxu0 %v1185
      %v1454 = vpop.f32.mrb[0].mxu0
      %v1455 = vadd.f32 0.0, %v1454
      %v1456 = vpop.f32.mrb[0].mxu0
      %1457 = vmatprep.mubr.f32.mxu0 0.0
      %1458 = vmatmul.mubr.f32.gmra.mrb[0].mxu0 %v1188
      %v1459 = vpop.f32.mrb[0].mxu0
      %v1460 = vadd.f32 0.0, %v1459
      %v1461 = vpop.f32.mrb[0].mxu0
      %1462 = vmatprep.mubr.f32.mxu0 0.0
      %1463 = vmatmul.mubr.f32.gmra.mrb[0].mxu0 %v1191
      %v1464 = vpop.f32.mrb[0].mxu0
      %v1465 = vadd.f32 0.0, %v1464
      %v1466 = vpop.f32.mrb[0].mxu0
      %1467 = vmatprep.mubr.f32.mxu0 0.0
      %1468 = vmatmul.mubr.f32.gmra.mrb[0].mxu0 %v1194
      %v1469 = vpop.f32.mrb[0].mxu0
      %v1470 = vadd.f32 0.0, %v1469
      %v1471 = vpop.f32.mrb[0].mxu0
      %1472 = vmatprep.mubr.f32.mxu0 0.0
      %1473 = vmatmul.mubr.f32.gmra.mrb[0].mxu0 %v1197
      %v1474 = vpop.f32.mrb[0].mxu0
      %v1475 = vadd.f32 0.0, %v1474
      %v1476 = vpop.f32.mrb[0].mxu0
      %1477 = vmatprep.mubr.f32.mxu0 0.0
      %1478 = vmatmul.mubr.f32.gmra.mrb[0].mxu0 %v1200
      %v1479 = vpop.f32.mrb[0].mxu0
      %v1480 = vadd.f32 0.0, %v1479
      %v1481 = vpop.f32.mrb[0].mxu0
      %1482 = vmatprep.mubr.f32.mxu0 0.0
      %1483 = vmatmul.mubr.f32.gmra.mrb[0].mxu0 %v1203
      %v1484 = vpop.f32.mrb[0].mxu0
      %v1485 = vadd.f32 0.0, %v1484
      %v1486 = vpop.f32.mrb[0].mxu0
      %1487 = vmatprep.mubr.f32.mxu0 0.0
      %1488 = vmatmul.mubr.f32.gmra.mrb[0].mxu0 %v1206
      %v1489 = vpop.f32.mrb[0].mxu0
      %v1490 = vadd.f32 0.0, %v1489
      %v1491 = vpop.f32.mrb[0].mxu0
      %1492 = vmatprep.mubr.f32.mxu0 0.0
      %1493 = vmatmul.mubr.f32.gmra.mrb[0].mxu0 %v1209
      %v1494 = vpop.f32.mrb[0].mxu0
      %v1495 = vadd.f32 0.0, %v1494
      %v1496 = vpop.f32.mrb[0].mxu0
      %1497 = vmatprep.mubr.f32.mxu0 0.0
      %1498 = vmatmul.mubr.f32.gmra.mrb[0].mxu0 %v1212
      %v1499 = vpop.f32.mrb[0].mxu0
      %v1500 = vadd.f32 0.0, %v1499
      %v1501 = vpop.f32.mrb[0].mxu0
      %1502 = vmatprep.mubr.f32.mxu0 0.0
      %1503 = vmatmul.mubr.f32.gmra.mrb[0].mxu0 %v1215
      %v1504 = vpop.f32.mrb[0].mxu0
      %v1505 = vadd.f32 0.0, %v1504
      %v1506 = vpop.f32.mrb[0].mxu0
      %1507 = vmatprep.mubr.f32.mxu0 0.0
      %1508 = vmatmul.mubr.f32.gmra.mrb[0].mxu0 %v1218
      %v1509 = vpop.f32.mrb[0].mxu0
      %v1510 = vadd.f32 0.0, %v1509
      %v1511 = vpop.f32.mrb[0].mxu0
      %1512 = vmatprep.mubr.f32.mxu0 0.0
      %1513 = vmatmul.mubr.f32.gmra.mrb[0].mxu0 %v1221
      %v1514 = vpop.f32.mrb[0].mxu0
      %v1515 = vadd.f32 0.0, %v1514
      %v1516 = vpop.f32.mrb[0].mxu0
      %1517 = vmatprep.mubr.f32.mxu0 0.0
      %1518 = vmatmul.mubr.f32.gmra.mrb[0].mxu0 %v1224
      %v1519 = vpop.f32.mrb[0].mxu0
      %v1520 = vadd.f32 0.0, %v1519
      %v1521 = vpop.f32.mrb[0].mxu0
      %1522 = vmatprep.mubr.f32.mxu0 0.0
      %1523 = vmatmul.mubr.f32.gmra.mrb[0].mxu0 %v1227
      %v1524 = vpop.f32.mrb[0].mxu0
      %v1525 = vadd.f32 0.0, %v1524
      %v1526 = vpop.f32.mrb[0].mxu0
      %1527 = vmatprep.mubr.f32.mxu0 0.0
      %1528 = vmatmul.mubr.f32.gmra.mrb[0].mxu0 %v1230
      %v1529 = vpop.f32.mrb[0].mxu0
      %v1530 = vadd.f32 0.0, %v1529
      %v1531 = vpop.f32.mrb[0].mxu0
      %1532 = vmatprep.mubr.f32.mxu0 0.0
      %1533 = vmatmul.mubr.f32.gmra.mrb[0].mxu0 %v1233
      %v1534 = vpop.f32.mrb[0].mxu0
      %v1535 = vadd.f32 0.0, %v1534
      %v1536 = vpop.f32.mrb[0].mxu0
      %1537 = vmatprep.mubr.f32.mxu0 0.0
      %1538 = vmatmul.mubr.f32.gmra.mrb[0].mxu0 %v1236
      %v1539 = vpop.f32.mrb[0].mxu0
      %v1540 = vadd.f32 0.0, %v1539
      %v1541 = vpop.f32.mrb[0].mxu0
      %1542 = vmatprep.mubr.f32.mxu0 0.0
      %1543 = vmatmul.mubr.f32.gmra.mrb[0].mxu0 %v1239
      %v1544 = vpop.f32.mrb[0].mxu0
      %v1545 = vadd.f32 0.0, %v1544
      %v1546 = vpop.f32.mrb[0].mxu0
      %1547 = vmatprep.mubr.f32.mxu0 0.0
      %1548 = vmatmul.mubr.f32.gmra.mrb[0].mxu0 %v1242
      %v1549 = vpop.f32.mrb[0].mxu0
      %v1550 = vadd.f32 0.0, %v1549
      %v1551 = vpop.f32.mrb[0].mxu0
      %1552 = vmatprep.mubr.f32.mxu0 0.0
      %1553 = vmatmul.mubr.f32.gmra.mrb[0].mxu0 %v1245
      %v1554 = vpop.f32.mrb[0].mxu0
      %v1555 = vadd.f32 0.0, %v1554
      %v1556 = vpop.f32.mrb[0].mxu0
      %1557 = vmatprep.mubr.f32.mxu0 0.0
      %1558 = vmatmul.mubr.f32.gmra.mrb[0].mxu0 %v1248
      %v1559 = vpop.f32.mrb[0].mxu0
      %v1560 = vadd.f32 0.0, %v1559
      %v1561 = vpop.f32.mrb[0].mxu0
      %1562 = vmatprep.mubr.f32.mxu0 0.0
      %1563 = vmatmul.mubr.f32.gmra.mrb[0].mxu0 %v1251
      %v1564 = vpop.f32.mrb[0].mxu0
      %v1565 = vadd.f32 0.0, %v1564
      %v1566 = vpop.f32.mrb[0].mxu0
      %1567 = vmatprep.mubr.f32.mxu0 0.0
      %1568 = vmatmul.mubr.f32.gmra.mrb[0].mxu0 %v1254
      %v1569 = vpop.f32.mrb[0].mxu0
      %v1570 = vadd.f32 0.0, %v1569
      %v1571 = vpop.f32.mrb[0].mxu0
      %1572 = vmatprep.mubr.f32.mxu0 0.0
      %1573 = vmatmul.mubr.f32.gmra.mrb[0].mxu0 %v1257
      %v1574 = vpop.f32.mrb[0].mxu0
      %v1575 = vadd.f32 0.0, %v1574
      %v1576 = vpop.f32.mrb[0].mxu0
      %1577 = vmatprep.mubr.f32.mxu0 0.0
      %1578 = vmatmul.mubr.f32.gmra.mrb[0].mxu0 %v1260
      %v1579 = vpop.f32.mrb[0].mxu0
      %v1580 = vadd.f32 0.0, %v1579
      %v1581 = vpop.f32.mrb[0].mxu0
      %1582 = vmatprep.mubr.f32.mxu0 0.0
      %1583 = vmatmul.mubr.f32.gmra.mrb[0].mxu0 %v1263
      %v1584 = vpop.f32.mrb[0].mxu0
      %v1585 = vadd.f32 0.0, %v1584
      %v1586 = vpop.f32.mrb[0].mxu0
      %1587 = vmatprep.mubr.f32.mxu0 0.0
      %1588 = vmatmul.mubr.f32.gmra.mrb[0].mxu0 %v1266
      %v1589 = vpop.f32.mrb[0].mxu0
      %v1590 = vadd.f32 0.0, %v1589
      %v1591 = vpop.f32.mrb[0].mxu0
      %1592 = vmatprep.mubr.f32.mxu0 0.0
      %1593 = vmatmul.mubr.f32.gmra.mrb[0].mxu0 %v1269
      %v1594 = vpop.f32.mrb[0].mxu0
      %v1595 = vadd.f32 0.0, %v1594
      %v1596 = vpop.f32.mrb[0].mxu0
      %1597 = vmatprep.mubr.f32.mxu0 0.0
      %1598 = vmatmul.mubr.f32.gmra.mrb[0].mxu0 %v1272
      %v1599 = vpop.f32.mrb[0].mxu0
      %v1600 = vadd.f32 0.0, %v1599
      %v1601 = vpop.f32.mrb[0].mxu0
      %1602 = vmatprep.mubr.f32.mxu0 0.0
      %1603 = vmatmul.mubr.f32.gmra.mrb[0].mxu0 %v1275
      %v1604 = vpop.f32.mrb[0].mxu0
      %v1605 = vadd.f32 0.0, %v1604
      %v1606 = vpop.f32.mrb[0].mxu0
      %1607 = vmatprep.mubr.f32.mxu0 0.0
      %1608 = vmatmul.mubr.f32.gmra.mrb[0].mxu0 %v1278
      %v1609 = vpop.f32.mrb[0].mxu0
      %v1610 = vadd.f32 0.0, %v1609
      %v1611 = vpop.f32.mrb[0].mxu0
      %1612 = vmatprep.mubr.f32.mxu0 0.0
      %1613 = vmatmul.mubr.f32.gmra.mrb[0].mxu0 %v1281
      %v1614 = vpop.f32.mrb[0].mxu0
      %v1615 = vadd.f32 0.0, %v1614
      %v1616 = vpop.f32.mrb[0].mxu0
      %1617 = vmatprep.mubr.f32.mxu0 0.0
      %1618 = vmatmul.mubr.f32.gmra.mrb[0].mxu0 %v1284
      %v1619 = vpop.f32.mrb[0].mxu0
      %v1620 = vadd.f32 0.0, %v1619
      %v1621 = vpop.f32.mrb[0].mxu0
      %1622 = vmatprep.mubr.f32.mxu0 0.0
      %1623 = vmatmul.mubr.f32.gmra.mrb[0].mxu0 %v1287
      %v1624 = vpop.f32.mrb[0].mxu0
      %v1625 = vadd.f32 0.0, %v1624
      %v1626 = vpop.f32.mrb[0].mxu0
      %1627 = vmatprep.mubr.f32.mxu0 0.0
      %1628 = vmatmul.mubr.f32.gmra.mrb[0].mxu0 %v1290
      %v1629 = vpop.f32.mrb[0].mxu0
      %v1630 = vadd.f32 0.0, %v1629
      %v1631 = vpop.f32.mrb[0].mxu0
      %1632 = vmatprep.mubr.f32.mxu0 0.0
      %1633 = vmatmul.mubr.f32.gmra.mrb[0].mxu0 %v1293
      %v1634 = vpop.f32.mrb[0].mxu0
      %v1635 = vadd.f32 0.0, %v1634
      %v1636 = vpop.f32.mrb[0].mxu0
      %1637 = vmatprep.mubr.f32.mxu0 0.0
      %1638 = vmatmul.mubr.f32.gmra.mrb[0].mxu0 %v1296
      %v1639 = vpop.f32.mrb[0].mxu0
      %v1640 = vadd.f32 0.0, %v1639
      %v1641 = vpop.f32.mrb[0].mxu0
      %1642 = vmatprep.mubr.f32.mxu0 0.0
      %1643 = vmatmul.mubr.f32.gmra.mrb[0].mxu0 %v1299
      %v1644 = vpop.f32.mrb[0].mxu0
      %v1645 = vadd.f32 0.0, %v1644
      %v1646 = vpop.f32.mrb[0].mxu0
      %1647 = vmatprep.mubr.f32.mxu0 0.0
      %1648 = vmatmul.mubr.f32.gmra.mrb[0].mxu0 %v1302
      %v1649 = vpop.f32.mrb[0].mxu0
      %v1650 = vadd.f32 0.0, %v1649
      %v1651 = vpop.f32.mrb[0].mxu0
      %1652 = vmatprep.mubr.f32.mxu0 0.0
      %1653 = vmatmul.mubr.f32.gmra.mrb[0].mxu0 %v1305
      %v1654 = vpop.f32.mrb[0].mxu0
      %v1655 = vadd.f32 0.0, %v1654
      %v1656 = vpop.f32.mrb[0].mxu0
      %1657 = vmatprep.mubr.f32.mxu0 0.0
      %1658 = vmatmul.mubr.f32.gmra.mrb[0].mxu0 %v1308
      %v1659 = vpop.f32.mrb[0].mxu0
      %v1660 = vadd.f32 0.0, %v1659
      %v1661 = vpop.f32.mrb[0].mxu0
      %1662 = vmatprep.mubr.f32.mxu0 0.0
      %1663 = vmatmul.mubr.f32.gmra.mrb[0].mxu0 %v1311
      %v1664 = vpop.f32.mrb[0].mxu0
      %v1665 = vadd.f32 0.0, %v1664
      %v1666 = vpop.f32.mrb[0].mxu0
      %1667 = vmatprep.mubr.f32.mxu0 0.0
      %1668 = vmatmul.mubr.f32.gmra.mrb[0].mxu0 %v1314
      %v1669 = vpop.f32.mrb[0].mxu0
      %v1670 = vadd.f32 0.0, %v1669
      %v1671 = vpop.f32.mrb[0].mxu0
      %1672 = vmatprep.mubr.f32.mxu0 0.0
      %1673 = vmatmul.mubr.f32.gmra.mrb[0].mxu0 %v1317
      %v1674 = vpop.f32.mrb[0].mxu0
      %v1675 = vadd.f32 0.0, %v1674
      %v1676 = vpop.f32.mrb[0].mxu0
      %1677 = vmatprep.mubr.f32.mxu0 0.0
      %1678 = vmatmul.mubr.f32.gmra.mrb[0].mxu0 %v1320
      %v1679 = vpop.f32.mrb[0].mxu0
      %v1680 = vadd.f32 0.0, %v1679
      %v1681 = vpop.f32.mrb[0].mxu0
      %1682 = vmatprep.mubr.f32.mxu0 0.0
      %1683 = vmatmul.mubr.f32.gmra.mrb[0].mxu0 %v1323
      %v1684 = vpop.f32.mrb[0].mxu0
      %v1685 = vadd.f32 0.0, %v1684
      %v1686 = vpop.f32.mrb[0].mxu0
      %1687 = vmatprep.mubr.f32.mxu0 0.0
      %1688 = vmatmul.mubr.f32.gmra.mrb[0].mxu0 %v1326
      %v1689 = vpop.f32.mrb[0].mxu0
      %v1690 = vadd.f32 0.0, %v1689
      %v1691 = vpop.f32.mrb[0].mxu0
      %1692 = vmatprep.mubr.f32.mxu0 0.0
      %1693 = vmatmul.mubr.f32.gmra.mrb[0].mxu0 %v1329
      %v1694 = vpop.f32.mrb[0].mxu0
      %v1695 = vadd.f32 0.0, %v1694
      %v1696 = vpop.f32.mrb[0].mxu0
      %1697 = vmatprep.mubr.f32.mxu0 0.0
      %1698 = vmatmul.mubr.f32.gmra.mrb[0].mxu0 %v1332
      %v1699 = vpop.f32.mrb[0].mxu0
      %v1700 = vadd.f32 0.0, %v1699
      %v1701 = vpop.f32.mrb[0].mxu0
      %1702 = vmatprep.mubr.f32.mxu0 0.0
      %1703 = vmatmul.mubr.f32.gmra.mrb[0].mxu0 %v1335
      %v1704 = vpop.f32.mrb[0].mxu0
      %v1705 = vadd.f32 0.0, %v1704
      %v1706 = vpop.f32.mrb[0].mxu0
      %1707 = vmatprep.mubr.f32.mxu0 0.0
      %1708 = vmatmul.mubr.f32.gmra.mrb[0].mxu0 %v1338
      %v1709 = vpop.f32.mrb[0].mxu0
      %v1710 = vadd.f32 0.0, %v1709
      %v1711 = vpop.f32.mrb[0].mxu0
      %1712 = vmatprep.mubr.f32.mxu0 0.0
      %1713 = vmatmul.mubr.f32.gmra.mrb[0].mxu0 %v1341
      %v1714 = vpop.f32.mrb[0].mxu0
      %v1715 = vadd.f32 0.0, %v1714
      %v1716 = vpop.f32.mrb[0].mxu0
      %1717 = vmatprep.mubr.f32.mxu0 0.0
      %1718 = vmatmul.mubr.f32.gmra.mrb[0].mxu0 %v1344
      %v1719 = vpop.f32.mrb[0].mxu0
      %v1720 = vadd.f32 0.0, %v1719
      %v1721 = vpop.f32.mrb[0].mxu0
      %1722 = vmatprep.mubr.f32.mxu0 0.0
      %1723 = vmatmul.mubr.f32.gmra.mrb[0].mxu0 %v1347
      %v1724 = vpop.f32.mrb[0].mxu0
      %v1725 = vadd.f32 0.0, %v1724
      %v1726 = vpop.f32.mrb[0].mxu0
      %1727 = vmatprep.mubr.f32.mxu0 0.0
      %1728 = vmatmul.mubr.f32.gmra.mrb[0].mxu0 %v1350
      %v1729 = vpop.f32.mrb[0].mxu0
      %v1730 = vadd.f32 0.0, %v1729
      %v1731 = vpop.f32.mrb[0].mxu0
      %1732 = vmatprep.mubr.f32.mxu0 0.0
      %1733 = vmatmul.mubr.f32.gmra.mrb[0].mxu0 %v1353
      %v1734 = vpop.f32.mrb[0].mxu0
      %v1735 = vadd.f32 0.0, %v1734
      %v1736 = vpop.f32.mrb[0].mxu0
      %1737 = vmatprep.mubr.f32.mxu0 0.0
      %1738 = vmatmul.mubr.f32.gmra.mrb[0].mxu0 %v1356
      %v1739 = vpop.f32.mrb[0].mxu0
      %v1740 = vadd.f32 0.0, %v1739
      %v1741 = vpop.f32.mrb[0].mxu0
      %1742 = vmatprep.mubr.f32.mxu0 0.0
      %1743 = vmatmul.mubr.f32.gmra.mrb[0].mxu0 %v1359
      %v1744 = vpop.f32.mrb[0].mxu0
      %v1745 = vadd.f32 0.0, %v1744
      %v1746 = vpop.f32.mrb[0].mxu0
      %1747 = vmatprep.mubr.f32.mxu0 0.0
      %1748 = vmatmul.mubr.f32.gmra.mrb[0].mxu0 %v1362
      %v1749 = vpop.f32.mrb[0].mxu0
      %v1750 = vadd.f32 0.0, %v1749
      %v1751 = vpop.f32.mrb[0].mxu0
      %1752 = vdwg.mxu0
      %v1753 = vmax.f32 %v1435, 0.0
      %v1754 = vmax.f32 %v1440, 0.0
      %v1755 = vmax.f32 %v1445, 0.0
      %v1756 = vmax.f32 %v1450, 0.0
      %v1757 = vmax.f32 %v1455, 0.0
      %v1758 = vmax.f32 %v1460, 0.0
      %v1759 = vmax.f32 %v1465, 0.0
      %v1760 = vmax.f32 %v1470, 0.0
      %v1761 = vmax.f32 %v1475, 0.0
      %v1762 = vmax.f32 %v1480, 0.0
      %v1763 = vmax.f32 %v1485, 0.0
      %v1764 = vmax.f32 %v1490, 0.0
      %v1765 = vmax.f32 %v1495, 0.0
      %v1766 = vmax.f32 %v1500, 0.0
      %v1767 = vmax.f32 %v1505, 0.0
      %v1768 = vmax.f32 %v1510, 0.0
      %v1769 = vmax.f32 %v1515, 0.0
      %v1770 = vmax.f32 %v1520, 0.0
      %v1771 = vmax.f32 %v1525, 0.0
      %v1772 = vmax.f32 %v1530, 0.0
      %v1773 = vmax.f32 %v1535, 0.0
      %v1774 = vmax.f32 %v1540, 0.0
      %v1775 = vmax.f32 %v1545, 0.0
      %v1776 = vmax.f32 %v1550, 0.0
      %v1777 = vmax.f32 %v1555, 0.0
      %v1778 = vmax.f32 %v1560, 0.0
      %v1779 = vmax.f32 %v1565, 0.0
      %v1780 = vmax.f32 %v1570, 0.0
      %v1781 = vmax.f32 %v1575, 0.0
      %v1782 = vmax.f32 %v1580, 0.0
      %v1783 = vmax.f32 %v1585, 0.0
      %v1784 = vmax.f32 %v1590, 0.0
      %v1785 = vmax.f32 %v1595, 0.0
      %v1786 = vmax.f32 %v1600, 0.0
      %v1787 = vmax.f32 %v1605, 0.0
      %v1788 = vmax.f32 %v1610, 0.0
      %v1789 = vmax.f32 %v1615, 0.0
      %v1790 = vmax.f32 %v1620, 0.0
      %v1791 = vmax.f32 %v1625, 0.0
      %v1792 = vmax.f32 %v1630, 0.0
      %v1793 = vmax.f32 %v1635, 0.0
      %v1794 = vmax.f32 %v1640, 0.0
      %v1795 = vmax.f32 %v1645, 0.0
      %v1796 = vmax.f32 %v1650, 0.0
      %v1797 = vmax.f32 %v1655, 0.0
      %v1798 = vmax.f32 %v1660, 0.0
      %v1799 = vmax.f32 %v1665, 0.0
      %v1800 = vmax.f32 %v1670, 0.0
      %v1801 = vmax.f32 %v1675, 0.0
      %v1802 = vmax.f32 %v1680, 0.0
      %v1803 = vmax.f32 %v1685, 0.0
      %v1804 = vmax.f32 %v1690, 0.0
      %v1805 = vmax.f32 %v1695, 0.0
      %v1806 = vmax.f32 %v1700, 0.0
      %v1807 = vmax.f32 %v1705, 0.0
      %v1808 = vmax.f32 %v1710, 0.0
      %v1809 = vmax.f32 %v1715, 0.0
      %v1810 = vmax.f32 %v1720, 0.0
      %v1811 = vmax.f32 %v1725, 0.0
      %v1812 = vmax.f32 %v1730, 0.0
      %v1813 = vmax.f32 %v1735, 0.0
      %v1814 = vmax.f32 %v1740, 0.0
      %v1815 = vmax.f32 %v1745, 0.0
      %v1816 = vmax.f32 %v1750, 0.0
      %v1817 = vrot.slane %v1753, 4
      %v1818 = vmax.f32 %v1753, %v1817
      %v1819 = vrot.slane %v1818, 2
      %v1820 = vmax.f32 %v1818, %v1819
      %v1821 = vrot.slane %v1820, 1
      %v1822 = vmax.f32 %v1820, %v1821
      %v1823 = vrot.slane %v1754, 4
      %v1824 = vmax.f32 %v1754, %v1823
      %v1825 = vrot.slane %v1824, 2
      %v1826 = vmax.f32 %v1824, %v1825
      %v1827 = vrot.slane %v1826, 1
      %v1828 = vmax.f32 %v1826, %v1827
      %v1829 = vrot.slane %v1755, 4
      %v1830 = vmax.f32 %v1755, %v1829
      %v1831 = vrot.slane %v1830, 2
      %v1832 = vmax.f32 %v1830, %v1831
      %v1833 = vrot.slane %v1832, 1
      %v1834 = vmax.f32 %v1832, %v1833
      %v1835 = vrot.slane %v1756, 4
      %v1836 = vmax.f32 %v1756, %v1835
      %v1837 = vrot.slane %v1836, 2
      %v1838 = vmax.f32 %v1836, %v1837
      %v1839 = vrot.slane %v1838, 1
      %v1840 = vmax.f32 %v1838, %v1839
      %v1841 = vrot.slane %v1757, 4
      %v1842 = vmax.f32 %v1757, %v1841
      %v1843 = vrot.slane %v1842, 2
      %v1844 = vmax.f32 %v1842, %v1843
      %v1845 = vrot.slane %v1844, 1
      %v1846 = vmax.f32 %v1844, %v1845
      %v1847 = vrot.slane %v1758, 4
      %v1848 = vmax.f32 %v1758, %v1847
      %v1849 = vrot.slane %v1848, 2
      %v1850 = vmax.f32 %v1848, %v1849
      %v1851 = vrot.slane %v1850, 1
      %v1852 = vmax.f32 %v1850, %v1851
      %v1853 = vrot.slane %v1759, 4
      %v1854 = vmax.f32 %v1759, %v1853
      %v1855 = vrot.slane %v1854, 2
      %v1856 = vmax.f32 %v1854, %v1855
      %v1857 = vrot.slane %v1856, 1
      %v1858 = vmax.f32 %v1856, %v1857
      %v1859 = vrot.slane %v1760, 4
      %v1860 = vmax.f32 %v1760, %v1859
      %v1861 = vrot.slane %v1860, 2
      %v1862 = vmax.f32 %v1860, %v1861
      %v1863 = vrot.slane %v1862, 1
      %v1864 = vmax.f32 %v1862, %v1863
      %v1865 = vrot.slane %v1761, 4
      %v1866 = vmax.f32 %v1761, %v1865
      %v1867 = vrot.slane %v1866, 2
      %v1868 = vmax.f32 %v1866, %v1867
      %v1869 = vrot.slane %v1868, 1
      %v1870 = vmax.f32 %v1868, %v1869
      %v1871 = vrot.slane %v1762, 4
      %v1872 = vmax.f32 %v1762, %v1871
      %v1873 = vrot.slane %v1872, 2
      %v1874 = vmax.f32 %v1872, %v1873
      %v1875 = vrot.slane %v1874, 1
      %v1876 = vmax.f32 %v1874, %v1875
      %v1877 = vrot.slane %v1763, 4
      %v1878 = vmax.f32 %v1763, %v1877
      %v1879 = vrot.slane %v1878, 2
      %v1880 = vmax.f32 %v1878, %v1879
      %v1881 = vrot.slane %v1880, 1
      %v1882 = vmax.f32 %v1880, %v1881
      %v1883 = vrot.slane %v1764, 4
      %v1884 = vmax.f32 %v1764, %v1883
      %v1885 = vrot.slane %v1884, 2
      %v1886 = vmax.f32 %v1884, %v1885
      %v1887 = vrot.slane %v1886, 1
      %v1888 = vmax.f32 %v1886, %v1887
      %v1889 = vrot.slane %v1765, 4
      %v1890 = vmax.f32 %v1765, %v1889
      %v1891 = vrot.slane %v1890, 2
      %v1892 = vmax.f32 %v1890, %v1891
      %v1893 = vrot.slane %v1892, 1
      %v1894 = vmax.f32 %v1892, %v1893
      %v1895 = vrot.slane %v1766, 4
      %v1896 = vmax.f32 %v1766, %v1895
      %v1897 = vrot.slane %v1896, 2
      %v1898 = vmax.f32 %v1896, %v1897
      %v1899 = vrot.slane %v1898, 1
      %v1900 = vmax.f32 %v1898, %v1899
      %v1901 = vrot.slane %v1767, 4
      %v1902 = vmax.f32 %v1767, %v1901
      %v1903 = vrot.slane %v1902, 2
      %v1904 = vmax.f32 %v1902, %v1903
      %v1905 = vrot.slane %v1904, 1
      %v1906 = vmax.f32 %v1904, %v1905
      %v1907 = vrot.slane %v1768, 4
      %v1908 = vmax.f32 %v1768, %v1907
      %v1909 = vrot.slane %v1908, 2
      %v1910 = vmax.f32 %v1908, %v1909
      %v1911 = vrot.slane %v1910, 1
      %v1912 = vmax.f32 %v1910, %v1911
      %v1913 = vrot.slane %v1769, 4
      %v1914 = vmax.f32 %v1769, %v1913
      %v1915 = vrot.slane %v1914, 2
      %v1916 = vmax.f32 %v1914, %v1915
      %v1917 = vrot.slane %v1916, 1
      %v1918 = vmax.f32 %v1916, %v1917
      %v1919 = vrot.slane %v1770, 4
      %v1920 = vmax.f32 %v1770, %v1919
      %v1921 = vrot.slane %v1920, 2
      %v1922 = vmax.f32 %v1920, %v1921
      %v1923 = vrot.slane %v1922, 1
      %v1924 = vmax.f32 %v1922, %v1923
      %v1925 = vrot.slane %v1771, 4
      %v1926 = vmax.f32 %v1771, %v1925
      %v1927 = vrot.slane %v1926, 2
      %v1928 = vmax.f32 %v1926, %v1927
      %v1929 = vrot.slane %v1928, 1
      %v1930 = vmax.f32 %v1928, %v1929
      %v1931 = vrot.slane %v1772, 4
      %v1932 = vmax.f32 %v1772, %v1931
      %v1933 = vrot.slane %v1932, 2
      %v1934 = vmax.f32 %v1932, %v1933
      %v1935 = vrot.slane %v1934, 1
      %v1936 = vmax.f32 %v1934, %v1935
      %v1937 = vrot.slane %v1773, 4
      %v1938 = vmax.f32 %v1773, %v1937
      %v1939 = vrot.slane %v1938, 2
      %v1940 = vmax.f32 %v1938, %v1939
      %v1941 = vrot.slane %v1940, 1
      %v1942 = vmax.f32 %v1940, %v1941
      %v1943 = vrot.slane %v1774, 4
      %v1944 = vmax.f32 %v1774, %v1943
      %v1945 = vrot.slane %v1944, 2
      %v1946 = vmax.f32 %v1944, %v1945
      %v1947 = vrot.slane %v1946, 1
      %v1948 = vmax.f32 %v1946, %v1947
      %v1949 = vrot.slane %v1775, 4
      %v1950 = vmax.f32 %v1775, %v1949
      %v1951 = vrot.slane %v1950, 2
      %v1952 = vmax.f32 %v1950, %v1951
      %v1953 = vrot.slane %v1952, 1
      %v1954 = vmax.f32 %v1952, %v1953
      %v1955 = vrot.slane %v1776, 4
      %v1956 = vmax.f32 %v1776, %v1955
      %v1957 = vrot.slane %v1956, 2
      %v1958 = vmax.f32 %v1956, %v1957
      %v1959 = vrot.slane %v1958, 1
      %v1960 = vmax.f32 %v1958, %v1959
      %v1961 = vrot.slane %v1777, 4
      %v1962 = vmax.f32 %v1777, %v1961
      %v1963 = vrot.slane %v1962, 2
      %v1964 = vmax.f32 %v1962, %v1963
      %v1965 = vrot.slane %v1964, 1
      %v1966 = vmax.f32 %v1964, %v1965
      %v1967 = vrot.slane %v1778, 4
      %v1968 = vmax.f32 %v1778, %v1967
      %v1969 = vrot.slane %v1968, 2
      %v1970 = vmax.f32 %v1968, %v1969
      %v1971 = vrot.slane %v1970, 1
      %v1972 = vmax.f32 %v1970, %v1971
      %v1973 = vrot.slane %v1779, 4
      %v1974 = vmax.f32 %v1779, %v1973
      %v1975 = vrot.slane %v1974, 2
      %v1976 = vmax.f32 %v1974, %v1975
      %v1977 = vrot.slane %v1976, 1
      %v1978 = vmax.f32 %v1976, %v1977
      %v1979 = vrot.slane %v1780, 4
      %v1980 = vmax.f32 %v1780, %v1979
      %v1981 = vrot.slane %v1980, 2
      %v1982 = vmax.f32 %v1980, %v1981
      %v1983 = vrot.slane %v1982, 1
      %v1984 = vmax.f32 %v1982, %v1983
      %v1985 = vrot.slane %v1781, 4
      %v1986 = vmax.f32 %v1781, %v1985
      %v1987 = vrot.slane %v1986, 2
      %v1988 = vmax.f32 %v1986, %v1987
      %v1989 = vrot.slane %v1988, 1
      %v1990 = vmax.f32 %v1988, %v1989
      %v1991 = vrot.slane %v1782, 4
      %v1992 = vmax.f32 %v1782, %v1991
      %v1993 = vrot.slane %v1992, 2
      %v1994 = vmax.f32 %v1992, %v1993
      %v1995 = vrot.slane %v1994, 1
      %v1996 = vmax.f32 %v1994, %v1995
      %v1997 = vrot.slane %v1783, 4
      %v1998 = vmax.f32 %v1783, %v1997
      %v1999 = vrot.slane %v1998, 2
      %v2000 = vmax.f32 %v1998, %v1999
      %v2001 = vrot.slane %v2000, 1
      %v2002 = vmax.f32 %v2000, %v2001
      %v2003 = vrot.slane %v1784, 4
      %v2004 = vmax.f32 %v1784, %v2003
      %v2005 = vrot.slane %v2004, 2
      %v2006 = vmax.f32 %v2004, %v2005
      %v2007 = vrot.slane %v2006, 1
      %v2008 = vmax.f32 %v2006, %v2007
      %v2009 = vrot.slane %v1785, 4
      %v2010 = vmax.f32 %v1785, %v2009
      %v2011 = vrot.slane %v2010, 2
      %v2012 = vmax.f32 %v2010, %v2011
      %v2013 = vrot.slane %v2012, 1
      %v2014 = vmax.f32 %v2012, %v2013
      %v2015 = vrot.slane %v1786, 4
      %v2016 = vmax.f32 %v1786, %v2015
      %v2017 = vrot.slane %v2016, 2
      %v2018 = vmax.f32 %v2016, %v2017
      %v2019 = vrot.slane %v2018, 1
      %v2020 = vmax.f32 %v2018, %v2019
      %v2021 = vrot.slane %v1787, 4
      %v2022 = vmax.f32 %v1787, %v2021
      %v2023 = vrot.slane %v2022, 2
      %v2024 = vmax.f32 %v2022, %v2023
      %v2025 = vrot.slane %v2024, 1
      %v2026 = vmax.f32 %v2024, %v2025
      %v2027 = vrot.slane %v1788, 4
      %v2028 = vmax.f32 %v1788, %v2027
      %v2029 = vrot.slane %v2028, 2
      %v2030 = vmax.f32 %v2028, %v2029
      %v2031 = vrot.slane %v2030, 1
      %v2032 = vmax.f32 %v2030, %v2031
      %v2033 = vrot.slane %v1789, 4
      %v2034 = vmax.f32 %v1789, %v2033
      %v2035 = vrot.slane %v2034, 2
      %v2036 = vmax.f32 %v2034, %v2035
      %v2037 = vrot.slane %v2036, 1
      %v2038 = vmax.f32 %v2036, %v2037
      %v2039 = vrot.slane %v1790, 4
      %v2040 = vmax.f32 %v1790, %v2039
      %v2041 = vrot.slane %v2040, 2
      %v2042 = vmax.f32 %v2040, %v2041
      %v2043 = vrot.slane %v2042, 1
      %v2044 = vmax.f32 %v2042, %v2043
      %v2045 = vrot.slane %v1791, 4
      %v2046 = vmax.f32 %v1791, %v2045
      %v2047 = vrot.slane %v2046, 2
      %v2048 = vmax.f32 %v2046, %v2047
      %v2049 = vrot.slane %v2048, 1
      %v2050 = vmax.f32 %v2048, %v2049
      %v2051 = vrot.slane %v1792, 4
      %v2052 = vmax.f32 %v1792, %v2051
      %v2053 = vrot.slane %v2052, 2
      %v2054 = vmax.f32 %v2052, %v2053
      %v2055 = vrot.slane %v2054, 1
      %v2056 = vmax.f32 %v2054, %v2055
      %v2057 = vrot.slane %v1793, 4
      %v2058 = vmax.f32 %v1793, %v2057
      %v2059 = vrot.slane %v2058, 2
      %v2060 = vmax.f32 %v2058, %v2059
      %v2061 = vrot.slane %v2060, 1
      %v2062 = vmax.f32 %v2060, %v2061
      %v2063 = vrot.slane %v1794, 4
      %v2064 = vmax.f32 %v1794, %v2063
      %v2065 = vrot.slane %v2064, 2
      %v2066 = vmax.f32 %v2064, %v2065
      %v2067 = vrot.slane %v2066, 1
      %v2068 = vmax.f32 %v2066, %v2067
      %v2069 = vrot.slane %v1795, 4
      %v2070 = vmax.f32 %v1795, %v2069
      %v2071 = vrot.slane %v2070, 2
      %v2072 = vmax.f32 %v2070, %v2071
      %v2073 = vrot.slane %v2072, 1
      %v2074 = vmax.f32 %v2072, %v2073
      %v2075 = vrot.slane %v1796, 4
      %v2076 = vmax.f32 %v1796, %v2075
      %v2077 = vrot.slane %v2076, 2
      %v2078 = vmax.f32 %v2076, %v2077
      %v2079 = vrot.slane %v2078, 1
      %v2080 = vmax.f32 %v2078, %v2079
      %v2081 = vrot.slane %v1797, 4
      %v2082 = vmax.f32 %v1797, %v2081
      %v2083 = vrot.slane %v2082, 2
      %v2084 = vmax.f32 %v2082, %v2083
      %v2085 = vrot.slane %v2084, 1
      %v2086 = vmax.f32 %v2084, %v2085
      %v2087 = vrot.slane %v1798, 4
      %v2088 = vmax.f32 %v1798, %v2087
      %v2089 = vrot.slane %v2088, 2
      %v2090 = vmax.f32 %v2088, %v2089
      %v2091 = vrot.slane %v2090, 1
      %v2092 = vmax.f32 %v2090, %v2091
      %v2093 = vrot.slane %v1799, 4
      %v2094 = vmax.f32 %v1799, %v2093
      %v2095 = vrot.slane %v2094, 2
      %v2096 = vmax.f32 %v2094, %v2095
      %v2097 = vrot.slane %v2096, 1
      %v2098 = vmax.f32 %v2096, %v2097
      %v2099 = vrot.slane %v1800, 4
      %v2100 = vmax.f32 %v1800, %v2099
      %v2101 = vrot.slane %v2100, 2
      %v2102 = vmax.f32 %v2100, %v2101
      %v2103 = vrot.slane %v2102, 1
      %v2104 = vmax.f32 %v2102, %v2103
      %v2105 = vrot.slane %v1801, 4
      %v2106 = vmax.f32 %v1801, %v2105
      %v2107 = vrot.slane %v2106, 2
      %v2108 = vmax.f32 %v2106, %v2107
      %v2109 = vrot.slane %v2108, 1
      %v2110 = vmax.f32 %v2108, %v2109
      %v2111 = vrot.slane %v1802, 4
      %v2112 = vmax.f32 %v1802, %v2111
      %v2113 = vrot.slane %v2112, 2
      %v2114 = vmax.f32 %v2112, %v2113
      %v2115 = vrot.slane %v2114, 1
      %v2116 = vmax.f32 %v2114, %v2115
      %v2117 = vrot.slane %v1803, 4
      %v2118 = vmax.f32 %v1803, %v2117
      %v2119 = vrot.slane %v2118, 2
      %v2120 = vmax.f32 %v2118, %v2119
      %v2121 = vrot.slane %v2120, 1
      %v2122 = vmax.f32 %v2120, %v2121
      %v2123 = vrot.slane %v1804, 4
      %v2124 = vmax.f32 %v1804, %v2123
      %v2125 = vrot.slane %v2124, 2
      %v2126 = vmax.f32 %v2124, %v2125
      %v2127 = vrot.slane %v2126, 1
      %v2128 = vmax.f32 %v2126, %v2127
      %v2129 = vrot.slane %v1805, 4
      %v2130 = vmax.f32 %v1805, %v2129
      %v2131 = vrot.slane %v2130, 2
      %v2132 = vmax.f32 %v2130, %v2131
      %v2133 = vrot.slane %v2132, 1
      %v2134 = vmax.f32 %v2132, %v2133
      %v2135 = vrot.slane %v1806, 4
      %v2136 = vmax.f32 %v1806, %v2135
      %v2137 = vrot.slane %v2136, 2
      %v2138 = vmax.f32 %v2136, %v2137
      %v2139 = vrot.slane %v2138, 1
      %v2140 = vmax.f32 %v2138, %v2139
      %v2141 = vrot.slane %v1807, 4
      %v2142 = vmax.f32 %v1807, %v2141
      %v2143 = vrot.slane %v2142, 2
      %v2144 = vmax.f32 %v2142, %v2143
      %v2145 = vrot.slane %v2144, 1
      %v2146 = vmax.f32 %v2144, %v2145
      %v2147 = vrot.slane %v1808, 4
      %v2148 = vmax.f32 %v1808, %v2147
      %v2149 = vrot.slane %v2148, 2
      %v2150 = vmax.f32 %v2148, %v2149
      %v2151 = vrot.slane %v2150, 1
      %v2152 = vmax.f32 %v2150, %v2151
      %v2153 = vrot.slane %v1809, 4
      %v2154 = vmax.f32 %v1809, %v2153
      %v2155 = vrot.slane %v2154, 2
      %v2156 = vmax.f32 %v2154, %v2155
      %v2157 = vrot.slane %v2156, 1
      %v2158 = vmax.f32 %v2156, %v2157
      %v2159 = vrot.slane %v1810, 4
      %v2160 = vmax.f32 %v1810, %v2159
      %v2161 = vrot.slane %v2160, 2
      %v2162 = vmax.f32 %v2160, %v2161
      %v2163 = vrot.slane %v2162, 1
      %v2164 = vmax.f32 %v2162, %v2163
      %v2165 = vrot.slane %v1811, 4
      %v2166 = vmax.f32 %v1811, %v2165
      %v2167 = vrot.slane %v2166, 2
      %v2168 = vmax.f32 %v2166, %v2167
      %v2169 = vrot.slane %v2168, 1
      %v2170 = vmax.f32 %v2168, %v2169
      %v2171 = vrot.slane %v1812, 4
      %v2172 = vmax.f32 %v1812, %v2171
      %v2173 = vrot.slane %v2172, 2
      %v2174 = vmax.f32 %v2172, %v2173
      %v2175 = vrot.slane %v2174, 1
      %v2176 = vmax.f32 %v2174, %v2175
      %v2177 = vrot.slane %v1813, 4
      %v2178 = vmax.f32 %v1813, %v2177
      %v2179 = vrot.slane %v2178, 2
      %v2180 = vmax.f32 %v2178, %v2179
      %v2181 = vrot.slane %v2180, 1
      %v2182 = vmax.f32 %v2180, %v2181
      %v2183 = vrot.slane %v1814, 4
      %v2184 = vmax.f32 %v1814, %v2183
      %v2185 = vrot.slane %v2184, 2
      %v2186 = vmax.f32 %v2184, %v2185
      %v2187 = vrot.slane %v2186, 1
      %v2188 = vmax.f32 %v2186, %v2187
      %v2189 = vrot.slane %v1815, 4
      %v2190 = vmax.f32 %v1815, %v2189
      %v2191 = vrot.slane %v2190, 2
      %v2192 = vmax.f32 %v2190, %v2191
      %v2193 = vrot.slane %v2192, 1
      %v2194 = vmax.f32 %v2192, %v2193
      %v2195 = vrot.slane %v1816, 4
      %v2196 = vmax.f32 %v1816, %v2195
      %v2197 = vrot.slane %v2196, 2
      %v2198 = vmax.f32 %v2196, %v2197
      %v2199 = vrot.slane %v2198, 1
      %v2200 = vmax.f32 %v2198, %v2199
      %v2201 = vld [vmem:[%s2] sm:$0xff]
      %v2202 = vld [vmem:[%s2 + $0x8] sm:$0xff]
      %v2203 = vld [vmem:[%s2 + $0x10] sm:$0xff]
      %v2204 = vld [vmem:[%s2 + $0x18] sm:$0xff]
      %v2205 = vld [vmem:[%s2 + $0x20] sm:$0xff]
      %v2206 = vld [vmem:[%s2 + $0x28] sm:$0xff]
      %v2207 = vld [vmem:[%s2 + $0x30] sm:$0xff]
      %v2208 = vld [vmem:[%s2 + $0x38] sm:$0xff]
      %v2209 = vld [vmem:[%s2 + $0x40] sm:$0xff]
      %v2210 = vld [vmem:[%s2 + $0x48] sm:$0xff]
      %v2211 = vld [vmem:[%s2 + $0x50] sm:$0xff]
      %v2212 = vld [vmem:[%s2 + $0x58] sm:$0xff]
      %v2213 = vld [vmem:[%s2 + $0x60] sm:$0xff]
      %v2214 = vld [vmem:[%s2 + $0x68] sm:$0xff]
      %v2215 = vld [vmem:[%s2 + $0x70] sm:$0xff]
      %v2216 = vld [vmem:[%s2 + $0x78] sm:$0xff]
      %vm2281 = vcmask 1041409
      %v2282 = vsel %vm2281, %v1828, %v1822
      %vm2283 = vcmask 1042434
      %v2284 = vsel %vm2283, %v1834, %v2282
      %vm2285 = vcmask 1043459
      %v2286 = vsel %vm2285, %v1840, %v2284
      %vm2287 = vcmask 1044484
      %v2288 = vsel %vm2287, %v1846, %v2286
      %vm2289 = vcmask 1045509
      %v2290 = vsel %vm2289, %v1852, %v2288
      %vm2291 = vcmask 1046534
      %v2292 = vsel %vm2291, %v1858, %v2290
      %vm2293 = vcmask 1047559
      %v2294 = vsel %vm2293, %v1864, %v2292
      %v2295 = vsel %vm2281, %v1876, %v1870
      %v2296 = vsel %vm2283, %v1882, %v2295
      %v2297 = vsel %vm2285, %v1888, %v2296
      %v2298 = vsel %vm2287, %v1894, %v2297
      %v2299 = vsel %vm2289, %v1900, %v2298
      %v2300 = vsel %vm2291, %v1906, %v2299
      %v2301 = vsel %vm2293, %v1912, %v2300
      %v2302 = vsel %vm2281, %v1924, %v1918
      %v2303 = vsel %vm2283, %v1930, %v2302
      %v2304 = vsel %vm2285, %v1936, %v2303
      %v2305 = vsel %vm2287, %v1942, %v2304
      %v2306 = vsel %vm2289, %v1948, %v2305
      %v2307 = vsel %vm2291, %v1954, %v2306
      %v2308 = vsel %vm2293, %v1960, %v2307
      %v2309 = vsel %vm2281, %v1972, %v1966
      %v2310 = vsel %vm2283, %v1978, %v2309
      %v2311 = vsel %vm2285, %v1984, %v2310
      %v2312 = vsel %vm2287, %v1990, %v2311
      %v2313 = vsel %vm2289, %v1996, %v2312
      %v2314 = vsel %vm2291, %v2002, %v2313
      %v2315 = vsel %vm2293, %v2008, %v2314
      %v2316 = vsel %vm2281, %v2020, %v2014
      %v2317 = vsel %vm2283, %v2026, %v2316
      %v2318 = vsel %vm2285, %v2032, %v2317
      %v2319 = vsel %vm2287, %v2038, %v2318
      %v2320 = vsel %vm2289, %v2044, %v2319
      %v2321 = vsel %vm2291, %v2050, %v2320
      %v2322 = vsel %vm2293, %v2056, %v2321
      %v2323 = vsel %vm2281, %v2068, %v2062
      %v2324 = vsel %vm2283, %v2074, %v2323
      %v2325 = vsel %vm2285, %v2080, %v2324
      %v2326 = vsel %vm2287, %v2086, %v2325
      %v2327 = vsel %vm2289, %v2092, %v2326
      %v2328 = vsel %vm2291, %v2098, %v2327
      %v2329 = vsel %vm2293, %v2104, %v2328
      %v2330 = vsel %vm2281, %v2116, %v2110
      %v2331 = vsel %vm2283, %v2122, %v2330
      %v2332 = vsel %vm2285, %v2128, %v2331
      %v2333 = vsel %vm2287, %v2134, %v2332
      %v2334 = vsel %vm2289, %v2140, %v2333
      %v2335 = vsel %vm2291, %v2146, %v2334
      %v2336 = vsel %vm2293, %v2152, %v2335
      %v2337 = vsel %vm2281, %v2164, %v2158
      %v2338 = vsel %vm2283, %v2170, %v2337
      %v2339 = vsel %vm2285, %v2176, %v2338
      %v2340 = vsel %vm2287, %v2182, %v2339
      %v2341 = vsel %vm2289, %v2188, %v2340
      %v2342 = vsel %vm2291, %v2194, %v2341
      %v2343 = vsel %vm2293, %v2200, %v2342
      %2352 = vmatprep.subr.mxu0 0.0
      %2353 = vmatpush1.msra.mxu0 %v2201
      %2354 = vmatprep.subr.mxu0 0.0
      %2355 = vmatpush1.msra.mxu0 %v2202
      %2356 = vmatprep.subr.mxu0 0.0
      %2357 = vmatpush1.msra.mxu0 %v2203
      %2358 = vmatprep.subr.mxu0 0.0
      %2359 = vmatpush1.msra.mxu0 %v2204
      %2360 = vmatprep.subr.mxu0 0.0
      %2361 = vmatpush1.msra.mxu0 %v2205
      %2362 = vmatprep.subr.mxu0 0.0
      %2363 = vmatpush1.msra.mxu0 %v2206
      %2364 = vmatprep.subr.mxu0 0.0
      %2365 = vmatpush1.msra.mxu0 %v2207
      %2366 = vmatprep.subr.mxu0 0.0
      %2367 = vmatpush1.msra.mxu0 %v2208
      %2368 = vmatprep.subr.mxu0 0.0
      %2369 = vmatpush1.msra.mxu0 %v2209
      %2370 = vmatprep.subr.mxu0 0.0
      %2371 = vmatpush1.msra.mxu0 %v2210
      %2372 = vmatprep.subr.mxu0 0.0
      %2373 = vmatpush1.msra.mxu0 %v2211
      %2374 = vmatprep.subr.mxu0 0.0
      %2375 = vmatpush1.msra.mxu0 %v2212
      %2376 = vmatprep.subr.mxu0 0.0
      %2377 = vmatpush1.msra.mxu0 %v2213
      %2378 = vmatprep.subr.mxu0 0.0
      %2379 = vmatpush1.msra.mxu0 %v2214
      %2380 = vmatprep.subr.mxu0 0.0
      %2381 = vmatpush1.msra.mxu0 %v2215
      %2382 = vmatprep.subr.mxu0 0.0
      %2383 = vmatpush1.msra.mxu0 %v2216
      %2384 = vmatprep.subr.mxu0 0.0
      %2385 = vmatpush1.msra.mxu0 0.0
      %2386 = vmatprep.subr.mxu0 0.0
      %2387 = vmatpush1.msra.mxu0 0.0
      %2388 = vmatprep.subr.mxu0 0.0
      %2389 = vmatpush1.msra.mxu0 0.0
      %2390 = vmatprep.subr.mxu0 0.0
      %2391 = vmatpush1.msra.mxu0 0.0
      %2392 = vmatprep.subr.mxu0 0.0
      %2393 = vmatpush1.msra.mxu0 0.0
      %2394 = vmatprep.subr.mxu0 0.0
      %2395 = vmatpush1.msra.mxu0 0.0
      %2396 = vmatprep.subr.mxu0 0.0
      %2397 = vmatpush1.msra.mxu0 0.0
      %2398 = vmatprep.subr.mxu0 0.0
      %2399 = vmatpush1.msra.mxu0 0.0
      %2400 = vmatprep.subr.mxu0 0.0
      %2401 = vmatpush1.msra.mxu0 0.0
      %2402 = vmatprep.subr.mxu0 0.0
      %2403 = vmatpush1.msra.mxu0 0.0
      %2404 = vmatprep.subr.mxu0 0.0
      %2405 = vmatpush1.msra.mxu0 0.0
      %2406 = vmatprep.subr.mxu0 0.0
      %2407 = vmatpush1.msra.mxu0 0.0
      %2408 = vmatprep.subr.mxu0 0.0
      %2409 = vmatpush1.msra.mxu0 0.0
      %2410 = vmatprep.subr.mxu0 0.0
      %2411 = vmatpush1.msra.mxu0 0.0
      %2412 = vmatprep.subr.mxu0 0.0
      %2413 = vmatpush1.msra.mxu0 0.0
      %2414 = vmatprep.subr.mxu0 0.0
      %2415 = vmatpush1.msra.mxu0 0.0
      %2416 = vmatprep.mubr.f32.mxu0 0.0
      %2417 = vmatmul.mubr.f32.gmra.mrb[0].mxu0 %v2294
      %v2418 = vpop.f32.mrb[0].mxu0
      %v2419 = vadd.f32 0.0, %v2418
      %v2420 = vpop.f32.mrb[0].mxu0
      %2421 = vmatprep.mubr.f32.mxu0 0.0
      %2422 = vmatmul.mubr.f32.gmra.mrb[0].mxu0 %v2301
      %v2423 = vpop.f32.mrb[0].mxu0
      %v2424 = vadd.f32 0.0, %v2423
      %v2425 = vpop.f32.mrb[0].mxu0
      %2426 = vmatprep.mubr.f32.mxu0 0.0
      %2427 = vmatmul.mubr.f32.gmra.mrb[0].mxu0 %v2308
      %v2428 = vpop.f32.mrb[0].mxu0
      %v2429 = vadd.f32 0.0, %v2428
      %v2430 = vpop.f32.mrb[0].mxu0
      %2431 = vmatprep.mubr.f32.mxu0 0.0
      %2432 = vmatmul.mubr.f32.gmra.mrb[0].mxu0 %v2315
      %v2433 = vpop.f32.mrb[0].mxu0
      %v2434 = vadd.f32 0.0, %v2433
      %v2435 = vpop.f32.mrb[0].mxu0
      %2436 = vmatprep.mubr.f32.mxu0 0.0
      %2437 = vmatmul.mubr.f32.gmra.mrb[0].mxu0 %v2322
      %v2438 = vpop.f32.mrb[0].mxu0
      %v2439 = vadd.f32 0.0, %v2438
      %v2440 = vpop.f32.mrb[0].mxu0
      %2441 = vmatprep.mubr.f32.mxu0 0.0
      %2442 = vmatmul.mubr.f32.gmra.mrb[0].mxu0 %v2329
      %v2443 = vpop.f32.mrb[0].mxu0
      %v2444 = vadd.f32 0.0, %v2443
      %v2445 = vpop.f32.mrb[0].mxu0
      %2446 = vmatprep.mubr.f32.mxu0 0.0
      %2447 = vmatmul.mubr.f32.gmra.mrb[0].mxu0 %v2336
      %v2448 = vpop.f32.mrb[0].mxu0
      %v2449 = vadd.f32 0.0, %v2448
      %v2450 = vpop.f32.mrb[0].mxu0
      %2451 = vmatprep.mubr.f32.mxu0 0.0
      %2452 = vmatmul.mubr.f32.gmra.mrb[0].mxu0 %v2343
      %v2453 = vpop.f32.mrb[0].mxu0
      %v2454 = vadd.f32 0.0, %v2453
      %v2455 = vpop.f32.mrb[0].mxu0
      %2456 = vdwg.mxu0
      %vm2457 = vcmask 261120
      %2458 = vst.msk [vmem:[%s208] sm:$0xff] %vm2457, %v2419
      %2459 = vst.msk [vmem:[%s208 + $0x8] sm:$0xff] %vm2457, %v2424
      %2460 = vst.msk [vmem:[%s208 + $0x10] sm:$0xff] %vm2457, %v2429
      %2461 = vst.msk [vmem:[%s208 + $0x18] sm:$0xff] %vm2457, %v2434
      %2462 = vst.msk [vmem:[%s208 + $0x20] sm:$0xff] %vm2457, %v2439
      %2463 = vst.msk [vmem:[%s208 + $0x28] sm:$0xff] %vm2457, %v2444
      %2464 = vst.msk [vmem:[%s208 + $0x30] sm:$0xff] %vm2457, %v2449
      %2465 = vst.msk [vmem:[%s208 + $0x38] sm:$0xff] %vm2457, %v2454
      %s2466 = smul.u32 8, %s19
      %p2467 = scmp.lt.s32.totalorder %s18, 1
      %s2468 = scalar_select %p2467, %s18, 1
      %p2469 = scmp.lt.s32.totalorder %s2466, 7
      %s2470 = scalar_select %p2469, %s2466, 7
      %s2471 = smul.addr %s2468, 8
      %s2472 = sadd.s32 %s2470, %s2471
      %s2473 = smul.addr %s2472, 8
      %s2474 = scalar_lea.vmem %s3, %s2473
      // Predicated region
      $region33: #{hs_layer_forward.4} parent=31 // pred_check
        %p2475 = pneg %p116
      $region34: #{hs_layer_forward.4} parent=31 // pred_check_branch
        %2477 = sbr.rel (%p2475) target = $region36
      $region35: #{hs_layer_forward.4} parent=31 // pred_region
        %s2478 = smul.u32 8, %s19
      $region36: #{hs_layer_forward.4} parent=31 // pred_fallthru
        _
    $region32: #{hs_layer_forward.4} parent=5 // pred_fallthru
      _
    %p2479 = scmp.le.s32.totalorder 2, %s9
    // Predicated region
    $region37: #{hs_layer_forward.4} parent=5 // pred_check
      %p2480 = pneg %p2479
    $region38: #{hs_layer_forward.4} parent=5 // pred_check_branch
      %2482 = sbr.rel (%p2480) target = $region40
    $region39: #{hs_layer_forward.4} parent=5 // pred_region
      %s2483 = ssub.s32 %s9, 2
      // Predicated region
      $region41: #{hs_layer_forward.4} parent=39 // pred_check
        %p2484 = pneg %p122
      $region42: #{hs_layer_forward.4} parent=39 // pred_check_branch
        %2486 = sbr.rel (%p2484) target = $region44
      $region43: #{hs_layer_forward.4} parent=39 // pred_region
        %s2487 = smul.u32 8, %s21
        %p2488 = scmp.lt.s32.totalorder %s20, 1
        %s2489 = scalar_select %p2488, %s20, 1
        %p2490 = scmp.lt.s32.totalorder %s2487, 7
        %s2491 = scalar_select %p2490, %s2487, 7
        %s2492 = smul.addr %s2489, 8
        %s2493 = sadd.s32 %s2491, %s2492
        %s2494 = smul.addr %s2493, 8
        %s2495 = scalar_lea.vmem %s3, %s2494
      $region44: #{hs_layer_forward.4} parent=39 // pred_fallthru
        _
    $region40: #{hs_layer_forward.4} parent=5 // pred_fallthru
      _
  $region6: #{hs_layer_forward.4} parent=0 // loop_footer
    %s13 = sadd.s32 1, %s9
  $region7: #{hs_layer_forward.4} parent=0 // loop_footer_branch
    %8 = sbr.rel target = $region3
  $region8: #{hs_layer_forward.4} parent=0 // loop_exit
    _

// kernel: hs_layer_forward.5
$region0: #{hs_layer_forward.5}
  #allocation0 [shape = 'u32[]', space=smem, size = 0x4, offset = 0x4, fixed_abs, tag = 'smem constant byte address 0x4 - core index']
  #allocation1 [shape = 'u32[144,128]{1,0:T(1,128)}', space=vmem, size = 0x12000, scoped, tag = 'internal scratch']
  %s0 = inlined_call_operand.vmem [shape: f32[2,16,140], index: 0, kind: input, shape index: {}]
  %s1 = inlined_call_operand.vmem [shape: f32[140,128], index: 1, kind: input, shape index: {}]
  %s2 = inlined_call_operand.vmem [shape: f32[2,1,128], index: 2, kind: input, shape index: {}]
  %s3 = inlined_call_operand.vmem [shape: f32[2,16,128], index: 3, kind: output, shape index: {}]
  %s4 = sld [smem:[#allocation0]]
  $region45: #{hs_layer_forward.5} parent=0
    _
  %s6 = ssub.s32 1, %s4
  %s7 = scalar_select 0, %s6, %s4
  loop: start=0, step=1, limit=4
  $region2: #{hs_layer_forward.5} parent=0 // loop_pre_header
    _
  $region3: #{hs_layer_forward.5} parent=0 // loop_header
    %s9 = sphi 0, %s13
    %p10 = scmp.ge.s32.totalorder %s9, 4
    %s16 = sphi 0, %s28
    %s17 = sphi 0, %s24
    %s18 = sphi 0, %s16
    %s19 = sphi 0, %s17
    %s20 = sphi 0, %s18
    %s21 = sphi 0, %s19
    %s33 = sphi 0, %s35
    %s36 = sphi 0, %s33
    %s37 = sphi 0, %s36
    %s53 = sphi 0, %s37
    %s57 = sphi 0, %s57
    %s59 = sphi 0, %s57
    %s60 = sphi 0, %s59
    %s74 = sphi 0, %s60
    %s80 = sphi 0, %s82
    %s83 = sphi 0, %s80
    %s84 = sphi 0, %s83
    %s100 = sphi 0, %s84
    %s108 = sphi 0, %s110
    %s111 = sphi 0, %s108
    %s112 = sphi 0, %s111
    %s128 = sphi 0, %s112
  $region4: #{hs_layer_forward.5} parent=0 // loop_header_branch
    %12 = sbr.rel (%p10) target = $region8
  $region5: #{hs_layer_forward.5} parent=0 // loop_body
    %s14 = ssub.s32 %s9, 1
    %s15 = ssub.s32 %s9, 2
    %s22 = sadd.s32 1, %s17
    %p23 = scmp.ge.s32.totalorder %s22, 1
    %s24 = scalar_select %p23, 0, %s22
    %s25 = sadd.s32 1, %s16
    %s26 = scalar_select %p23, %s25, %s16
    %p27 = scmp.ge.s32.totalorder %s26, 2
    %s28 = scalar_select %p27, 0, %s26
    %s29 = ssub.s32 %s16, %s28
    %s30 = ssub.s32 %s17, %s24
    %s31 = sor.u32 %s29, %s30
    %p32 = scmp.eq.s32.totalorder %s31, 0
    %s34 = sadd.s32 %s33, 1
    %s35 = scalar_select %p32, %s33, %s34
    %p38 = pneg %p32
    %p39 = scmp.eq.s32.totalorder %s9, 1
    %p40 = por %p38, %p39
    %p41 = scmp.ne.s32.totalorder %s33, %s36
    %p42 = scmp.eq.s32.totalorder %s9, 0
    %p43 = por %p41, %p42
    %p44 = scmp.ne.s32.totalorder %s33, %s36
    %p45 = scmp.eq.s32.totalorder %s14, 1
    %p46 = por %p44, %p45
    %p47 = scmp.ne.s32.totalorder %s36, %s37
    %p48 = scmp.eq.s32.totalorder %s14, 0
    %p49 = por %p47, %p48
    %p50 = scmp.ne.s32.totalorder %s36, %s37
    %p51 = scmp.eq.s32.totalorder %s15, 1
    %p52 = por %p50, %p51
    %p54 = scmp.ne.s32.totalorder %s37, %s53
    %p55 = scmp.eq.s32.totalorder %s15, 0
    %p56 = por %p54, %p55
    %s58 = sadd.s32 %s57, 1
    %p61 = scmp.eq.s32.totalorder %s9, 1
    %p62 = scmp.ne.s32.totalorder %s57, %s59
    %p63 = scmp.eq.s32.totalorder %s9, 0
    %p64 = por %p62, %p63
    %p65 = scmp.ne.s32.totalorder %s57, %s59
    %p66 = scmp.eq.s32.totalorder %s14, 1
    %p67 = por %p65, %p66
    %p68 = scmp.ne.s32.totalorder %s59, %s60
    %p69 = scmp.eq.s32.totalorder %s14, 0
    %p70 = por %p68, %p69
    %p71 = scmp.ne.s32.totalorder %s59, %s60
    %p72 = scmp.eq.s32.totalorder %s15, 1
    %p73 = por %p71, %p72
    %p75 = scmp.ne.s32.totalorder %s60, %s74
    %p76 = scmp.eq.s32.totalorder %s15, 0
    %p77 = por %p75, %p76
    %s78 = ssub.s32 %s16, %s28
    %p79 = scmp.eq.s32.totalorder %s78, 0
    %s81 = sadd.s32 %s80, 1
    %s82 = scalar_select %p79, %s80, %s81
    %p85 = pneg %p79
    %p86 = scmp.eq.s32.totalorder %s9, 1
    %p87 = por %p85, %p86
    %p88 = scmp.ne.s32.totalorder %s80, %s83
    %p89 = scmp.eq.s32.totalorder %s9, 0
    %p90 = por %p88, %p89
    %p91 = scmp.ne.s32.totalorder %s80, %s83
    %p92 = scmp.eq.s32.totalorder %s14, 1
    %p93 = por %p91, %p92
    %p94 = scmp.ne.s32.totalorder %s83, %s84
    %p95 = scmp.eq.s32.totalorder %s14, 0
    %p96 = por %p94, %p95
    %p97 = scmp.ne.s32.totalorder %s83, %s84
    %p98 = scmp.eq.s32.totalorder %s15, 1
    %p99 = por %p97, %p98
    %p101 = scmp.ne.s32.totalorder %s84, %s100
    %p102 = scmp.eq.s32.totalorder %s15, 0
    %p103 = por %p101, %p102
    %s104 = ssub.s32 %s16, %s28
    %s105 = ssub.s32 %s17, %s24
    %s106 = sor.u32 %s104, %s105
    %p107 = scmp.eq.s32.totalorder %s106, 0
    %s109 = sadd.s32 %s108, 1
    %s110 = scalar_select %p107, %s108, %s109
    %p113 = pneg %p107
    %p114 = scmp.eq.s32.totalorder %s9, 1
    %p115 = por %p113, %p114
    %p116 = scmp.ne.s32.totalorder %s108, %s111
    %p117 = scmp.eq.s32.totalorder %s9, 0
    %p118 = por %p116, %p117
    %p119 = scmp.ne.s32.totalorder %s108, %s111
    %p120 = scmp.eq.s32.totalorder %s14, 1
    %p121 = por %p119, %p120
    %p122 = scmp.ne.s32.totalorder %s111, %s112
    %p123 = scmp.eq.s32.totalorder %s14, 0
    %p124 = por %p122, %p123
    %p125 = scmp.ne.s32.totalorder %s111, %s112
    %p126 = scmp.eq.s32.totalorder %s15, 1
    %p127 = por %p125, %p126
    %p129 = scmp.ne.s32.totalorder %s112, %s128
    %p130 = scmp.eq.s32.totalorder %s15, 0
    %p131 = por %p129, %p130
    %p132 = scmp.le.s32.totalorder 1, %s9
    %p133 = scmp.lt.s32.totalorder %s9, 3
    %p134 = pnand %p132, %p133
    %p135 = pneg %p134
    // Predicated region
    $region9: #{hs_layer_forward.5} parent=5 // pred_check
      _
    $region10: #{hs_layer_forward.5} parent=5 // pred_check_branch
      %137 = sbr.rel (%p134) target = $region12
    $region11: #{hs_layer_forward.5} parent=5 // pred_region
      %s138 = ssub.s32 %s9, 1
      // Predicated region
      $region13: #{hs_layer_forward.5} parent=11 // pred_check
        %p139 = pneg %p70
      $region14: #{hs_layer_forward.5} parent=11 // pred_check_branch
        %141 = sbr.rel (%p139) target = $region16
      $region15: #{hs_layer_forward.5} parent=11 // pred_region
        _
      $region16: #{hs_layer_forward.5} parent=11 // pred_fallthru
        _
    $region12: #{hs_layer_forward.5} parent=5 // pred_fallthru
      _
    %p142 = scmp.lt.s32.totalorder %s9, 2
    // Predicated region
    $region17: #{hs_layer_forward.5} parent=5 // pred_check
      %p143 = pneg %p142
    $region18: #{hs_layer_forward.5} parent=5 // pred_check_branch
      %145 = sbr.rel (%p143) target = $region20
    $region19: #{hs_layer_forward.5} parent=5 // pred_region
      // Predicated region
      $region21: #{hs_layer_forward.5} parent=19 // pred_check
        %p146 = pneg %p43
      $region22: #{hs_layer_forward.5} parent=19 // pred_check_branch
        %148 = sbr.rel (%p146) target = $region24
      $region23: #{hs_layer_forward.5} parent=19 // pred_region
        %s149 = smul.u32 2, %s17
        %p150 = scmp.lt.s32.totalorder %s16, 1
        %s151 = scalar_select %p150, %s16, 1
        %p152 = scmp.lt.s32.totalorder %s149, 1
        %s153 = scalar_select %p152, %s149, 1
        %s154 = smul.addr %s153, 2
        %s155 = smul.addr %s151, 4
        %s156 = sadd.s32 %s154, %s155
        %s157 = smul.addr %s156, 8
        %s158 = scalar_lea.vmem %s0, %s157
        %s159 = smul.u32 2, %s17
      $region24: #{hs_layer_forward.5} parent=19 // pred_fallthru
        _
      // Predicated region
      $region25: #{hs_layer_forward.5} parent=19 // pred_check
        %p160 = pneg %p90
      $region26: #{hs_layer_forward.5} parent=19 // pred_check_branch
        %162 = sbr.rel (%p160) target = $region28
      $region27: #{hs_layer_forward.5} parent=19 // pred_region
        %p163 = scmp.lt.s32.totalorder %s16, 1
        %s164 = scalar_select %p163, %s16, 1
        %s165 = scalar_lea.vmem %s2, %s164
      $region28: #{hs_layer_forward.5} parent=19 // pred_fallthru
        _
    $region20: #{hs_layer_forward.5} parent=5 // pred_fallthru
      _
    %p166 = scmp.le.s32.totalorder 1, %s9
    %p167 = scmp.lt.s32.totalorder %s9, 3
    %p168 = pnand %p166, %p167
    %p169 = pneg %p168
    // Predicated region
    $region29: #{hs_layer_forward.5} parent=5 // pred_check
      _
    $region30: #{hs_layer_forward.5} parent=5 // pred_check_branch
      %171 = sbr.rel (%p168) target = $region32
    $region31: #{hs_layer_forward.5} parent=5 // pred_region
      %s172 = ssub.s32 %s9, 1
      %s173 = smul.u32 2, %s19
      %p174 = scmp.lt.s32.totalorder %s18, 1
      %s175 = scalar_select %p174, %s18, 1
      %p176 = scmp.lt.s32.totalorder %s173, 1
      %s177 = scalar_select %p176, %s173, 1
      %s178 = smul.addr %s177, 2
      %s179 = smul.addr %s175, 4
      %s180 = sadd.s32 %s178, %s179
      %s181 = smul.addr %s180, 8
      %s182 = scalar_lea.vmem %s0, %s181
      %p183 = pneg %p49
      %p184 = pneg %p46
      %p185 = pneg %p70
      %p186 = pneg %p67
      %p187 = scmp.lt.s32.totalorder %s18, 1
      %s188 = scalar_select %p187, %s18, 1
      %s189 = scalar_lea.vmem %s2, %s188
      %p190 = pneg %p96
      %p191 = pneg %p93
      %p192 = pneg %p124
      %p193 = pneg %p121
      %s194 = smul.u32 2, %s19
      %p195 = scmp.lt.s32.totalorder %s18, 1
      %s196 = scalar_select %p195, %s18, 1
      %p197 = scmp.lt.s32.totalorder %s194, 1
      %s198 = scalar_select %p197, %s194, 1
      %s199 = smul.addr %s196, 2
      %s200 = sadd.s32 %s198, %s199
      %s201 = smul.addr %s200, 8
      %s202 = scalar_lea.vmem %s3, %s201
      %s203 = smul.u32 2, %s19
      %p204 = scmp.lt.s32.totalorder %s18, 1
      %s205 = scalar_select %p204, %s18, 1
      %p206 = scmp.lt.s32.totalorder %s203, 1
      %s207 = scalar_select %p206, %s203, 1
      %s208 = smul.addr %s207, 2
      %s209 = smul.addr %s205, 4
      %s210 = sadd.s32 %s208, %s209
      %s211 = smul.addr %s210, 8
      %s212 = scalar_lea.vmem %s0, %s211
      %s213 = smul.u32 2, %s19
      %p214 = scmp.lt.s32.totalorder %s18, 1
      %s215 = scalar_select %p214, %s18, 1
      %s216 = scalar_lea.vmem %s2, %s215
      %s217 = smul.u32 2, %s19
      %p218 = scmp.lt.s32.totalorder %s18, 1
      %s219 = scalar_select %p218, %s18, 1
      %p220 = scmp.lt.s32.totalorder %s217, 1
      %s221 = scalar_select %p220, %s217, 1
      %s222 = smul.addr %s219, 2
      %s223 = sadd.s32 %s221, %s222
      %s224 = smul.addr %s223, 8
      %s225 = scalar_lea.vmem %s3, %s224
      %s226 = smul.u32 2, %s19
      %v227 = vld [vmem:[%s212] sm:$0xff]
      %v228 = vld [vmem:[%s212 + $0x8] sm:$0xff]
      %v229 = vld [vmem:[%s212 + $0x10] sm:$0xff]
      %v230 = vld [vmem:[%s212 + $0x18] sm:$0xff]
      %v231 = vld [vmem:[%s1] sm:$0xff]
      %v232 = vld [vmem:[%s1 + $0x8] sm:$0xff]
      %v233 = vld [vmem:[%s1 + $0x10] sm:$0xff]
      %v234 = vld [vmem:[%s1 + $0x18] sm:$0xff]
      %v235 = vld [vmem:[%s1 + $0x20] sm:$0xff]
      %v236 = vld [vmem:[%s1 + $0x28] sm:$0xff]
      %v237 = vld [vmem:[%s1 + $0x30] sm:$0xff]
      %v238 = vld [vmem:[%s1 + $0x38] sm:$0xff]
      %v239 = vld [vmem:[%s1 + $0x40] sm:$0xff]
      %v240 = vld [vmem:[%s1 + $0x48] sm:$0xff]
      %v241 = vld [vmem:[%s1 + $0x50] sm:$0xff]
      %v242 = vld [vmem:[%s1 + $0x58] sm:$0xff]
      %v243 = vld [vmem:[%s1 + $0x60] sm:$0xff]
      %v244 = vld [vmem:[%s1 + $0x68] sm:$0xff]
      %v245 = vld [vmem:[%s1 + $0x70] sm:$0xff]
      %v246 = vld [vmem:[%s1 + $0x78] sm:$0xff]
      %v247 = vld [vmem:[%s1 + $0x80] sm:$0xff]
      %v248 = vld [vmem:[%s1 + $0x88] sm:$0xf]
      %v249 = vld [vmem:[%s216] sm:$0x1]
      %v251 = vlaneseq
      %v252 = vshrl.u32 %v251, 7
      %v253 = vsub.s32 0, %v252
      %v254 = vrot.slane %v249, %v253
      %vm256 = vcmask 97280
      %v258 = vsel %vm256, %v228, 0
      %v261 = vsel %vm256, %v230, 0
      %vm263 = vcmask 1043456
      %v265 = vsel %vm263, %v248, 0
      %267 = vmatprep.subr.mxu0 0.0
      %268 = vmatpush1.msra.mxu0 %v231
      %269 = vmatprep.subr.mxu0 0.0
      %270 = vmatpush1.msra.mxu0 %v232
      %271 = vmatprep.subr.mxu0 0.0
      %272 = vmatpush1.msra.mxu0 %v233
      %273 = vmatprep.subr.mxu0 0.0
      %274 = vmatpush1.msra.mxu0 %v234
      %275 = vmatprep.subr.mxu0 0.0
      %276 = vmatpush1.msra.mxu0 %v235
      %277 = vmatprep.subr.mxu0 0.0
      %278 = vmatpush1.msra.mxu0 %v236
      %279 = vmatprep.subr.mxu0 0.0
      %280 = vmatpush1.msra.mxu0 %v237
      %281 = vmatprep.subr.mxu0 0.0
      %282 = vmatpush1.msra.mxu0 %v238
      %283 = vmatprep.subr.mxu0 0.0
      %284 = vmatpush1.msra.mxu0 %v239
      %285 = vmatprep.subr.mxu0 0.0
      %286 = vmatpush1.msra.mxu0 %v240
      %287 = vmatprep.subr.mxu0 0.0
      %288 = vmatpush1.msra.mxu0 %v241
      %289 = vmatprep.subr.mxu0 0.0
      %290 = vmatpush1.msra.mxu0 %v242
      %291 = vmatprep.subr.mxu0 0.0
      %292 = vmatpush1.msra.mxu0 %v243
      %293 = vmatprep.subr.mxu0 0.0
      %294 = vmatpush1.msra.mxu0 %v244
      %295 = vmatprep.subr.mxu0 0.0
      %296 = vmatpush1.msra.mxu0 %v245
      %297 = vmatprep.subr.mxu0 0.0
      %298 = vmatpush1.msra.mxu0 %v246
      %299 = vmatprep.subr.mxu0 0.0
      %300 = vmatpush1.msra.mxu0 %v247
      %301 = vmatprep.subr.mxu0 0.0
      %302 = vmatpush1.msra.mxu0 %v265
      %303 = vmatprep.subr.mxu0 0.0
      %304 = vmatpush1.msra.mxu0 0.0
      %305 = vmatprep.subr.mxu0 0.0
      %306 = vmatpush1.msra.mxu0 0.0
      %307 = vmatprep.subr.mxu0 0.0
      %308 = vmatpush1.msra.mxu0 0.0
      %309 = vmatprep.subr.mxu0 0.0
      %310 = vmatpush1.msra.mxu0 0.0
      %311 = vmatprep.subr.mxu0 0.0
      %312 = vmatpush1.msra.mxu0 0.0
      %313 = vmatprep.subr.mxu0 0.0
      %314 = vmatpush1.msra.mxu0 0.0
      %315 = vmatprep.subr.mxu0 0.0
      %316 = vmatpush1.msra.mxu0 0.0
      %317 = vmatprep.subr.mxu0 0.0
      %318 = vmatpush1.msra.mxu0 0.0
      %319 = vmatprep.subr.mxu0 0.0
      %320 = vmatpush1.msra.mxu0 0.0
      %321 = vmatprep.subr.mxu0 0.0
      %322 = vmatpush1.msra.mxu0 0.0
      %323 = vmatprep.subr.mxu0 0.0
      %324 = vmatpush1.msra.mxu0 0.0
      %325 = vmatprep.subr.mxu0 0.0
      %326 = vmatpush1.msra.mxu0 0.0
      %327 = vmatprep.subr.mxu0 0.0
      %328 = vmatpush1.msra.mxu0 0.0
      %329 = vmatprep.subr.mxu0 0.0
      %330 = vmatpush1.msra.mxu0 0.0
      %331 = vmatprep.mubr.f32.mxu0 %v258
      %332 = vmatmul.mubr.f32.gmra.mrb[0].mxu0 %v227
      %v333 = vpop.f32.mrb[0].mxu0
      %v334 = vadd.f32 %v254, %v333
      %v335 = vpop.f32.mrb[0].mxu0
      %336 = vmatprep.mubr.f32.mxu0 %v261
      %337 = vmatmul.mubr.f32.gmra.mrb[0].mxu0 %v229
      %v338 = vpop.f32.mrb[0].mxu0
      %v339 = vadd.f32 %v254, %v338
      %v340 = vpop.f32.mrb[0].mxu0
      %341 = vdwg.mxu0
      %342 = vst [vmem:[%s225] sm:$0xff] %v334
      %343 = vst [vmem:[%s225 + $0x8] sm:$0xff] %v339
      %s344 = smul.u32 2, %s19
      %p345 = scmp.lt.s32.totalorder %s18, 1
      %s346 = scalar_select %p345, %s18, 1
      %p347 = scmp.lt.s32.totalorder %s344, 1
      %s348 = scalar_select %p347, %s344, 1
      %s349 = smul.addr %s346, 2
      %s350 = sadd.s32 %s348, %s349
      %s351 = smul.addr %s350, 8
      %s352 = scalar_lea.vmem %s3, %s351
      // Predicated region
      $region33: #{hs_layer_forward.5} parent=31 // pred_check
        %p353 = pneg %p121
      $region34: #{hs_layer_forward.5} parent=31 // pred_check_branch
        %355 = sbr.rel (%p353) target = $region36
      $region35: #{hs_layer_forward.5} parent=31 // pred_region
        %s356 = smul.u32 2, %s19
      $region36: #{hs_layer_forward.5} parent=31 // pred_fallthru
        _
    $region32: #{hs_layer_forward.5} parent=5 // pred_fallthru
      _
    %p357 = scmp.le.s32.totalorder 2, %s9
    // Predicated region
    $region37: #{hs_layer_forward.5} parent=5 // pred_check
      %p358 = pneg %p357
    $region38: #{hs_layer_forward.5} parent=5 // pred_check_branch
      %360 = sbr.rel (%p358) target = $region40
    $region39: #{hs_layer_forward.5} parent=5 // pred_region
      %s361 = ssub.s32 %s9, 2
      // Predicated region
      $region41: #{hs_layer_forward.5} parent=39 // pred_check
        %p362 = pneg %p127
      $region42: #{hs_layer_forward.5} parent=39 // pred_check_branch
        %364 = sbr.rel (%p362) target = $region44
      $region43: #{hs_layer_forward.5} parent=39 // pred_region
        %s365 = smul.u32 2, %s21
        %p366 = scmp.lt.s32.totalorder %s20, 1
        %s367 = scalar_select %p366, %s20, 1
        %p368 = scmp.lt.s32.totalorder %s365, 1
        %s369 = scalar_select %p368, %s365, 1
        %s370 = smul.addr %s367, 2
        %s371 = sadd.s32 %s369, %s370
        %s372 = smul.addr %s371, 8
        %s373 = scalar_lea.vmem %s3, %s372
      $region44: #{hs_layer_forward.5} parent=39 // pred_fallthru
        _
    $region40: #{hs_layer_forward.5} parent=5 // pred_fallthru
      _
  $region6: #{hs_layer_forward.5} parent=0 // loop_footer
    %s13 = sadd.s32 1, %s9
  $region7: #{hs_layer_forward.5} parent=0 // loop_footer_branch
    %8 = sbr.rel target = $region3
  $region8: #{hs_layer_forward.5} parent=0 // loop_exit
    _

</llo_original>
